<compile_context>
chip_gen: v5e
topology: v5e:2x2
jax: 0.10.0
libtpu: 0.0.40
codegen_flags: <defaults>
</compile_context>

<pallas_src>
import math

import jax
import jax.numpy as jnp
from jax import lax
from jax.experimental import pallas as pl
from jax.experimental.pallas import tpu as pltpu

D_MODEL = 32
N_HEAD = 4
HEAD_DIM = D_MODEL // N_HEAD
DIM_FF = 64
NUM_LAYERS = 2
LN_EPS = 1e-5


# ------------------------------- helpers ------------------------------------

def _layernorm(y, g, b):
    mean = jnp.mean(y, axis=-1, keepdims=True)
    var = jnp.mean((y - mean) ** 2, axis=-1, keepdims=True)
    return (y - mean) * lax.rsqrt(var + LN_EPS) * g + b


def _tile_rows(a, n):
    return a if n == 1 else jnp.concatenate([a] * n, axis=0)


# ------------------------------- kernel ------------------------------------

def _make_kernel(B_pg, S1, S2):
    """Fused kernel: one grid step = (batch group, layer); runs both directions."""
    D, H, HD = D_MODEL, N_HEAD, HEAD_DIM
    scale = 1.0 / math.sqrt(HD)

    def kernel(x1_ref, x2_ref, pe1_ref, pe2_ref,
               wqkv_ref, bqkv_ref, wkv_ref, bkv_ref, wq_ref, bq_ref,
               wo_ref, bo_ref, ln1g_ref, ln1b_ref,
               w1_ref, b1_ref, w2_ref, b2_ref, ln2g_ref, ln2b_ref,
               out_ref):
        l = pl.program_id(1)

        wqkv, bqkv = wqkv_ref[0], bqkv_ref[0]
        wkv, bkv = wkv_ref[0], bkv_ref[0]
        wq, bq = wq_ref[0], bq_ref[0]
        wo, bo = wo_ref[0], bo_ref[0]
        ln1g, ln1b = ln1g_ref[0], ln1b_ref[0]
        w1, b1 = w1_ref[0], b1_ref[0]
        w2, b2 = w2_ref[0], b2_ref[0]
        ln2g, ln2b = ln2g_ref[0], ln2b_ref[0]

        def attention(Q, K, V, Sq, Skv):
            # Q: (B_pg*Sq, D), K/V: (B_pg*Skv, D); head h = lane cols [h*HD, (h+1)*HD).
            blocks = []
            for b in range(B_pg):               # static loops; tiny blocks
                for h in range(H):
                    qb = Q[b * Sq:(b + 1) * Sq, h * HD:(h + 1) * HD]
                    kb = K[b * Skv:(b + 1) * Skv, h * HD:(h + 1) * HD]
                    # Q @ K^T via dot_general contracting last dims (no explicit .T)
                    blocks.append(lax.dot_general(
                        qb, kb, (((1,), (1,)), ((), ())),
                        preferred_element_type=jnp.float32))
            # single batched softmax over all (b, h) blocks stacked on sublanes
            s = jnp.concatenate(blocks, axis=0) * scale        # (B_pg*H*Sq, Skv)
            s = s - jnp.max(s, axis=-1, keepdims=True)
            e = jnp.exp(s)
            p = e * pl.reciprocal(jnp.sum(e, axis=-1, keepdims=True), approx=True)
            rows = []
            for b in range(B_pg):
                heads = []
                for h in range(H):
                    blk = b * H + h
                    pb = p[blk * Sq:(blk + 1) * Sq]                       # (Sq, Skv)
                    vb = V[b * Skv:(b + 1) * Skv, h * HD:(h + 1) * HD]    # (Skv, HD)
                    heads.append(jnp.dot(pb, vb, preferred_element_type=jnp.float32))
                rows.append(jnp.concatenate(heads, axis=1))               # (Sq, D)
            ctx = jnp.concatenate(rows, axis=0)                           # (B_pg*Sq, D)
            # single wide out-projection (concat over heads == sum of per-head projs)
            return jnp.dot(ctx, wo, preferred_element_type=jnp.float32) + bo

        def attn_ff_block(q_in, attn_out):
            # residual w/ query + LN, then FF + residual + LN (dropout = identity)
            y = _layernorm(q_in + attn_out, ln1g, ln1b)
            hid = jnp.maximum(
                jnp.dot(y, w1, preferred_element_type=jnp.float32) + b1, 0.0)
            ff = jnp.dot(hid, w2, preferred_element_type=jnp.float32) + b2
            return _layernorm(y + ff, ln2g, ln2b)

        def run_layer(x1_cur, x2_cur, Skv1):
            # Hoisted wide projections: x2 -> (Q1 | K2 | V2), x1 -> (K1 | V1).
            qkv2 = jnp.dot(x2_cur, wqkv, preferred_element_type=jnp.float32) + bqkv
            kv1 = jnp.dot(x1_cur, wkv, preferred_element_type=jnp.float32) + bkv
            Q1, K2, V2 = qkv2[:, :D], qkv2[:, D:2 * D], qkv2[:, 2 * D:]
            K1, V1 = kv1[:, :D], kv1[:, D:]
            # direction 1: query = x2, key/value = x1
            new1 = attn_ff_block(x2_cur, attention(Q1, K1, V1, S2, Skv1))
            # direction 2: query = new x1, key/value = x2
            Q2 = jnp.dot(new1, wq, preferred_element_type=jnp.float32) + bq
            new2 = attn_ff_block(new1, attention(Q2, K2, V2, S2, S2))
            return new1, new2

        @pl.when(l == 0)
        def _():
            # first layer: read fresh inputs, fold in the positional encoding
            x1_0 = x1_ref[...] + _tile_rows(pe1_ref[...], B_pg)
            x2_0 = x2_ref[...] + _tile_rows(pe2_ref[...], B_pg)
            n1, n2 = run_layer(x1_0, x2_0, S1)
            out_ref[...] = jnp.concatenate([n1, n2], axis=1)

        @pl.when(l > 0)
        def _():
            # state is resident in the output block (same block index across layers)
            st = out_ref[...]
            n1, n2 = run_layer(st[:, :D], st[:, D:], S2)
            out_ref[...] = jnp.concatenate([n1, n2], axis=1)

    return kernel


# ------------------------------ wrapper -------------------------------------

def positional_encoding(seq_len, d_model):
    position = jnp.arange(seq_len, dtype=jnp.float32)[:, None]
    div_term = jnp.exp(jnp.arange(0, d_model, 2, dtype=jnp.float32)
                       * (-math.log(10000.0) / d_model))
    pe = jnp.zeros((seq_len, d_model), jnp.float32)
    pe = pe.at[:, 0::2].set(jnp.sin(position * div_term))
    pe = pe.at[:, 1::2].set(jnp.cos(position * div_term))
    return pe


def _stack(params, key):
    return jnp.stack([p[key] for p in params], axis=0)


def _pack_layer_params(params):
    wq, wk, wv = _stack(params, "wq"), _stack(params, "wk"), _stack(params, "wv")
    bq, bk, bv = _stack(params, "bq"), _stack(params, "bk"), _stack(params, "bv")
    return {
        "wqkv": jnp.concatenate([wq, wk, wv], axis=2),   # (L, D, 3D)
        "bqkv": jnp.concatenate([bq, bk, bv], axis=2),   # (L, 1, 3D)
        "wkv": jnp.concatenate([wk, wv], axis=2),        # (L, D, 2D)
        "bkv": jnp.concatenate([bk, bv], axis=2),        # (L, 1, 2D)
        "wq": wq, "bq": bq,
        "wo": _stack(params, "wo"), "bo": _stack(params, "bo"),
        "ca_ln_g": _stack(params, "ca_ln_g"), "ca_ln_b": _stack(params, "ca_ln_b"),
        "w1": _stack(params, "w1"), "b1": _stack(params, "b1"),
        "w2": _stack(params, "w2"), "b2": _stack(params, "b2"),
        "ln_g": _stack(params, "ln_g"), "ln_b": _stack(params, "ln_b"),
    }


def transformer_cross_attn(x1, x2, params):
    B, S1, D = x1.shape
    S2 = x2.shape[1]
    L = len(params)

    # batch grid axis: 2 parallel groups when the row blocks stay (8,·)-aligned
    # (feeds both v7x TensorCores; neutral on v5e/v6e).
    n_bg = 2 if (B % 2 == 0 and ((B // 2) * S1) % 8 == 0
                 and ((B // 2) * S2) % 8 == 0) else 1
    B_pg = B // n_bg

    pk = _pack_layer_params(params)
    pe1 = positional_encoding(S1, D)
    pe2 = positional_encoding(S2, D)
    x1f = x1.reshape(B * S1, D).astype(jnp.float32)
    x2f = x2.reshape(B * S2, D).astype(jnp.float32)

    def rows_spec(rows_pg, cols):
        return pl.BlockSpec((rows_pg, cols), lambda bg, l: (bg, 0))

    def full_spec(shape):
        return pl.BlockSpec(shape, lambda bg, l: (0,) * len(shape))

    def layer_spec(arr):
        return pl.BlockSpec((1,) + arr.shape[1:], lambda bg, l: (l, 0, 0))

    weight_order = ("wqkv", "bqkv", "wkv", "bkv", "wq", "bq", "wo", "bo",
                    "ca_ln_g", "ca_ln_b", "w1", "b1", "w2", "b2", "ln_g", "ln_b")
    weights = [pk[k] for k in weight_order]

    in_specs = ([rows_spec(B_pg * S1, D), rows_spec(B_pg * S2, D),
                 full_spec((S1, D)), full_spec((S2, D))]
                + [layer_spec(w) for w in weights])

    packed = pl.pallas_call(
        _make_kernel(B_pg, S1, S2),
        out_shape=jax.ShapeDtypeStruct((B * S2, 2 * D), jnp.float32),
        grid=(n_bg, L),
        in_specs=in_specs,
        out_specs=pl.BlockSpec((B_pg * S2, 2 * D), lambda bg, l: (bg, 0)),
        compiler_params=pltpu.CompilerParams(
            dimension_semantics=("parallel", "arbitrary")),
    )(x1f, x2f, pe1, pe2, *weights)

    out1 = packed[:, :D].reshape(B, S2, D)
    out2 = packed[:, D:].reshape(B, S2, D)
    return out1, out2


# -------------------------- pure-JAX reference ------------------------------

def _attn_ref(q, kv, p):
    B, Sq, D = q.shape
    Skv = kv.shape[1]
    Q = q @ p["wq"] + p["bq"]
    K = kv @ p["wk"] + p["bk"]
    V = kv @ p["wv"] + p["bv"]
    Qh = Q.reshape(B, Sq, N_HEAD, HEAD_DIM).transpose(0, 2, 1, 3)
    Kh = K.reshape(B, Skv, N_HEAD, HEAD_DIM).transpose(0, 2, 1, 3)
    Vh = V.reshape(B, Skv, N_HEAD, HEAD_DIM).transpose(0, 2, 1, 3)
    scores = jnp.einsum("bhqd,bhkd->bhqk", Qh, Kh) / math.sqrt(HEAD_DIM)
    probs = jax.nn.softmax(scores, axis=-1)
    o = jnp.einsum("bhqk,bhkd->bhqd", probs, Vh)
    o = o.transpose(0, 2, 1, 3).reshape(B, Sq, D)
    out = o @ p["wo"] + p["bo"]
    return _layernorm(q + out, p["ca_ln_g"], p["ca_ln_b"])


def _ff_ref(x, p):
    h = jnp.maximum(x @ p["w1"] + p["b1"], 0.0)
    y = x + (h @ p["w2"] + p["b2"])
    return _layernorm(y, p["ln_g"], p["ln_b"])


def transformer_cross_attn_ref(x1, x2, params):
    x1p = x1 + positional_encoding(x1.shape[1], x1.shape[2])[None]
    x2p = x2 + positional_encoding(x2.shape[1], x2.shape[2])[None]
    for p in params:
        x1p = _ff_ref(_attn_ref(x2p, x1p, p), p)
        x2p = _ff_ref(_attn_ref(x1p, x2p, p), p)
    return x1p, x2p


# --------------------------------- init --------------------------------------

def init_params(key):
    params = []
    for i in range(NUM_LAYERS):
        ks = jax.random.split(jax.random.fold_in(key, i), 12)
        w = lambda k, shape: (0.05 * jax.random.normal(k, shape)).astype(jnp.float32)
        params.append({
            "wq": w(ks[0], (D_MODEL, D_MODEL)), "bq": w(ks[1], (1, D_MODEL)),
            "wk": w(ks[2], (D_MODEL, D_MODEL)), "bk": w(ks[3], (1, D_MODEL)),
            "wv": w(ks[4], (D_MODEL, D_MODEL)), "bv": w(ks[5], (1, D_MODEL)),
            "wo": w(ks[6], (D_MODEL, D_MODEL)), "bo": w(ks[7], (1, D_MODEL)),
            "ca_ln_g": jnp.ones((1, D_MODEL), jnp.float32),
            "ca_ln_b": jnp.zeros((1, D_MODEL), jnp.float32),
            "w1": w(ks[8], (D_MODEL, DIM_FF)), "b1": w(ks[9], (1, DIM_FF)),
            "w2": w(ks[10], (DIM_FF, D_MODEL)), "b2": w(ks[11], (1, D_MODEL)),
            "ln_g": jnp.ones((1, D_MODEL), jnp.float32),
            "ln_b": jnp.zeros((1, D_MODEL), jnp.float32),
        })
    return params


if __name__ == "__main__":
    B, S = 2, 8
    key = jax.random.PRNGKey(0)
    k1, k2, kp = jax.random.split(key, 3)
    x1 = jax.random.normal(k1, (B, S, D_MODEL), jnp.float32)
    x2 = jax.random.normal(k2, (B, S, D_MODEL), jnp.float32)
    params = init_params(kp)

    out1, out2 = transformer_cross_attn(x1, x2, params)
    jax.block_until_ready((out1, out2))

    ref1, ref2 = transformer_cross_attn_ref(x1, x2, params)
    assert out1.shape == (B, S, D_MODEL) and out2.shape == (B, S, D_MODEL)
    assert bool(jnp.all(jnp.isfinite(out1))) and bool(jnp.all(jnp.isfinite(out2)))
    assert bool(jnp.allclose(out1, ref1, atol=2e-2, rtol=2e-2))
    assert bool(jnp.allclose(out2, ref2, atol=2e-2, rtol=2e-2))
    print("KERNEL_OK")
</pallas_src>

<mosaic_0001>
module attributes {stable_mosaic.version = 11 : i64} {
  func.func @kernel(%arg0: i32, %arg1: i32, %arg2: memref<8x32xf32, #tpu.memory_space<vmem>>, %arg3: memref<8x32xf32, #tpu.memory_space<vmem>>, %arg4: memref<8x32xf32, #tpu.memory_space<vmem>>, %arg5: memref<8x32xf32, #tpu.memory_space<vmem>>, %arg6: memref<1x32x96xf32, #tpu.memory_space<vmem>>, %arg7: memref<1x1x96xf32, #tpu.memory_space<vmem>>, %arg8: memref<1x32x64xf32, #tpu.memory_space<vmem>>, %arg9: memref<1x1x64xf32, #tpu.memory_space<vmem>>, %arg10: memref<1x32x32xf32, #tpu.memory_space<vmem>>, %arg11: memref<1x1x32xf32, #tpu.memory_space<vmem>>, %arg12: memref<1x32x32xf32, #tpu.memory_space<vmem>>, %arg13: memref<1x1x32xf32, #tpu.memory_space<vmem>>, %arg14: memref<1x1x32xf32, #tpu.memory_space<vmem>>, %arg15: memref<1x1x32xf32, #tpu.memory_space<vmem>>, %arg16: memref<1x32x64xf32, #tpu.memory_space<vmem>>, %arg17: memref<1x1x64xf32, #tpu.memory_space<vmem>>, %arg18: memref<1x64x32xf32, #tpu.memory_space<vmem>>, %arg19: memref<1x1x32xf32, #tpu.memory_space<vmem>>, %arg20: memref<1x1x32xf32, #tpu.memory_space<vmem>>, %arg21: memref<1x1x32xf32, #tpu.memory_space<vmem>>, %arg22: memref<8x64xf32, #tpu.memory_space<vmem>>) attributes {dimension_semantics = [#tpu.dimension_semantics<parallel>, #tpu.dimension_semantics<arbitrary>], iteration_bounds = array<i64: 2, 2>, scalar_prefetch = 0 : i64, scratch_operands = 0 : i64, tpu.core_type = #tpu.core_type<tc>, window_params = [{transform_indices = @transform_0, window_bounds = array<i64: 8, 32>}, {transform_indices = @transform_1, window_bounds = array<i64: 8, 32>}, {pipeline_mode = #tpu.pipeline_mode<synchronous>, transform_indices = @transform_2, window_bounds = array<i64: 8, 32>}, {pipeline_mode = #tpu.pipeline_mode<synchronous>, transform_indices = @transform_3, window_bounds = array<i64: 8, 32>}, {transform_indices = @transform_4, window_bounds = array<i64: 1, 32, 96>}, {transform_indices = @transform_5, window_bounds = array<i64: 1, 1, 96>}, {transform_indices = @transform_6, window_bounds = array<i64: 1, 32, 64>}, {transform_indices = @transform_7, window_bounds = array<i64: 1, 1, 64>}, {transform_indices = @transform_8, window_bounds = array<i64: 1, 32, 32>}, {transform_indices = @transform_9, window_bounds = array<i64: 1, 1, 32>}, {transform_indices = @transform_10, window_bounds = array<i64: 1, 32, 32>}, {transform_indices = @transform_11, window_bounds = array<i64: 1, 1, 32>}, {transform_indices = @transform_12, window_bounds = array<i64: 1, 1, 32>}, {transform_indices = @transform_13, window_bounds = array<i64: 1, 1, 32>}, {transform_indices = @transform_14, window_bounds = array<i64: 1, 32, 64>}, {transform_indices = @transform_15, window_bounds = array<i64: 1, 1, 64>}, {transform_indices = @transform_16, window_bounds = array<i64: 1, 64, 32>}, {transform_indices = @transform_17, window_bounds = array<i64: 1, 1, 32>}, {transform_indices = @transform_18, window_bounds = array<i64: 1, 1, 32>}, {transform_indices = @transform_19, window_bounds = array<i64: 1, 1, 32>}, {transform_indices = @transform_20, window_bounds = array<i64: 8, 64>}]} {
    %c0 = arith.constant 0 : index
    %c0_0 = arith.constant 0 : index
    %c0_1 = arith.constant 0 : index
    %0 = vector.load %arg6[%c0, %c0_0, %c0_1] : memref<1x32x96xf32, #tpu.memory_space<vmem>>, vector<1x32x96xf32>
    %1 = vector.shape_cast %0 : vector<1x32x96xf32> to vector<32x96xf32>
    %c0_2 = arith.constant 0 : index
    %c0_3 = arith.constant 0 : index
    %c0_4 = arith.constant 0 : index
    %2 = vector.load %arg7[%c0_2, %c0_3, %c0_4] : memref<1x1x96xf32, #tpu.memory_space<vmem>>, vector<1x1x96xf32>
    %3 = vector.shape_cast %2 : vector<1x1x96xf32> to vector<1x96xf32>
    %c0_5 = arith.constant 0 : index
    %c0_6 = arith.constant 0 : index
    %c0_7 = arith.constant 0 : index
    %4 = vector.load %arg8[%c0_5, %c0_6, %c0_7] : memref<1x32x64xf32, #tpu.memory_space<vmem>>, vector<1x32x64xf32>
    %5 = vector.shape_cast %4 : vector<1x32x64xf32> to vector<32x64xf32>
    %c0_8 = arith.constant 0 : index
    %c0_9 = arith.constant 0 : index
    %c0_10 = arith.constant 0 : index
    %6 = vector.load %arg9[%c0_8, %c0_9, %c0_10] : memref<1x1x64xf32, #tpu.memory_space<vmem>>, vector<1x1x64xf32>
    %7 = vector.shape_cast %6 : vector<1x1x64xf32> to vector<1x64xf32>
    %c0_11 = arith.constant 0 : index
    %c0_12 = arith.constant 0 : index
    %c0_13 = arith.constant 0 : index
    %8 = vector.load %arg10[%c0_11, %c0_12, %c0_13] : memref<1x32x32xf32, #tpu.memory_space<vmem>>, vector<1x32x32xf32>
    %9 = vector.shape_cast %8 : vector<1x32x32xf32> to vector<32x32xf32>
    %c0_14 = arith.constant 0 : index
    %c0_15 = arith.constant 0 : index
    %c0_16 = arith.constant 0 : index
    %10 = vector.load %arg11[%c0_14, %c0_15, %c0_16] : memref<1x1x32xf32, #tpu.memory_space<vmem>>, vector<1x1x32xf32>
    %11 = vector.shape_cast %10 : vector<1x1x32xf32> to vector<1x32xf32>
    %c0_17 = arith.constant 0 : index
    %c0_18 = arith.constant 0 : index
    %c0_19 = arith.constant 0 : index
    %12 = vector.load %arg12[%c0_17, %c0_18, %c0_19] : memref<1x32x32xf32, #tpu.memory_space<vmem>>, vector<1x32x32xf32>
    %13 = vector.shape_cast %12 : vector<1x32x32xf32> to vector<32x32xf32>
    %c0_20 = arith.constant 0 : index
    %c0_21 = arith.constant 0 : index
    %c0_22 = arith.constant 0 : index
    %14 = vector.load %arg13[%c0_20, %c0_21, %c0_22] : memref<1x1x32xf32, #tpu.memory_space<vmem>>, vector<1x1x32xf32>
    %15 = vector.shape_cast %14 : vector<1x1x32xf32> to vector<1x32xf32>
    %c0_23 = arith.constant 0 : index
    %c0_24 = arith.constant 0 : index
    %c0_25 = arith.constant 0 : index
    %16 = vector.load %arg14[%c0_23, %c0_24, %c0_25] : memref<1x1x32xf32, #tpu.memory_space<vmem>>, vector<1x1x32xf32>
    %17 = vector.shape_cast %16 : vector<1x1x32xf32> to vector<1x32xf32>
    %c0_26 = arith.constant 0 : index
    %c0_27 = arith.constant 0 : index
    %c0_28 = arith.constant 0 : index
    %18 = vector.load %arg15[%c0_26, %c0_27, %c0_28] : memref<1x1x32xf32, #tpu.memory_space<vmem>>, vector<1x1x32xf32>
    %19 = vector.shape_cast %18 : vector<1x1x32xf32> to vector<1x32xf32>
    %c0_29 = arith.constant 0 : index
    %c0_30 = arith.constant 0 : index
    %c0_31 = arith.constant 0 : index
    %20 = vector.load %arg16[%c0_29, %c0_30, %c0_31] : memref<1x32x64xf32, #tpu.memory_space<vmem>>, vector<1x32x64xf32>
    %21 = vector.shape_cast %20 : vector<1x32x64xf32> to vector<32x64xf32>
    %c0_32 = arith.constant 0 : index
    %c0_33 = arith.constant 0 : index
    %c0_34 = arith.constant 0 : index
    %22 = vector.load %arg17[%c0_32, %c0_33, %c0_34] : memref<1x1x64xf32, #tpu.memory_space<vmem>>, vector<1x1x64xf32>
    %23 = vector.shape_cast %22 : vector<1x1x64xf32> to vector<1x64xf32>
    %c0_35 = arith.constant 0 : index
    %c0_36 = arith.constant 0 : index
    %c0_37 = arith.constant 0 : index
    %24 = vector.load %arg18[%c0_35, %c0_36, %c0_37] : memref<1x64x32xf32, #tpu.memory_space<vmem>>, vector<1x64x32xf32>
    %25 = vector.shape_cast %24 : vector<1x64x32xf32> to vector<64x32xf32>
    %c0_38 = arith.constant 0 : index
    %c0_39 = arith.constant 0 : index
    %c0_40 = arith.constant 0 : index
    %26 = vector.load %arg19[%c0_38, %c0_39, %c0_40] : memref<1x1x32xf32, #tpu.memory_space<vmem>>, vector<1x1x32xf32>
    %27 = vector.shape_cast %26 : vector<1x1x32xf32> to vector<1x32xf32>
    %c0_41 = arith.constant 0 : index
    %c0_42 = arith.constant 0 : index
    %c0_43 = arith.constant 0 : index
    %28 = vector.load %arg20[%c0_41, %c0_42, %c0_43] : memref<1x1x32xf32, #tpu.memory_space<vmem>>, vector<1x1x32xf32>
    %29 = vector.shape_cast %28 : vector<1x1x32xf32> to vector<1x32xf32>
    %c0_44 = arith.constant 0 : index
    %c0_45 = arith.constant 0 : index
    %c0_46 = arith.constant 0 : index
    %30 = vector.load %arg21[%c0_44, %c0_45, %c0_46] : memref<1x1x32xf32, #tpu.memory_space<vmem>>, vector<1x1x32xf32>
    %31 = vector.shape_cast %30 : vector<1x1x32xf32> to vector<1x32xf32>
    %c0_i32 = arith.constant 0 : i32
    %32 = arith.cmpi eq, %arg1, %c0_i32 : i32
    %33 = arith.extui %32 : i1 to i32
    %c0_i32_47 = arith.constant 0 : i32
    %34 = arith.cmpi ne, %33, %c0_i32_47 : i32
    scf.if %34 {
      %c0_50 = arith.constant 0 : index
      %c0_51 = arith.constant 0 : index
      %38 = vector.load %arg2[%c0_50, %c0_51] : memref<8x32xf32, #tpu.memory_space<vmem>>, vector<8x32xf32>
      %c0_52 = arith.constant 0 : index
      %c0_53 = arith.constant 0 : index
      %39 = vector.load %arg4[%c0_52, %c0_53] : memref<8x32xf32, #tpu.memory_space<vmem>>, vector<8x32xf32>
      %40 = arith.addf %38, %39 : vector<8x32xf32>
      %c0_54 = arith.constant 0 : index
      %c0_55 = arith.constant 0 : index
      %41 = vector.load %arg3[%c0_54, %c0_55] : memref<8x32xf32, #tpu.memory_space<vmem>>, vector<8x32xf32>
      %c0_56 = arith.constant 0 : index
      %c0_57 = arith.constant 0 : index
      %42 = vector.load %arg5[%c0_56, %c0_57] : memref<8x32xf32, #tpu.memory_space<vmem>>, vector<8x32xf32>
      %43 = arith.addf %41, %42 : vector<8x32xf32>
      %cst = arith.constant dense<0.000000e+00> : vector<8x96xf32>
      %44 = tpu.matmul %43, %1, %cst {dimension_numbers = #tpu.dot_dimension_numbers<[1], [0], [0], [1], [0, 0, 1, 1], [], []>} : vector<8x32xf32>, vector<32x96xf32>, vector<8x96xf32> -> vector<8x96xf32>
      %45 = vector.broadcast %3 : vector<1x96xf32> to vector<8x96xf32>
      %46 = arith.addf %44, %45 : vector<8x96xf32>
      %cst_58 = arith.constant dense<0.000000e+00> : vector<8x64xf32>
      %47 = tpu.matmul %40, %5, %cst_58 {dimension_numbers = #tpu.dot_dimension_numbers<[1], [0], [0], [1], [0, 0, 1, 1], [], []>} : vector<8x32xf32>, vector<32x64xf32>, vector<8x64xf32> -> vector<8x64xf32>
      %48 = vector.broadcast %7 : vector<1x64xf32> to vector<8x64xf32>
      %49 = arith.addf %47, %48 : vector<8x64xf32>
      %50 = vector.extract_strided_slice %46 {offsets = [0, 0], sizes = [8, 32], strides = [1, 1]} : vector<8x96xf32> to vector<8x32xf32>
      %51 = vector.extract_strided_slice %46 {offsets = [0, 32], sizes = [8, 32], strides = [1, 1]} : vector<8x96xf32> to vector<8x32xf32>
      %52 = vector.extract_strided_slice %46 {offsets = [0, 64], sizes = [8, 32], strides = [1, 1]} : vector<8x96xf32> to vector<8x32xf32>
      %53 = vector.extract_strided_slice %49 {offsets = [0, 0], sizes = [8, 32], strides = [1, 1]} : vector<8x64xf32> to vector<8x32xf32>
      %54 = vector.extract_strided_slice %49 {offsets = [0, 32], sizes = [8, 32], strides = [1, 1]} : vector<8x64xf32> to vector<8x32xf32>
      %55 = vector.extract_strided_slice %50 {offsets = [0, 0], sizes = [8, 8], strides = [1, 1]} : vector<8x32xf32> to vector<8x8xf32>
      %56 = vector.extract_strided_slice %53 {offsets = [0, 0], sizes = [8, 8], strides = [1, 1]} : vector<8x32xf32> to vector<8x8xf32>
      %cst_59 = arith.constant dense<0.000000e+00> : vector<8x8xf32>
      %57 = tpu.matmul %55, %56, %cst_59 {dimension_numbers = #tpu.dot_dimension_numbers<[1], [1], [0], [0], [0, 0, 1, 0], [], []>} : vector<8x8xf32>, vector<8x8xf32>, vector<8x8xf32> -> vector<8x8xf32>
      %58 = vector.extract_strided_slice %50 {offsets = [0, 8], sizes = [8, 8], strides = [1, 1]} : vector<8x32xf32> to vector<8x8xf32>
      %59 = vector.extract_strided_slice %53 {offsets = [0, 8], sizes = [8, 8], strides = [1, 1]} : vector<8x32xf32> to vector<8x8xf32>
      %cst_60 = arith.constant dense<0.000000e+00> : vector<8x8xf32>
      %60 = tpu.matmul %58, %59, %cst_60 {dimension_numbers = #tpu.dot_dimension_numbers<[1], [1], [0], [0], [0, 0, 1, 0], [], []>} : vector<8x8xf32>, vector<8x8xf32>, vector<8x8xf32> -> vector<8x8xf32>
      %61 = vector.extract_strided_slice %50 {offsets = [0, 16], sizes = [8, 8], strides = [1, 1]} : vector<8x32xf32> to vector<8x8xf32>
      %62 = vector.extract_strided_slice %53 {offsets = [0, 16], sizes = [8, 8], strides = [1, 1]} : vector<8x32xf32> to vector<8x8xf32>
      %cst_61 = arith.constant dense<0.000000e+00> : vector<8x8xf32>
      %63 = tpu.matmul %61, %62, %cst_61 {dimension_numbers = #tpu.dot_dimension_numbers<[1], [1], [0], [0], [0, 0, 1, 0], [], []>} : vector<8x8xf32>, vector<8x8xf32>, vector<8x8xf32> -> vector<8x8xf32>
      %64 = vector.extract_strided_slice %50 {offsets = [0, 24], sizes = [8, 8], strides = [1, 1]} : vector<8x32xf32> to vector<8x8xf32>
      %65 = vector.extract_strided_slice %53 {offsets = [0, 24], sizes = [8, 8], strides = [1, 1]} : vector<8x32xf32> to vector<8x8xf32>
      %cst_62 = arith.constant dense<0.000000e+00> : vector<8x8xf32>
      %66 = tpu.matmul %64, %65, %cst_62 {dimension_numbers = #tpu.dot_dimension_numbers<[1], [1], [0], [0], [0, 0, 1, 0], [], []>} : vector<8x8xf32>, vector<8x8xf32>, vector<8x8xf32> -> vector<8x8xf32>
      %67 = tpu.concatenate %57, %60, %63, %66 in 0 : vector<8x8xf32>, vector<8x8xf32>, vector<8x8xf32>, vector<8x8xf32> -> vector<32x8xf32>
      %cst_63 = arith.constant 0.353553385 : f32
      %68 = vector.broadcast %cst_63 : f32 to vector<32x8xf32>
      %69 = arith.mulf %67, %68 : vector<32x8xf32>
      %cst_64 = arith.constant dense<0xFF800000> : vector<32xf32>
      %70 = vector.multi_reduction <maximumf>, %69, %cst_64 [1] : vector<32x8xf32> to vector<32xf32>
      %71 = vector.shape_cast %70 : vector<32xf32> to vector<32x1xf32>
      %72 = vector.broadcast %71 : vector<32x1xf32> to vector<32x8xf32>
      %73 = arith.subf %69, %72 : vector<32x8xf32>
      %74 = math.exp %73 : vector<32x8xf32>
      %cst_65 = arith.constant dense<0.000000e+00> : vector<32xf32>
      %75 = vector.multi_reduction <add>, %74, %cst_65 [1] : vector<32x8xf32> to vector<32xf32>
      %76 = vector.shape_cast %75 : vector<32xf32> to vector<32x1xf32>
      %77 = tpu.reciprocal %76 {approx = true} : vector<32x1xf32> -> vector<32x1xf32>
      %78 = vector.broadcast %77 : vector<32x1xf32> to vector<32x8xf32>
      %79 = arith.mulf %74, %78 : vector<32x8xf32>
      %80 = vector.extract_strided_slice %79 {offsets = [0, 0], sizes = [8, 8], strides = [1, 1]} : vector<32x8xf32> to vector<8x8xf32>
      %81 = vector.extract_strided_slice %54 {offsets = [0, 0], sizes = [8, 8], strides = [1, 1]} : vector<8x32xf32> to vector<8x8xf32>
      %cst_66 = arith.constant dense<0.000000e+00> : vector<8x8xf32>
      %82 = tpu.matmul %80, %81, %cst_66 {dimension_numbers = #tpu.dot_dimension_numbers<[1], [0], [0], [1], [0, 0, 1, 1], [], []>} : vector<8x8xf32>, vector<8x8xf32>, vector<8x8xf32> -> vector<8x8xf32>
      %83 = vector.extract_strided_slice %79 {offsets = [8, 0], sizes = [8, 8], strides = [1, 1]} : vector<32x8xf32> to vector<8x8xf32>
      %84 = vector.extract_strided_slice %54 {offsets = [0, 8], sizes = [8, 8], strides = [1, 1]} : vector<8x32xf32> to vector<8x8xf32>
      %cst_67 = arith.constant dense<0.000000e+00> : vector<8x8xf32>
      %85 = tpu.matmul %83, %84, %cst_67 {dimension_numbers = #tpu.dot_dimension_numbers<[1], [0], [0], [1], [0, 0, 1, 1], [], []>} : vector<8x8xf32>, vector<8x8xf32>, vector<8x8xf32> -> vector<8x8xf32>
      %86 = vector.extract_strided_slice %79 {offsets = [16, 0], sizes = [8, 8], strides = [1, 1]} : vector<32x8xf32> to vector<8x8xf32>
      %87 = vector.extract_strided_slice %54 {offsets = [0, 16], sizes = [8, 8], strides = [1, 1]} : vector<8x32xf32> to vector<8x8xf32>
      %cst_68 = arith.constant dense<0.000000e+00> : vector<8x8xf32>
      %88 = tpu.matmul %86, %87, %cst_68 {dimension_numbers = #tpu.dot_dimension_numbers<[1], [0], [0], [1], [0, 0, 1, 1], [], []>} : vector<8x8xf32>, vector<8x8xf32>, vector<8x8xf32> -> vector<8x8xf32>
      %89 = vector.extract_strided_slice %79 {offsets = [24, 0], sizes = [8, 8], strides = [1, 1]} : vector<32x8xf32> to vector<8x8xf32>
      %90 = vector.extract_strided_slice %54 {offsets = [0, 24], sizes = [8, 8], strides = [1, 1]} : vector<8x32xf32> to vector<8x8xf32>
      %cst_69 = arith.constant dense<0.000000e+00> : vector<8x8xf32>
      %91 = tpu.matmul %89, %90, %cst_69 {dimension_numbers = #tpu.dot_dimension_numbers<[1], [0], [0], [1], [0, 0, 1, 1], [], []>} : vector<8x8xf32>, vector<8x8xf32>, vector<8x8xf32> -> vector<8x8xf32>
      %92 = tpu.concatenate %82, %85, %88, %91 in 1 : vector<8x8xf32>, vector<8x8xf32>, vector<8x8xf32>, vector<8x8xf32> -> vector<8x32xf32>
      %cst_70 = arith.constant dense<0.000000e+00> : vector<8x32xf32>
      %93 = tpu.matmul %92, %13, %cst_70 {dimension_numbers = #tpu.dot_dimension_numbers<[1], [0], [0], [1], [0, 0, 1, 1], [], []>} : vector<8x32xf32>, vector<32x32xf32>, vector<8x32xf32> -> vector<8x32xf32>
      %94 = vector.broadcast %15 : vector<1x32xf32> to vector<8x32xf32>
      %95 = arith.addf %93, %94 : vector<8x32xf32>
      %96 = arith.addf %43, %95 : vector<8x32xf32>
      %cst_71 = arith.constant dense<0.000000e+00> : vector<8xf32>
      %97 = vector.multi_reduction <add>, %96, %cst_71 [1] : vector<8x32xf32> to vector<8xf32>
      %98 = vector.shape_cast %97 : vector<8xf32> to vector<8x1xf32>
      %cst_72 = arith.constant 3.200000e+01 : f32
      %99 = vector.broadcast %cst_72 : f32 to vector<8x1xf32>
      %100 = arith.divf %98, %99 : vector<8x1xf32>
      %101 = vector.broadcast %100 : vector<8x1xf32> to vector<8x32xf32>
      %102 = arith.subf %96, %101 : vector<8x32xf32>
      %103 = arith.mulf %102, %102 : vector<8x32xf32>
      %cst_73 = arith.constant dense<0.000000e+00> : vector<8xf32>
      %104 = vector.multi_reduction <add>, %103, %cst_73 [1] : vector<8x32xf32> to vector<8xf32>
      %105 = vector.shape_cast %104 : vector<8xf32> to vector<8x1xf32>
      %cst_74 = arith.constant 3.200000e+01 : f32
      %106 = vector.broadcast %cst_74 : f32 to vector<8x1xf32>
      %107 = arith.divf %105, %106 : vector<8x1xf32>
      %108 = vector.broadcast %100 : vector<8x1xf32> to vector<8x32xf32>
      %109 = arith.subf %96, %108 : vector<8x32xf32>
      %cst_75 = arith.constant 9.99999974E-6 : f32
      %110 = vector.broadcast %cst_75 : f32 to vector<8x1xf32>
      %111 = arith.addf %107, %110 : vector<8x1xf32>
      %112 = math.rsqrt %111 : vector<8x1xf32>
      %113 = vector.broadcast %112 : vector<8x1xf32> to vector<8x32xf32>
      %114 = arith.mulf %109, %113 : vector<8x32xf32>
      %115 = vector.broadcast %17 : vector<1x32xf32> to vector<8x32xf32>
      %116 = arith.mulf %114, %115 : vector<8x32xf32>
      %117 = vector.broadcast %19 : vector<1x32xf32> to vector<8x32xf32>
      %118 = arith.addf %116, %117 : vector<8x32xf32>
      %cst_76 = arith.constant dense<0.000000e+00> : vector<8x64xf32>
      %119 = tpu.matmul %118, %21, %cst_76 {dimension_numbers = #tpu.dot_dimension_numbers<[1], [0], [0], [1], [0, 0, 1, 1], [], []>} : vector<8x32xf32>, vector<32x64xf32>, vector<8x64xf32> -> vector<8x64xf32>
      %120 = vector.broadcast %23 : vector<1x64xf32> to vector<8x64xf32>
      %121 = arith.addf %119, %120 : vector<8x64xf32>
      %cst_77 = arith.constant 0.000000e+00 : f32
      %122 = vector.broadcast %cst_77 : f32 to vector<8x64xf32>
      %123 = arith.maximumf %121, %122 : vector<8x64xf32>
      %cst_78 = arith.constant dense<0.000000e+00> : vector<8x32xf32>
      %124 = tpu.matmul %123, %25, %cst_78 {dimension_numbers = #tpu.dot_dimension_numbers<[1], [0], [0], [1], [0, 0, 1, 1], [], []>} : vector<8x64xf32>, vector<64x32xf32>, vector<8x32xf32> -> vector<8x32xf32>
      %125 = vector.broadcast %27 : vector<1x32xf32> to vector<8x32xf32>
      %126 = arith.addf %124, %125 : vector<8x32xf32>
      %127 = arith.addf %118, %126 : vector<8x32xf32>
      %cst_79 = arith.constant dense<0.000000e+00> : vector<8xf32>
      %128 = vector.multi_reduction <add>, %127, %cst_79 [1] : vector<8x32xf32> to vector<8xf32>
      %129 = vector.shape_cast %128 : vector<8xf32> to vector<8x1xf32>
      %cst_80 = arith.constant 3.200000e+01 : f32
      %130 = vector.broadcast %cst_80 : f32 to vector<8x1xf32>
      %131 = arith.divf %129, %130 : vector<8x1xf32>
      %132 = vector.broadcast %131 : vector<8x1xf32> to vector<8x32xf32>
      %133 = arith.subf %127, %132 : vector<8x32xf32>
      %134 = arith.mulf %133, %133 : vector<8x32xf32>
      %cst_81 = arith.constant dense<0.000000e+00> : vector<8xf32>
      %135 = vector.multi_reduction <add>, %134, %cst_81 [1] : vector<8x32xf32> to vector<8xf32>
      %136 = vector.shape_cast %135 : vector<8xf32> to vector<8x1xf32>
      %cst_82 = arith.constant 3.200000e+01 : f32
      %137 = vector.broadcast %cst_82 : f32 to vector<8x1xf32>
      %138 = arith.divf %136, %137 : vector<8x1xf32>
      %139 = vector.broadcast %131 : vector<8x1xf32> to vector<8x32xf32>
      %140 = arith.subf %127, %139 : vector<8x32xf32>
      %cst_83 = arith.constant 9.99999974E-6 : f32
      %141 = vector.broadcast %cst_83 : f32 to vector<8x1xf32>
      %142 = arith.addf %138, %141 : vector<8x1xf32>
      %143 = math.rsqrt %142 : vector<8x1xf32>
      %144 = vector.broadcast %143 : vector<8x1xf32> to vector<8x32xf32>
      %145 = arith.mulf %140, %144 : vector<8x32xf32>
      %146 = vector.broadcast %29 : vector<1x32xf32> to vector<8x32xf32>
      %147 = arith.mulf %145, %146 : vector<8x32xf32>
      %148 = vector.broadcast %31 : vector<1x32xf32> to vector<8x32xf32>
      %149 = arith.addf %147, %148 : vector<8x32xf32>
      %cst_84 = arith.constant dense<0.000000e+00> : vector<8x32xf32>
      %150 = tpu.matmul %149, %9, %cst_84 {dimension_numbers = #tpu.dot_dimension_numbers<[1], [0], [0], [1], [0, 0, 1, 1], [], []>} : vector<8x32xf32>, vector<32x32xf32>, vector<8x32xf32> -> vector<8x32xf32>
      %151 = vector.broadcast %11 : vector<1x32xf32> to vector<8x32xf32>
      %152 = arith.addf %150, %151 : vector<8x32xf32>
      %153 = vector.extract_strided_slice %152 {offsets = [0, 0], sizes = [8, 8], strides = [1, 1]} : vector<8x32xf32> to vector<8x8xf32>
      %154 = vector.extract_strided_slice %51 {offsets = [0, 0], sizes = [8, 8], strides = [1, 1]} : vector<8x32xf32> to vector<8x8xf32>
      %cst_85 = arith.constant dense<0.000000e+00> : vector<8x8xf32>
      %155 = tpu.matmul %153, %154, %cst_85 {dimension_numbers = #tpu.dot_dimension_numbers<[1], [1], [0], [0], [0, 0, 1, 0], [], []>} : vector<8x8xf32>, vector<8x8xf32>, vector<8x8xf32> -> vector<8x8xf32>
      %156 = vector.extract_strided_slice %152 {offsets = [0, 8], sizes = [8, 8], strides = [1, 1]} : vector<8x32xf32> to vector<8x8xf32>
      %157 = vector.extract_strided_slice %51 {offsets = [0, 8], sizes = [8, 8], strides = [1, 1]} : vector<8x32xf32> to vector<8x8xf32>
      %cst_86 = arith.constant dense<0.000000e+00> : vector<8x8xf32>
      %158 = tpu.matmul %156, %157, %cst_86 {dimension_numbers = #tpu.dot_dimension_numbers<[1], [1], [0], [0], [0, 0, 1, 0], [], []>} : vector<8x8xf32>, vector<8x8xf32>, vector<8x8xf32> -> vector<8x8xf32>
      %159 = vector.extract_strided_slice %152 {offsets = [0, 16], sizes = [8, 8], strides = [1, 1]} : vector<8x32xf32> to vector<8x8xf32>
      %160 = vector.extract_strided_slice %51 {offsets = [0, 16], sizes = [8, 8], strides = [1, 1]} : vector<8x32xf32> to vector<8x8xf32>
      %cst_87 = arith.constant dense<0.000000e+00> : vector<8x8xf32>
      %161 = tpu.matmul %159, %160, %cst_87 {dimension_numbers = #tpu.dot_dimension_numbers<[1], [1], [0], [0], [0, 0, 1, 0], [], []>} : vector<8x8xf32>, vector<8x8xf32>, vector<8x8xf32> -> vector<8x8xf32>
      %162 = vector.extract_strided_slice %152 {offsets = [0, 24], sizes = [8, 8], strides = [1, 1]} : vector<8x32xf32> to vector<8x8xf32>
      %163 = vector.extract_strided_slice %51 {offsets = [0, 24], sizes = [8, 8], strides = [1, 1]} : vector<8x32xf32> to vector<8x8xf32>
      %cst_88 = arith.constant dense<0.000000e+00> : vector<8x8xf32>
      %164 = tpu.matmul %162, %163, %cst_88 {dimension_numbers = #tpu.dot_dimension_numbers<[1], [1], [0], [0], [0, 0, 1, 0], [], []>} : vector<8x8xf32>, vector<8x8xf32>, vector<8x8xf32> -> vector<8x8xf32>
      %165 = tpu.concatenate %155, %158, %161, %164 in 0 : vector<8x8xf32>, vector<8x8xf32>, vector<8x8xf32>, vector<8x8xf32> -> vector<32x8xf32>
      %cst_89 = arith.constant 0.353553385 : f32
      %166 = vector.broadcast %cst_89 : f32 to vector<32x8xf32>
      %167 = arith.mulf %165, %166 : vector<32x8xf32>
      %cst_90 = arith.constant dense<0xFF800000> : vector<32xf32>
      %168 = vector.multi_reduction <maximumf>, %167, %cst_90 [1] : vector<32x8xf32> to vector<32xf32>
      %169 = vector.shape_cast %168 : vector<32xf32> to vector<32x1xf32>
      %170 = vector.broadcast %169 : vector<32x1xf32> to vector<32x8xf32>
      %171 = arith.subf %167, %170 : vector<32x8xf32>
      %172 = math.exp %171 : vector<32x8xf32>
      %cst_91 = arith.constant dense<0.000000e+00> : vector<32xf32>
      %173 = vector.multi_reduction <add>, %172, %cst_91 [1] : vector<32x8xf32> to vector<32xf32>
      %174 = vector.shape_cast %173 : vector<32xf32> to vector<32x1xf32>
      %175 = tpu.reciprocal %174 {approx = true} : vector<32x1xf32> -> vector<32x1xf32>
      %176 = vector.broadcast %175 : vector<32x1xf32> to vector<32x8xf32>
      %177 = arith.mulf %172, %176 : vector<32x8xf32>
      %178 = vector.extract_strided_slice %177 {offsets = [0, 0], sizes = [8, 8], strides = [1, 1]} : vector<32x8xf32> to vector<8x8xf32>
      %179 = vector.extract_strided_slice %52 {offsets = [0, 0], sizes = [8, 8], strides = [1, 1]} : vector<8x32xf32> to vector<8x8xf32>
      %cst_92 = arith.constant dense<0.000000e+00> : vector<8x8xf32>
      %180 = tpu.matmul %178, %179, %cst_92 {dimension_numbers = #tpu.dot_dimension_numbers<[1], [0], [0], [1], [0, 0, 1, 1], [], []>} : vector<8x8xf32>, vector<8x8xf32>, vector<8x8xf32> -> vector<8x8xf32>
      %181 = vector.extract_strided_slice %177 {offsets = [8, 0], sizes = [8, 8], strides = [1, 1]} : vector<32x8xf32> to vector<8x8xf32>
      %182 = vector.extract_strided_slice %52 {offsets = [0, 8], sizes = [8, 8], strides = [1, 1]} : vector<8x32xf32> to vector<8x8xf32>
      %cst_93 = arith.constant dense<0.000000e+00> : vector<8x8xf32>
      %183 = tpu.matmul %181, %182, %cst_93 {dimension_numbers = #tpu.dot_dimension_numbers<[1], [0], [0], [1], [0, 0, 1, 1], [], []>} : vector<8x8xf32>, vector<8x8xf32>, vector<8x8xf32> -> vector<8x8xf32>
      %184 = vector.extract_strided_slice %177 {offsets = [16, 0], sizes = [8, 8], strides = [1, 1]} : vector<32x8xf32> to vector<8x8xf32>
      %185 = vector.extract_strided_slice %52 {offsets = [0, 16], sizes = [8, 8], strides = [1, 1]} : vector<8x32xf32> to vector<8x8xf32>
      %cst_94 = arith.constant dense<0.000000e+00> : vector<8x8xf32>
      %186 = tpu.matmul %184, %185, %cst_94 {dimension_numbers = #tpu.dot_dimension_numbers<[1], [0], [0], [1], [0, 0, 1, 1], [], []>} : vector<8x8xf32>, vector<8x8xf32>, vector<8x8xf32> -> vector<8x8xf32>
      %187 = vector.extract_strided_slice %177 {offsets = [24, 0], sizes = [8, 8], strides = [1, 1]} : vector<32x8xf32> to vector<8x8xf32>
      %188 = vector.extract_strided_slice %52 {offsets = [0, 24], sizes = [8, 8], strides = [1, 1]} : vector<8x32xf32> to vector<8x8xf32>
      %cst_95 = arith.constant dense<0.000000e+00> : vector<8x8xf32>
      %189 = tpu.matmul %187, %188, %cst_95 {dimension_numbers = #tpu.dot_dimension_numbers<[1], [0], [0], [1], [0, 0, 1, 1], [], []>} : vector<8x8xf32>, vector<8x8xf32>, vector<8x8xf32> -> vector<8x8xf32>
      %190 = tpu.concatenate %180, %183, %186, %189 in 1 : vector<8x8xf32>, vector<8x8xf32>, vector<8x8xf32>, vector<8x8xf32> -> vector<8x32xf32>
      %cst_96 = arith.constant dense<0.000000e+00> : vector<8x32xf32>
      %191 = tpu.matmul %190, %13, %cst_96 {dimension_numbers = #tpu.dot_dimension_numbers<[1], [0], [0], [1], [0, 0, 1, 1], [], []>} : vector<8x32xf32>, vector<32x32xf32>, vector<8x32xf32> -> vector<8x32xf32>
      %192 = vector.broadcast %15 : vector<1x32xf32> to vector<8x32xf32>
      %193 = arith.addf %191, %192 : vector<8x32xf32>
      %194 = arith.addf %149, %193 : vector<8x32xf32>
      %cst_97 = arith.constant dense<0.000000e+00> : vector<8xf32>
      %195 = vector.multi_reduction <add>, %194, %cst_97 [1] : vector<8x32xf32> to vector<8xf32>
      %196 = vector.shape_cast %195 : vector<8xf32> to vector<8x1xf32>
      %cst_98 = arith.constant 3.200000e+01 : f32
      %197 = vector.broadcast %cst_98 : f32 to vector<8x1xf32>
      %198 = arith.divf %196, %197 : vector<8x1xf32>
      %199 = vector.broadcast %198 : vector<8x1xf32> to vector<8x32xf32>
      %200 = arith.subf %194, %199 : vector<8x32xf32>
      %201 = arith.mulf %200, %200 : vector<8x32xf32>
      %cst_99 = arith.constant dense<0.000000e+00> : vector<8xf32>
      %202 = vector.multi_reduction <add>, %201, %cst_99 [1] : vector<8x32xf32> to vector<8xf32>
      %203 = vector.shape_cast %202 : vector<8xf32> to vector<8x1xf32>
      %cst_100 = arith.constant 3.200000e+01 : f32
      %204 = vector.broadcast %cst_100 : f32 to vector<8x1xf32>
      %205 = arith.divf %203, %204 : vector<8x1xf32>
      %206 = vector.broadcast %198 : vector<8x1xf32> to vector<8x32xf32>
      %207 = arith.subf %194, %206 : vector<8x32xf32>
      %cst_101 = arith.constant 9.99999974E-6 : f32
      %208 = vector.broadcast %cst_101 : f32 to vector<8x1xf32>
      %209 = arith.addf %205, %208 : vector<8x1xf32>
      %210 = math.rsqrt %209 : vector<8x1xf32>
      %211 = vector.broadcast %210 : vector<8x1xf32> to vector<8x32xf32>
      %212 = arith.mulf %207, %211 : vector<8x32xf32>
      %213 = vector.broadcast %17 : vector<1x32xf32> to vector<8x32xf32>
      %214 = arith.mulf %212, %213 : vector<8x32xf32>
      %215 = vector.broadcast %19 : vector<1x32xf32> to vector<8x32xf32>
      %216 = arith.addf %214, %215 : vector<8x32xf32>
      %cst_102 = arith.constant dense<0.000000e+00> : vector<8x64xf32>
      %217 = tpu.matmul %216, %21, %cst_102 {dimension_numbers = #tpu.dot_dimension_numbers<[1], [0], [0], [1], [0, 0, 1, 1], [], []>} : vector<8x32xf32>, vector<32x64xf32>, vector<8x64xf32> -> vector<8x64xf32>
      %218 = vector.broadcast %23 : vector<1x64xf32> to vector<8x64xf32>
      %219 = arith.addf %217, %218 : vector<8x64xf32>
      %cst_103 = arith.constant 0.000000e+00 : f32
      %220 = vector.broadcast %cst_103 : f32 to vector<8x64xf32>
      %221 = arith.maximumf %219, %220 : vector<8x64xf32>
      %cst_104 = arith.constant dense<0.000000e+00> : vector<8x32xf32>
      %222 = tpu.matmul %221, %25, %cst_104 {dimension_numbers = #tpu.dot_dimension_numbers<[1], [0], [0], [1], [0, 0, 1, 1], [], []>} : vector<8x64xf32>, vector<64x32xf32>, vector<8x32xf32> -> vector<8x32xf32>
      %223 = vector.broadcast %27 : vector<1x32xf32> to vector<8x32xf32>
      %224 = arith.addf %222, %223 : vector<8x32xf32>
      %225 = arith.addf %216, %224 : vector<8x32xf32>
      %cst_105 = arith.constant dense<0.000000e+00> : vector<8xf32>
      %226 = vector.multi_reduction <add>, %225, %cst_105 [1] : vector<8x32xf32> to vector<8xf32>
      %227 = vector.shape_cast %226 : vector<8xf32> to vector<8x1xf32>
      %cst_106 = arith.constant 3.200000e+01 : f32
      %228 = vector.broadcast %cst_106 : f32 to vector<8x1xf32>
      %229 = arith.divf %227, %228 : vector<8x1xf32>
      %230 = vector.broadcast %229 : vector<8x1xf32> to vector<8x32xf32>
      %231 = arith.subf %225, %230 : vector<8x32xf32>
      %232 = arith.mulf %231, %231 : vector<8x32xf32>
      %cst_107 = arith.constant dense<0.000000e+00> : vector<8xf32>
      %233 = vector.multi_reduction <add>, %232, %cst_107 [1] : vector<8x32xf32> to vector<8xf32>
      %234 = vector.shape_cast %233 : vector<8xf32> to vector<8x1xf32>
      %cst_108 = arith.constant 3.200000e+01 : f32
      %235 = vector.broadcast %cst_108 : f32 to vector<8x1xf32>
      %236 = arith.divf %234, %235 : vector<8x1xf32>
      %237 = vector.broadcast %229 : vector<8x1xf32> to vector<8x32xf32>
      %238 = arith.subf %225, %237 : vector<8x32xf32>
      %cst_109 = arith.constant 9.99999974E-6 : f32
      %239 = vector.broadcast %cst_109 : f32 to vector<8x1xf32>
      %240 = arith.addf %236, %239 : vector<8x1xf32>
      %241 = math.rsqrt %240 : vector<8x1xf32>
      %242 = vector.broadcast %241 : vector<8x1xf32> to vector<8x32xf32>
      %243 = arith.mulf %238, %242 : vector<8x32xf32>
      %244 = vector.broadcast %29 : vector<1x32xf32> to vector<8x32xf32>
      %245 = arith.mulf %243, %244 : vector<8x32xf32>
      %246 = vector.broadcast %31 : vector<1x32xf32> to vector<8x32xf32>
      %247 = arith.addf %245, %246 : vector<8x32xf32>
      %248 = tpu.concatenate %149, %247 in 1 : vector<8x32xf32>, vector<8x32xf32> -> vector<8x64xf32>
      %c0_110 = arith.constant 0 : index
      %c0_111 = arith.constant 0 : index
      %249 = vector.load %arg22[%c0_110, %c0_111] : memref<8x64xf32, #tpu.memory_space<vmem>>, vector<8x64xf32>
      tpu.vector_store %arg22[%c0_110, %c0_111], %248 {strides = array<i32>} : memref<8x64xf32, #tpu.memory_space<vmem>>, vector<8x64xf32>,
    } else {
    }
    %c0_i32_48 = arith.constant 0 : i32
    %35 = arith.cmpi sgt, %arg1, %c0_i32_48 : i32
    %36 = arith.extui %35 : i1 to i32
    %c0_i32_49 = arith.constant 0 : i32
    %37 = arith.cmpi ne, %36, %c0_i32_49 : i32
    scf.if %37 {
      %c0_50 = arith.constant 0 : index
      %c0_51 = arith.constant 0 : index
      %38 = vector.load %arg22[%c0_50, %c0_51] : memref<8x64xf32, #tpu.memory_space<vmem>>, vector<8x64xf32>
      %39 = vector.extract_strided_slice %38 {offsets = [0, 0], sizes = [8, 32], strides = [1, 1]} : vector<8x64xf32> to vector<8x32xf32>
      %40 = vector.extract_strided_slice %38 {offsets = [0, 32], sizes = [8, 32], strides = [1, 1]} : vector<8x64xf32> to vector<8x32xf32>
      %cst = arith.constant dense<0.000000e+00> : vector<8x96xf32>
      %41 = tpu.matmul %40, %1, %cst {dimension_numbers = #tpu.dot_dimension_numbers<[1], [0], [0], [1], [0, 0, 1, 1], [], []>} : vector<8x32xf32>, vector<32x96xf32>, vector<8x96xf32> -> vector<8x96xf32>
      %42 = vector.broadcast %3 : vector<1x96xf32> to vector<8x96xf32>
      %43 = arith.addf %41, %42 : vector<8x96xf32>
      %cst_52 = arith.constant dense<0.000000e+00> : vector<8x64xf32>
      %44 = tpu.matmul %39, %5, %cst_52 {dimension_numbers = #tpu.dot_dimension_numbers<[1], [0], [0], [1], [0, 0, 1, 1], [], []>} : vector<8x32xf32>, vector<32x64xf32>, vector<8x64xf32> -> vector<8x64xf32>
      %45 = vector.broadcast %7 : vector<1x64xf32> to vector<8x64xf32>
      %46 = arith.addf %44, %45 : vector<8x64xf32>
      %47 = vector.extract_strided_slice %43 {offsets = [0, 0], sizes = [8, 32], strides = [1, 1]} : vector<8x96xf32> to vector<8x32xf32>
      %48 = vector.extract_strided_slice %43 {offsets = [0, 32], sizes = [8, 32], strides = [1, 1]} : vector<8x96xf32> to vector<8x32xf32>
      %49 = vector.extract_strided_slice %43 {offsets = [0, 64], sizes = [8, 32], strides = [1, 1]} : vector<8x96xf32> to vector<8x32xf32>
      %50 = vector.extract_strided_slice %46 {offsets = [0, 0], sizes = [8, 32], strides = [1, 1]} : vector<8x64xf32> to vector<8x32xf32>
      %51 = vector.extract_strided_slice %46 {offsets = [0, 32], sizes = [8, 32], strides = [1, 1]} : vector<8x64xf32> to vector<8x32xf32>
      %52 = vector.extract_strided_slice %47 {offsets = [0, 0], sizes = [8, 8], strides = [1, 1]} : vector<8x32xf32> to vector<8x8xf32>
      %53 = vector.extract_strided_slice %50 {offsets = [0, 0], sizes = [8, 8], strides = [1, 1]} : vector<8x32xf32> to vector<8x8xf32>
      %cst_53 = arith.constant dense<0.000000e+00> : vector<8x8xf32>
      %54 = tpu.matmul %52, %53, %cst_53 {dimension_numbers = #tpu.dot_dimension_numbers<[1], [1], [0], [0], [0, 0, 1, 0], [], []>} : vector<8x8xf32>, vector<8x8xf32>, vector<8x8xf32> -> vector<8x8xf32>
      %55 = vector.extract_strided_slice %47 {offsets = [0, 8], sizes = [8, 8], strides = [1, 1]} : vector<8x32xf32> to vector<8x8xf32>
      %56 = vector.extract_strided_slice %50 {offsets = [0, 8], sizes = [8, 8], strides = [1, 1]} : vector<8x32xf32> to vector<8x8xf32>
      %cst_54 = arith.constant dense<0.000000e+00> : vector<8x8xf32>
      %57 = tpu.matmul %55, %56, %cst_54 {dimension_numbers = #tpu.dot_dimension_numbers<[1], [1], [0], [0], [0, 0, 1, 0], [], []>} : vector<8x8xf32>, vector<8x8xf32>, vector<8x8xf32> -> vector<8x8xf32>
      %58 = vector.extract_strided_slice %47 {offsets = [0, 16], sizes = [8, 8], strides = [1, 1]} : vector<8x32xf32> to vector<8x8xf32>
      %59 = vector.extract_strided_slice %50 {offsets = [0, 16], sizes = [8, 8], strides = [1, 1]} : vector<8x32xf32> to vector<8x8xf32>
      %cst_55 = arith.constant dense<0.000000e+00> : vector<8x8xf32>
      %60 = tpu.matmul %58, %59, %cst_55 {dimension_numbers = #tpu.dot_dimension_numbers<[1], [1], [0], [0], [0, 0, 1, 0], [], []>} : vector<8x8xf32>, vector<8x8xf32>, vector<8x8xf32> -> vector<8x8xf32>
      %61 = vector.extract_strided_slice %47 {offsets = [0, 24], sizes = [8, 8], strides = [1, 1]} : vector<8x32xf32> to vector<8x8xf32>
      %62 = vector.extract_strided_slice %50 {offsets = [0, 24], sizes = [8, 8], strides = [1, 1]} : vector<8x32xf32> to vector<8x8xf32>
      %cst_56 = arith.constant dense<0.000000e+00> : vector<8x8xf32>
      %63 = tpu.matmul %61, %62, %cst_56 {dimension_numbers = #tpu.dot_dimension_numbers<[1], [1], [0], [0], [0, 0, 1, 0], [], []>} : vector<8x8xf32>, vector<8x8xf32>, vector<8x8xf32> -> vector<8x8xf32>
      %64 = tpu.concatenate %54, %57, %60, %63 in 0 : vector<8x8xf32>, vector<8x8xf32>, vector<8x8xf32>, vector<8x8xf32> -> vector<32x8xf32>
      %cst_57 = arith.constant 0.353553385 : f32
      %65 = vector.broadcast %cst_57 : f32 to vector<32x8xf32>
      %66 = arith.mulf %64, %65 : vector<32x8xf32>
      %cst_58 = arith.constant dense<0xFF800000> : vector<32xf32>
      %67 = vector.multi_reduction <maximumf>, %66, %cst_58 [1] : vector<32x8xf32> to vector<32xf32>
      %68 = vector.shape_cast %67 : vector<32xf32> to vector<32x1xf32>
      %69 = vector.broadcast %68 : vector<32x1xf32> to vector<32x8xf32>
      %70 = arith.subf %66, %69 : vector<32x8xf32>
      %71 = math.exp %70 : vector<32x8xf32>
      %cst_59 = arith.constant dense<0.000000e+00> : vector<32xf32>
      %72 = vector.multi_reduction <add>, %71, %cst_59 [1] : vector<32x8xf32> to vector<32xf32>
      %73 = vector.shape_cast %72 : vector<32xf32> to vector<32x1xf32>
      %74 = tpu.reciprocal %73 {approx = true} : vector<32x1xf32> -> vector<32x1xf32>
      %75 = vector.broadcast %74 : vector<32x1xf32> to vector<32x8xf32>
      %76 = arith.mulf %71, %75 : vector<32x8xf32>
      %77 = vector.extract_strided_slice %76 {offsets = [0, 0], sizes = [8, 8], strides = [1, 1]} : vector<32x8xf32> to vector<8x8xf32>
      %78 = vector.extract_strided_slice %51 {offsets = [0, 0], sizes = [8, 8], strides = [1, 1]} : vector<8x32xf32> to vector<8x8xf32>
      %cst_60 = arith.constant dense<0.000000e+00> : vector<8x8xf32>
      %79 = tpu.matmul %77, %78, %cst_60 {dimension_numbers = #tpu.dot_dimension_numbers<[1], [0], [0], [1], [0, 0, 1, 1], [], []>} : vector<8x8xf32>, vector<8x8xf32>, vector<8x8xf32> -> vector<8x8xf32>
      %80 = vector.extract_strided_slice %76 {offsets = [8, 0], sizes = [8, 8], strides = [1, 1]} : vector<32x8xf32> to vector<8x8xf32>
      %81 = vector.extract_strided_slice %51 {offsets = [0, 8], sizes = [8, 8], strides = [1, 1]} : vector<8x32xf32> to vector<8x8xf32>
      %cst_61 = arith.constant dense<0.000000e+00> : vector<8x8xf32>
      %82 = tpu.matmul %80, %81, %cst_61 {dimension_numbers = #tpu.dot_dimension_numbers<[1], [0], [0], [1], [0, 0, 1, 1], [], []>} : vector<8x8xf32>, vector<8x8xf32>, vector<8x8xf32> -> vector<8x8xf32>
      %83 = vector.extract_strided_slice %76 {offsets = [16, 0], sizes = [8, 8], strides = [1, 1]} : vector<32x8xf32> to vector<8x8xf32>
      %84 = vector.extract_strided_slice %51 {offsets = [0, 16], sizes = [8, 8], strides = [1, 1]} : vector<8x32xf32> to vector<8x8xf32>
      %cst_62 = arith.constant dense<0.000000e+00> : vector<8x8xf32>
      %85 = tpu.matmul %83, %84, %cst_62 {dimension_numbers = #tpu.dot_dimension_numbers<[1], [0], [0], [1], [0, 0, 1, 1], [], []>} : vector<8x8xf32>, vector<8x8xf32>, vector<8x8xf32> -> vector<8x8xf32>
      %86 = vector.extract_strided_slice %76 {offsets = [24, 0], sizes = [8, 8], strides = [1, 1]} : vector<32x8xf32> to vector<8x8xf32>
      %87 = vector.extract_strided_slice %51 {offsets = [0, 24], sizes = [8, 8], strides = [1, 1]} : vector<8x32xf32> to vector<8x8xf32>
      %cst_63 = arith.constant dense<0.000000e+00> : vector<8x8xf32>
      %88 = tpu.matmul %86, %87, %cst_63 {dimension_numbers = #tpu.dot_dimension_numbers<[1], [0], [0], [1], [0, 0, 1, 1], [], []>} : vector<8x8xf32>, vector<8x8xf32>, vector<8x8xf32> -> vector<8x8xf32>
      %89 = tpu.concatenate %79, %82, %85, %88 in 1 : vector<8x8xf32>, vector<8x8xf32>, vector<8x8xf32>, vector<8x8xf32> -> vector<8x32xf32>
      %cst_64 = arith.constant dense<0.000000e+00> : vector<8x32xf32>
      %90 = tpu.matmul %89, %13, %cst_64 {dimension_numbers = #tpu.dot_dimension_numbers<[1], [0], [0], [1], [0, 0, 1, 1], [], []>} : vector<8x32xf32>, vector<32x32xf32>, vector<8x32xf32> -> vector<8x32xf32>
      %91 = vector.broadcast %15 : vector<1x32xf32> to vector<8x32xf32>
      %92 = arith.addf %90, %91 : vector<8x32xf32>
      %93 = arith.addf %40, %92 : vector<8x32xf32>
      %cst_65 = arith.constant dense<0.000000e+00> : vector<8xf32>
      %94 = vector.multi_reduction <add>, %93, %cst_65 [1] : vector<8x32xf32> to vector<8xf32>
      %95 = vector.shape_cast %94 : vector<8xf32> to vector<8x1xf32>
      %cst_66 = arith.constant 3.200000e+01 : f32
      %96 = vector.broadcast %cst_66 : f32 to vector<8x1xf32>
      %97 = arith.divf %95, %96 : vector<8x1xf32>
      %98 = vector.broadcast %97 : vector<8x1xf32> to vector<8x32xf32>
      %99 = arith.subf %93, %98 : vector<8x32xf32>
      %100 = arith.mulf %99, %99 : vector<8x32xf32>
      %cst_67 = arith.constant dense<0.000000e+00> : vector<8xf32>
      %101 = vector.multi_reduction <add>, %100, %cst_67 [1] : vector<8x32xf32> to vector<8xf32>
      %102 = vector.shape_cast %101 : vector<8xf32> to vector<8x1xf32>
      %cst_68 = arith.constant 3.200000e+01 : f32
      %103 = vector.broadcast %cst_68 : f32 to vector<8x1xf32>
      %104 = arith.divf %102, %103 : vector<8x1xf32>
      %105 = vector.broadcast %97 : vector<8x1xf32> to vector<8x32xf32>
      %106 = arith.subf %93, %105 : vector<8x32xf32>
      %cst_69 = arith.constant 9.99999974E-6 : f32
      %107 = vector.broadcast %cst_69 : f32 to vector<8x1xf32>
      %108 = arith.addf %104, %107 : vector<8x1xf32>
      %109 = math.rsqrt %108 : vector<8x1xf32>
      %110 = vector.broadcast %109 : vector<8x1xf32> to vector<8x32xf32>
      %111 = arith.mulf %106, %110 : vector<8x32xf32>
      %112 = vector.broadcast %17 : vector<1x32xf32> to vector<8x32xf32>
      %113 = arith.mulf %111, %112 : vector<8x32xf32>
      %114 = vector.broadcast %19 : vector<1x32xf32> to vector<8x32xf32>
      %115 = arith.addf %113, %114 : vector<8x32xf32>
      %cst_70 = arith.constant dense<0.000000e+00> : vector<8x64xf32>
      %116 = tpu.matmul %115, %21, %cst_70 {dimension_numbers = #tpu.dot_dimension_numbers<[1], [0], [0], [1], [0, 0, 1, 1], [], []>} : vector<8x32xf32>, vector<32x64xf32>, vector<8x64xf32> -> vector<8x64xf32>
      %117 = vector.broadcast %23 : vector<1x64xf32> to vector<8x64xf32>
      %118 = arith.addf %116, %117 : vector<8x64xf32>
      %cst_71 = arith.constant 0.000000e+00 : f32
      %119 = vector.broadcast %cst_71 : f32 to vector<8x64xf32>
      %120 = arith.maximumf %118, %119 : vector<8x64xf32>
      %cst_72 = arith.constant dense<0.000000e+00> : vector<8x32xf32>
      %121 = tpu.matmul %120, %25, %cst_72 {dimension_numbers = #tpu.dot_dimension_numbers<[1], [0], [0], [1], [0, 0, 1, 1], [], []>} : vector<8x64xf32>, vector<64x32xf32>, vector<8x32xf32> -> vector<8x32xf32>
      %122 = vector.broadcast %27 : vector<1x32xf32> to vector<8x32xf32>
      %123 = arith.addf %121, %122 : vector<8x32xf32>
      %124 = arith.addf %115, %123 : vector<8x32xf32>
      %cst_73 = arith.constant dense<0.000000e+00> : vector<8xf32>
      %125 = vector.multi_reduction <add>, %124, %cst_73 [1] : vector<8x32xf32> to vector<8xf32>
      %126 = vector.shape_cast %125 : vector<8xf32> to vector<8x1xf32>
      %cst_74 = arith.constant 3.200000e+01 : f32
      %127 = vector.broadcast %cst_74 : f32 to vector<8x1xf32>
      %128 = arith.divf %126, %127 : vector<8x1xf32>
      %129 = vector.broadcast %128 : vector<8x1xf32> to vector<8x32xf32>
      %130 = arith.subf %124, %129 : vector<8x32xf32>
      %131 = arith.mulf %130, %130 : vector<8x32xf32>
      %cst_75 = arith.constant dense<0.000000e+00> : vector<8xf32>
      %132 = vector.multi_reduction <add>, %131, %cst_75 [1] : vector<8x32xf32> to vector<8xf32>
      %133 = vector.shape_cast %132 : vector<8xf32> to vector<8x1xf32>
      %cst_76 = arith.constant 3.200000e+01 : f32
      %134 = vector.broadcast %cst_76 : f32 to vector<8x1xf32>
      %135 = arith.divf %133, %134 : vector<8x1xf32>
      %136 = vector.broadcast %128 : vector<8x1xf32> to vector<8x32xf32>
      %137 = arith.subf %124, %136 : vector<8x32xf32>
      %cst_77 = arith.constant 9.99999974E-6 : f32
      %138 = vector.broadcast %cst_77 : f32 to vector<8x1xf32>
      %139 = arith.addf %135, %138 : vector<8x1xf32>
      %140 = math.rsqrt %139 : vector<8x1xf32>
      %141 = vector.broadcast %140 : vector<8x1xf32> to vector<8x32xf32>
      %142 = arith.mulf %137, %141 : vector<8x32xf32>
      %143 = vector.broadcast %29 : vector<1x32xf32> to vector<8x32xf32>
      %144 = arith.mulf %142, %143 : vector<8x32xf32>
      %145 = vector.broadcast %31 : vector<1x32xf32> to vector<8x32xf32>
      %146 = arith.addf %144, %145 : vector<8x32xf32>
      %cst_78 = arith.constant dense<0.000000e+00> : vector<8x32xf32>
      %147 = tpu.matmul %146, %9, %cst_78 {dimension_numbers = #tpu.dot_dimension_numbers<[1], [0], [0], [1], [0, 0, 1, 1], [], []>} : vector<8x32xf32>, vector<32x32xf32>, vector<8x32xf32> -> vector<8x32xf32>
      %148 = vector.broadcast %11 : vector<1x32xf32> to vector<8x32xf32>
      %149 = arith.addf %147, %148 : vector<8x32xf32>
      %150 = vector.extract_strided_slice %149 {offsets = [0, 0], sizes = [8, 8], strides = [1, 1]} : vector<8x32xf32> to vector<8x8xf32>
      %151 = vector.extract_strided_slice %48 {offsets = [0, 0], sizes = [8, 8], strides = [1, 1]} : vector<8x32xf32> to vector<8x8xf32>
      %cst_79 = arith.constant dense<0.000000e+00> : vector<8x8xf32>
      %152 = tpu.matmul %150, %151, %cst_79 {dimension_numbers = #tpu.dot_dimension_numbers<[1], [1], [0], [0], [0, 0, 1, 0], [], []>} : vector<8x8xf32>, vector<8x8xf32>, vector<8x8xf32> -> vector<8x8xf32>
      %153 = vector.extract_strided_slice %149 {offsets = [0, 8], sizes = [8, 8], strides = [1, 1]} : vector<8x32xf32> to vector<8x8xf32>
      %154 = vector.extract_strided_slice %48 {offsets = [0, 8], sizes = [8, 8], strides = [1, 1]} : vector<8x32xf32> to vector<8x8xf32>
      %cst_80 = arith.constant dense<0.000000e+00> : vector<8x8xf32>
      %155 = tpu.matmul %153, %154, %cst_80 {dimension_numbers = #tpu.dot_dimension_numbers<[1], [1], [0], [0], [0, 0, 1, 0], [], []>} : vector<8x8xf32>, vector<8x8xf32>, vector<8x8xf32> -> vector<8x8xf32>
      %156 = vector.extract_strided_slice %149 {offsets = [0, 16], sizes = [8, 8], strides = [1, 1]} : vector<8x32xf32> to vector<8x8xf32>
      %157 = vector.extract_strided_slice %48 {offsets = [0, 16], sizes = [8, 8], strides = [1, 1]} : vector<8x32xf32> to vector<8x8xf32>
      %cst_81 = arith.constant dense<0.000000e+00> : vector<8x8xf32>
      %158 = tpu.matmul %156, %157, %cst_81 {dimension_numbers = #tpu.dot_dimension_numbers<[1], [1], [0], [0], [0, 0, 1, 0], [], []>} : vector<8x8xf32>, vector<8x8xf32>, vector<8x8xf32> -> vector<8x8xf32>
      %159 = vector.extract_strided_slice %149 {offsets = [0, 24], sizes = [8, 8], strides = [1, 1]} : vector<8x32xf32> to vector<8x8xf32>
      %160 = vector.extract_strided_slice %48 {offsets = [0, 24], sizes = [8, 8], strides = [1, 1]} : vector<8x32xf32> to vector<8x8xf32>
      %cst_82 = arith.constant dense<0.000000e+00> : vector<8x8xf32>
      %161 = tpu.matmul %159, %160, %cst_82 {dimension_numbers = #tpu.dot_dimension_numbers<[1], [1], [0], [0], [0, 0, 1, 0], [], []>} : vector<8x8xf32>, vector<8x8xf32>, vector<8x8xf32> -> vector<8x8xf32>
      %162 = tpu.concatenate %152, %155, %158, %161 in 0 : vector<8x8xf32>, vector<8x8xf32>, vector<8x8xf32>, vector<8x8xf32> -> vector<32x8xf32>
      %cst_83 = arith.constant 0.353553385 : f32
      %163 = vector.broadcast %cst_83 : f32 to vector<32x8xf32>
      %164 = arith.mulf %162, %163 : vector<32x8xf32>
      %cst_84 = arith.constant dense<0xFF800000> : vector<32xf32>
      %165 = vector.multi_reduction <maximumf>, %164, %cst_84 [1] : vector<32x8xf32> to vector<32xf32>
      %166 = vector.shape_cast %165 : vector<32xf32> to vector<32x1xf32>
      %167 = vector.broadcast %166 : vector<32x1xf32> to vector<32x8xf32>
      %168 = arith.subf %164, %167 : vector<32x8xf32>
      %169 = math.exp %168 : vector<32x8xf32>
      %cst_85 = arith.constant dense<0.000000e+00> : vector<32xf32>
      %170 = vector.multi_reduction <add>, %169, %cst_85 [1] : vector<32x8xf32> to vector<32xf32>
      %171 = vector.shape_cast %170 : vector<32xf32> to vector<32x1xf32>
      %172 = tpu.reciprocal %171 {approx = true} : vector<32x1xf32> -> vector<32x1xf32>
      %173 = vector.broadcast %172 : vector<32x1xf32> to vector<32x8xf32>
      %174 = arith.mulf %169, %173 : vector<32x8xf32>
      %175 = vector.extract_strided_slice %174 {offsets = [0, 0], sizes = [8, 8], strides = [1, 1]} : vector<32x8xf32> to vector<8x8xf32>
      %176 = vector.extract_strided_slice %49 {offsets = [0, 0], sizes = [8, 8], strides = [1, 1]} : vector<8x32xf32> to vector<8x8xf32>
      %cst_86 = arith.constant dense<0.000000e+00> : vector<8x8xf32>
      %177 = tpu.matmul %175, %176, %cst_86 {dimension_numbers = #tpu.dot_dimension_numbers<[1], [0], [0], [1], [0, 0, 1, 1], [], []>} : vector<8x8xf32>, vector<8x8xf32>, vector<8x8xf32> -> vector<8x8xf32>
      %178 = vector.extract_strided_slice %174 {offsets = [8, 0], sizes = [8, 8], strides = [1, 1]} : vector<32x8xf32> to vector<8x8xf32>
      %179 = vector.extract_strided_slice %49 {offsets = [0, 8], sizes = [8, 8], strides = [1, 1]} : vector<8x32xf32> to vector<8x8xf32>
      %cst_87 = arith.constant dense<0.000000e+00> : vector<8x8xf32>
      %180 = tpu.matmul %178, %179, %cst_87 {dimension_numbers = #tpu.dot_dimension_numbers<[1], [0], [0], [1], [0, 0, 1, 1], [], []>} : vector<8x8xf32>, vector<8x8xf32>, vector<8x8xf32> -> vector<8x8xf32>
      %181 = vector.extract_strided_slice %174 {offsets = [16, 0], sizes = [8, 8], strides = [1, 1]} : vector<32x8xf32> to vector<8x8xf32>
      %182 = vector.extract_strided_slice %49 {offsets = [0, 16], sizes = [8, 8], strides = [1, 1]} : vector<8x32xf32> to vector<8x8xf32>
      %cst_88 = arith.constant dense<0.000000e+00> : vector<8x8xf32>
      %183 = tpu.matmul %181, %182, %cst_88 {dimension_numbers = #tpu.dot_dimension_numbers<[1], [0], [0], [1], [0, 0, 1, 1], [], []>} : vector<8x8xf32>, vector<8x8xf32>, vector<8x8xf32> -> vector<8x8xf32>
      %184 = vector.extract_strided_slice %174 {offsets = [24, 0], sizes = [8, 8], strides = [1, 1]} : vector<32x8xf32> to vector<8x8xf32>
      %185 = vector.extract_strided_slice %49 {offsets = [0, 24], sizes = [8, 8], strides = [1, 1]} : vector<8x32xf32> to vector<8x8xf32>
      %cst_89 = arith.constant dense<0.000000e+00> : vector<8x8xf32>
      %186 = tpu.matmul %184, %185, %cst_89 {dimension_numbers = #tpu.dot_dimension_numbers<[1], [0], [0], [1], [0, 0, 1, 1], [], []>} : vector<8x8xf32>, vector<8x8xf32>, vector<8x8xf32> -> vector<8x8xf32>
      %187 = tpu.concatenate %177, %180, %183, %186 in 1 : vector<8x8xf32>, vector<8x8xf32>, vector<8x8xf32>, vector<8x8xf32> -> vector<8x32xf32>
      %cst_90 = arith.constant dense<0.000000e+00> : vector<8x32xf32>
      %188 = tpu.matmul %187, %13, %cst_90 {dimension_numbers = #tpu.dot_dimension_numbers<[1], [0], [0], [1], [0, 0, 1, 1], [], []>} : vector<8x32xf32>, vector<32x32xf32>, vector<8x32xf32> -> vector<8x32xf32>
      %189 = vector.broadcast %15 : vector<1x32xf32> to vector<8x32xf32>
      %190 = arith.addf %188, %189 : vector<8x32xf32>
      %191 = arith.addf %146, %190 : vector<8x32xf32>
      %cst_91 = arith.constant dense<0.000000e+00> : vector<8xf32>
      %192 = vector.multi_reduction <add>, %191, %cst_91 [1] : vector<8x32xf32> to vector<8xf32>
      %193 = vector.shape_cast %192 : vector<8xf32> to vector<8x1xf32>
      %cst_92 = arith.constant 3.200000e+01 : f32
      %194 = vector.broadcast %cst_92 : f32 to vector<8x1xf32>
      %195 = arith.divf %193, %194 : vector<8x1xf32>
      %196 = vector.broadcast %195 : vector<8x1xf32> to vector<8x32xf32>
      %197 = arith.subf %191, %196 : vector<8x32xf32>
      %198 = arith.mulf %197, %197 : vector<8x32xf32>
      %cst_93 = arith.constant dense<0.000000e+00> : vector<8xf32>
      %199 = vector.multi_reduction <add>, %198, %cst_93 [1] : vector<8x32xf32> to vector<8xf32>
      %200 = vector.shape_cast %199 : vector<8xf32> to vector<8x1xf32>
      %cst_94 = arith.constant 3.200000e+01 : f32
      %201 = vector.broadcast %cst_94 : f32 to vector<8x1xf32>
      %202 = arith.divf %200, %201 : vector<8x1xf32>
      %203 = vector.broadcast %195 : vector<8x1xf32> to vector<8x32xf32>
      %204 = arith.subf %191, %203 : vector<8x32xf32>
      %cst_95 = arith.constant 9.99999974E-6 : f32
      %205 = vector.broadcast %cst_95 : f32 to vector<8x1xf32>
      %206 = arith.addf %202, %205 : vector<8x1xf32>
      %207 = math.rsqrt %206 : vector<8x1xf32>
      %208 = vector.broadcast %207 : vector<8x1xf32> to vector<8x32xf32>
      %209 = arith.mulf %204, %208 : vector<8x32xf32>
      %210 = vector.broadcast %17 : vector<1x32xf32> to vector<8x32xf32>
      %211 = arith.mulf %209, %210 : vector<8x32xf32>
      %212 = vector.broadcast %19 : vector<1x32xf32> to vector<8x32xf32>
      %213 = arith.addf %211, %212 : vector<8x32xf32>
      %cst_96 = arith.constant dense<0.000000e+00> : vector<8x64xf32>
      %214 = tpu.matmul %213, %21, %cst_96 {dimension_numbers = #tpu.dot_dimension_numbers<[1], [0], [0], [1], [0, 0, 1, 1], [], []>} : vector<8x32xf32>, vector<32x64xf32>, vector<8x64xf32> -> vector<8x64xf32>
      %215 = vector.broadcast %23 : vector<1x64xf32> to vector<8x64xf32>
      %216 = arith.addf %214, %215 : vector<8x64xf32>
      %cst_97 = arith.constant 0.000000e+00 : f32
      %217 = vector.broadcast %cst_97 : f32 to vector<8x64xf32>
      %218 = arith.maximumf %216, %217 : vector<8x64xf32>
      %cst_98 = arith.constant dense<0.000000e+00> : vector<8x32xf32>
      %219 = tpu.matmul %218, %25, %cst_98 {dimension_numbers = #tpu.dot_dimension_numbers<[1], [0], [0], [1], [0, 0, 1, 1], [], []>} : vector<8x64xf32>, vector<64x32xf32>, vector<8x32xf32> -> vector<8x32xf32>
      %220 = vector.broadcast %27 : vector<1x32xf32> to vector<8x32xf32>
      %221 = arith.addf %219, %220 : vector<8x32xf32>
      %222 = arith.addf %213, %221 : vector<8x32xf32>
      %cst_99 = arith.constant dense<0.000000e+00> : vector<8xf32>
      %223 = vector.multi_reduction <add>, %222, %cst_99 [1] : vector<8x32xf32> to vector<8xf32>
      %224 = vector.shape_cast %223 : vector<8xf32> to vector<8x1xf32>
      %cst_100 = arith.constant 3.200000e+01 : f32
      %225 = vector.broadcast %cst_100 : f32 to vector<8x1xf32>
      %226 = arith.divf %224, %225 : vector<8x1xf32>
      %227 = vector.broadcast %226 : vector<8x1xf32> to vector<8x32xf32>
      %228 = arith.subf %222, %227 : vector<8x32xf32>
      %229 = arith.mulf %228, %228 : vector<8x32xf32>
      %cst_101 = arith.constant dense<0.000000e+00> : vector<8xf32>
      %230 = vector.multi_reduction <add>, %229, %cst_101 [1] : vector<8x32xf32> to vector<8xf32>
      %231 = vector.shape_cast %230 : vector<8xf32> to vector<8x1xf32>
      %cst_102 = arith.constant 3.200000e+01 : f32
      %232 = vector.broadcast %cst_102 : f32 to vector<8x1xf32>
      %233 = arith.divf %231, %232 : vector<8x1xf32>
      %234 = vector.broadcast %226 : vector<8x1xf32> to vector<8x32xf32>
      %235 = arith.subf %222, %234 : vector<8x32xf32>
      %cst_103 = arith.constant 9.99999974E-6 : f32
      %236 = vector.broadcast %cst_103 : f32 to vector<8x1xf32>
      %237 = arith.addf %233, %236 : vector<8x1xf32>
      %238 = math.rsqrt %237 : vector<8x1xf32>
      %239 = vector.broadcast %238 : vector<8x1xf32> to vector<8x32xf32>
      %240 = arith.mulf %235, %239 : vector<8x32xf32>
      %241 = vector.broadcast %29 : vector<1x32xf32> to vector<8x32xf32>
      %242 = arith.mulf %240, %241 : vector<8x32xf32>
      %243 = vector.broadcast %31 : vector<1x32xf32> to vector<8x32xf32>
      %244 = arith.addf %242, %243 : vector<8x32xf32>
      %245 = tpu.concatenate %146, %244 in 1 : vector<8x32xf32>, vector<8x32xf32> -> vector<8x64xf32>
      %c0_104 = arith.constant 0 : index
      %c0_105 = arith.constant 0 : index
      %246 = vector.load %arg22[%c0_104, %c0_105] : memref<8x64xf32, #tpu.memory_space<vmem>>, vector<8x64xf32>
      tpu.vector_store %arg22[%c0_104, %c0_105], %245 {strides = array<i32>} : memref<8x64xf32, #tpu.memory_space<vmem>>, vector<8x64xf32>,
    } else {
    }
    return
  }
  func.func @transform_0(%arg0: i32, %arg1: i32) -> (i32, i32) {
    %c0_i32 = arith.constant 0 : i32
    %c0_i32_0 = arith.constant 0 : i32
    return %arg0, %c0_i32 : i32, i32
  }
  func.func @transform_1(%arg0: i32, %arg1: i32) -> (i32, i32) {
    %c0_i32 = arith.constant 0 : i32
    %c0_i32_0 = arith.constant 0 : i32
    return %arg0, %c0_i32 : i32, i32
  }
  func.func @transform_2(%arg0: i32, %arg1: i32) -> (i32, i32) {
    %c0_i32 = arith.constant 0 : i32
    %c0_i32_0 = arith.constant 0 : i32
    %c0_i32_1 = arith.constant 0 : i32
    return %c0_i32, %c0_i32_0 : i32, i32
  }
  func.func @transform_3(%arg0: i32, %arg1: i32) -> (i32, i32) {
    %c0_i32 = arith.constant 0 : i32
    %c0_i32_0 = arith.constant 0 : i32
    %c0_i32_1 = arith.constant 0 : i32
    return %c0_i32, %c0_i32_0 : i32, i32
  }
  func.func @transform_4(%arg0: i32, %arg1: i32) -> (i32, i32, i32) {
    %c0_i32 = arith.constant 0 : i32
    %c0_i32_0 = arith.constant 0 : i32
    %c0_i32_1 = arith.constant 0 : i32
    return %arg1, %c0_i32, %c0_i32_0 : i32, i32, i32
  }
  func.func @transform_5(%arg0: i32, %arg1: i32) -> (i32, i32, i32) {
    %c0_i32 = arith.constant 0 : i32
    %c0_i32_0 = arith.constant 0 : i32
    %c0_i32_1 = arith.constant 0 : i32
    return %arg1, %c0_i32, %c0_i32_0 : i32, i32, i32
  }
  func.func @transform_6(%arg0: i32, %arg1: i32) -> (i32, i32, i32) {
    %c0_i32 = arith.constant 0 : i32
    %c0_i32_0 = arith.constant 0 : i32
    %c0_i32_1 = arith.constant 0 : i32
    return %arg1, %c0_i32, %c0_i32_0 : i32, i32, i32
  }
  func.func @transform_7(%arg0: i32, %arg1: i32) -> (i32, i32, i32) {
    %c0_i32 = arith.constant 0 : i32
    %c0_i32_0 = arith.constant 0 : i32
    %c0_i32_1 = arith.constant 0 : i32
    return %arg1, %c0_i32, %c0_i32_0 : i32, i32, i32
  }
  func.func @transform_8(%arg0: i32, %arg1: i32) -> (i32, i32, i32) {
    %c0_i32 = arith.constant 0 : i32
    %c0_i32_0 = arith.constant 0 : i32
    %c0_i32_1 = arith.constant 0 : i32
    return %arg1, %c0_i32, %c0_i32_0 : i32, i32, i32
  }
  func.func @transform_9(%arg0: i32, %arg1: i32) -> (i32, i32, i32) {
    %c0_i32 = arith.constant 0 : i32
    %c0_i32_0 = arith.constant 0 : i32
    %c0_i32_1 = arith.constant 0 : i32
    return %arg1, %c0_i32, %c0_i32_0 : i32, i32, i32
  }
  func.func @transform_10(%arg0: i32, %arg1: i32) -> (i32, i32, i32) {
    %c0_i32 = arith.constant 0 : i32
    %c0_i32_0 = arith.constant 0 : i32
    %c0_i32_1 = arith.constant 0 : i32
    return %arg1, %c0_i32, %c0_i32_0 : i32, i32, i32
  }
  func.func @transform_11(%arg0: i32, %arg1: i32) -> (i32, i32, i32) {
    %c0_i32 = arith.constant 0 : i32
    %c0_i32_0 = arith.constant 0 : i32
    %c0_i32_1 = arith.constant 0 : i32
    return %arg1, %c0_i32, %c0_i32_0 : i32, i32, i32
  }
  func.func @transform_12(%arg0: i32, %arg1: i32) -> (i32, i32, i32) {
    %c0_i32 = arith.constant 0 : i32
    %c0_i32_0 = arith.constant 0 : i32
    %c0_i32_1 = arith.constant 0 : i32
    return %arg1, %c0_i32, %c0_i32_0 : i32, i32, i32
  }
  func.func @transform_13(%arg0: i32, %arg1: i32) -> (i32, i32, i32) {
    %c0_i32 = arith.constant 0 : i32
    %c0_i32_0 = arith.constant 0 : i32
    %c0_i32_1 = arith.constant 0 : i32
    return %arg1, %c0_i32, %c0_i32_0 : i32, i32, i32
  }
  func.func @transform_14(%arg0: i32, %arg1: i32) -> (i32, i32, i32) {
    %c0_i32 = arith.constant 0 : i32
    %c0_i32_0 = arith.constant 0 : i32
    %c0_i32_1 = arith.constant 0 : i32
    return %arg1, %c0_i32, %c0_i32_0 : i32, i32, i32
  }
  func.func @transform_15(%arg0: i32, %arg1: i32) -> (i32, i32, i32) {
    %c0_i32 = arith.constant 0 : i32
    %c0_i32_0 = arith.constant 0 : i32
    %c0_i32_1 = arith.constant 0 : i32
    return %arg1, %c0_i32, %c0_i32_0 : i32, i32, i32
  }
  func.func @transform_16(%arg0: i32, %arg1: i32) -> (i32, i32, i32) {
    %c0_i32 = arith.constant 0 : i32
    %c0_i32_0 = arith.constant 0 : i32
    %c0_i32_1 = arith.constant 0 : i32
    return %arg1, %c0_i32, %c0_i32_0 : i32, i32, i32
  }
  func.func @transform_17(%arg0: i32, %arg1: i32) -> (i32, i32, i32) {
    %c0_i32 = arith.constant 0 : i32
    %c0_i32_0 = arith.constant 0 : i32
    %c0_i32_1 = arith.constant 0 : i32
    return %arg1, %c0_i32, %c0_i32_0 : i32, i32, i32
  }
  func.func @transform_18(%arg0: i32, %arg1: i32) -> (i32, i32, i32) {
    %c0_i32 = arith.constant 0 : i32
    %c0_i32_0 = arith.constant 0 : i32
    %c0_i32_1 = arith.constant 0 : i32
    return %arg1, %c0_i32, %c0_i32_0 : i32, i32, i32
  }
  func.func @transform_19(%arg0: i32, %arg1: i32) -> (i32, i32, i32) {
    %c0_i32 = arith.constant 0 : i32
    %c0_i32_0 = arith.constant 0 : i32
    %c0_i32_1 = arith.constant 0 : i32
    return %arg1, %c0_i32, %c0_i32_0 : i32, i32, i32
  }
  func.func @transform_20(%arg0: i32, %arg1: i32) -> (i32, i32) {
    %c0_i32 = arith.constant 0 : i32
    %c0_i32_0 = arith.constant 0 : i32
    return %arg0, %c0_i32 : i32, i32
  }
}

</mosaic_0001>

<llo_original>
// kernel: tpu_custom_call.1
$region0: #{tpu_custom_call.1}
  #allocation0 [shape = 'u32[]', space=smem, size = 0x4, offset = 0x4, fixed_abs, tag = 'smem constant byte address 0x4 - core index']
  #allocation1 [shape = 'u32[72,128]{1,0:T(1,128)}', space=vmem, size = 0x9000, scoped, tag = 'internal scratch']
  %s0 = inlined_call_operand.hbm [shape: f32[16,32], index: 0, kind: input, shape index: {}]
  %s1 = inlined_call_operand.hbm [shape: f32[16,32], index: 1, kind: input, shape index: {}]
  %s2 = inlined_call_operand.hbm [shape: f32[8,32], index: 2, kind: input, shape index: {}]
  %s3 = inlined_call_operand.hbm [shape: f32[8,32], index: 3, kind: input, shape index: {}]
  %s4 = inlined_call_operand.vmem [shape: f32[2,32,96], index: 4, kind: input, shape index: {}]
  %s5 = inlined_call_operand.vmem [shape: f32[2,1,96], index: 5, kind: input, shape index: {}]
  %s6 = inlined_call_operand.vmem [shape: f32[2,32,64], index: 6, kind: input, shape index: {}]
  %s7 = inlined_call_operand.vmem [shape: f32[2,1,64], index: 7, kind: input, shape index: {}]
  %s8 = inlined_call_operand.vmem [shape: f32[2,32,32], index: 8, kind: input, shape index: {}]
  %s9 = inlined_call_operand.vmem [shape: f32[2,1,32], index: 9, kind: input, shape index: {}]
  %s10 = inlined_call_operand.hbm [shape: f32[2,32,32], index: 10, kind: input, shape index: {}]
  %s11 = inlined_call_operand.vmem [shape: f32[2,1,32], index: 11, kind: input, shape index: {}]
  %s12 = inlined_call_operand.vmem [shape: f32[2,1,32], index: 12, kind: input, shape index: {}]
  %s13 = inlined_call_operand.hbm [shape: f32[2,1,32], index: 13, kind: input, shape index: {}]
  %s14 = inlined_call_operand.hbm [shape: f32[2,32,64], index: 14, kind: input, shape index: {}]
  %s15 = inlined_call_operand.vmem [shape: f32[2,1,64], index: 15, kind: input, shape index: {}]
  %s16 = inlined_call_operand.vmem [shape: f32[2,64,32], index: 16, kind: input, shape index: {}]
  %s17 = inlined_call_operand.vmem [shape: f32[2,1,32], index: 17, kind: input, shape index: {}]
  %s18 = inlined_call_operand.vmem [shape: f32[2,1,32], index: 18, kind: input, shape index: {}]
  %s19 = inlined_call_operand.hbm [shape: f32[2,1,32], index: 19, kind: input, shape index: {}]
  %s20 = inlined_call_operand.hbm [shape: f32[16,64], index: 20, kind: output, shape index: {}]
  %s21 = sld [smem:[#allocation0]]
  $region153: #{tpu_custom_call.1} parent=0
    _
  %s23 = ssub.s32 1, %s21
  %s24 = scalar_select 0, %s23, %s21
  $region1: #{tpu_custom_call.1} parent=0
    #allocation2 [shape = 'u8[8192]{0}', space=vmem, size = 0x2000, scoped, tag = 'input window, operand 0']
    #allocation3 [shape = 's32[2]{0}', space=sflag, size = 0x8, scoped, tag = 'scoped memory for tpu_custom_call.1']
    #allocation4 [shape = 's32[2]{0}', space=sflag, size = 0x8, scoped, tag = 'scoped memory for tpu_custom_call.1']
    #allocation5 [shape = 'u8[8192]{0}', space=vmem, size = 0x2000, scoped, tag = 'input window, operand 1']
    #allocation6 [shape = 's32[2]{0}', space=sflag, size = 0x8, scoped, tag = 'scoped memory for tpu_custom_call.1']
    #allocation7 [shape = 'u8[4096]{0}', space=vmem, size = 0x1000, scoped, tag = 'input window, operand 2, single buffered']
    #allocation8 [shape = 'u8[4096]{0}', space=vmem, size = 0x1000, scoped, tag = 'input window, operand 3, single buffered']
    #allocation9 [shape = 's32[1]{0}', space=sflag, size = 0x4, scoped, tag = 'scoped memory for tpu_custom_call.1']
    #allocation10 [shape = 'u8[32768]{0}', space=vmem, size = 0x8000, scoped, tag = 'input window, operand 10']
    #allocation11 [shape = 'u8[1024]{0}', space=vmem, size = 0x400, scoped, tag = 'input window, operand 13']
    #allocation12 [shape = 'u8[32768]{0}', space=vmem, size = 0x8000, scoped, tag = 'input window, operand 14']
    #allocation13 [shape = 'u8[1024]{0}', space=vmem, size = 0x400, scoped, tag = 'input window, operand 19']
    #allocation14 [shape = 'u8[8192]{0}', space=vmem, size = 0x2000, scoped, tag = 'output window, operand 0']
    %25 = vsyncpa [#allocation3], 0
    %s26 = scalar_lea.sflag [#allocation3], 1
    %27 = vsyncpa %s26, 0
    %28 = vsyncpa [#allocation6], 0
    %s29 = scalar_lea.sflag [#allocation6], 1
    %30 = vsyncpa %s29, 0
    %31 = vsyncpa [#allocation9], 0
    %32 = vsyncpa [#allocation4], 0
    %s33 = scalar_lea.sflag [#allocation4], 1
    %34 = vsyncpa %s33, 0
    loop: start=0, step=1, limit=6
    $region2: #{tpu_custom_call.1} parent=1 // loop_pre_header
      _
    $region3: #{tpu_custom_call.1} parent=1 // loop_header
      %s36 = sphi 0, %s40
      %p37 = scmp.ge.s32.totalorder %s36, 6
      %s43 = sphi 0, %s55
      %s44 = sphi 0, %s51
      %s45 = sphi 0, %s43
      %s46 = sphi 0, %s44
      %s47 = sphi 0, %s45
      %s48 = sphi 0, %s46
      %s58 = sphi 0, %s60
      %s61 = sphi 0, %s58
      %s62 = sphi 0, %s61
      %s78 = sphi 0, %s62
      %s84 = sphi 0, %s86
      %s87 = sphi 0, %s84
      %s88 = sphi 0, %s87
      %s104 = sphi 0, %s88
      %s108 = sphi 0, %s108
      %s110 = sphi 0, %s108
      %s111 = sphi 0, %s110
      %s125 = sphi 0, %s111
      %s129 = sphi 0, %s129
      %s131 = sphi 0, %s129
      %s132 = sphi 0, %s131
      %s146 = sphi 0, %s132
      %s152 = sphi 0, %s154
      %s155 = sphi 0, %s152
      %s156 = sphi 0, %s155
      %s172 = sphi 0, %s156
      %s178 = sphi 0, %s180
      %s181 = sphi 0, %s178
      %s182 = sphi 0, %s181
      %s198 = sphi 0, %s182
      %s204 = sphi 0, %s206
      %s207 = sphi 0, %s204
      %s208 = sphi 0, %s207
      %s224 = sphi 0, %s208
      %s230 = sphi 0, %s232
      %s233 = sphi 0, %s230
      %s234 = sphi 0, %s233
      %s250 = sphi 0, %s234
      %s256 = sphi 0, %s258
      %s259 = sphi 0, %s256
      %s260 = sphi 0, %s259
      %s276 = sphi 0, %s260
      %s282 = sphi 0, %s284
      %s285 = sphi 0, %s282
      %s286 = sphi 0, %s285
      %s302 = sphi 0, %s286
      %s308 = sphi 0, %s310
      %s311 = sphi 0, %s308
      %s312 = sphi 0, %s311
      %s328 = sphi 0, %s312
      %s334 = sphi 0, %s336
      %s337 = sphi 0, %s334
      %s338 = sphi 0, %s337
      %s354 = sphi 0, %s338
      %s360 = sphi 0, %s362
      %s363 = sphi 0, %s360
      %s364 = sphi 0, %s363
      %s380 = sphi 0, %s364
      %s386 = sphi 0, %s388
      %s389 = sphi 0, %s386
      %s390 = sphi 0, %s389
      %s406 = sphi 0, %s390
      %s412 = sphi 0, %s414
      %s415 = sphi 0, %s412
      %s416 = sphi 0, %s415
      %s432 = sphi 0, %s416
      %s438 = sphi 0, %s440
      %s441 = sphi 0, %s438
      %s442 = sphi 0, %s441
      %s458 = sphi 0, %s442
      %s464 = sphi 0, %s466
      %s467 = sphi 0, %s464
      %s468 = sphi 0, %s467
      %s484 = sphi 0, %s468
      %s490 = sphi 0, %s492
      %s493 = sphi 0, %s490
      %s494 = sphi 0, %s493
      %s510 = sphi 0, %s494
      %s516 = sphi 0, %s518
      %s519 = sphi 0, %s516
      %s520 = sphi 0, %s519
      %s536 = sphi 0, %s520
      %s542 = sphi 0, %s544
      %s545 = sphi 0, %s542
      %s546 = sphi 0, %s545
      %s562 = sphi 0, %s546
      %s568 = sphi 0, %s570
      %s571 = sphi 0, %s568
      %s572 = sphi 0, %s571
      %s588 = sphi 0, %s572
    $region4: #{tpu_custom_call.1} parent=1 // loop_header_branch
      %39 = sbr.rel (%p37) target = $region8
    $region5: #{tpu_custom_call.1} parent=1 // loop_body
      %s41 = ssub.s32 %s36, 1
      %s42 = ssub.s32 %s36, 2
      %s49 = sadd.s32 1, %s44
      %p50 = scmp.ge.s32.totalorder %s49, 2
      %s51 = scalar_select %p50, 0, %s49
      %s52 = sadd.s32 1, %s43
      %s53 = scalar_select %p50, %s52, %s43
      %p54 = scmp.ge.s32.totalorder %s53, 2
      %s55 = scalar_select %p54, 0, %s53
      %s56 = ssub.s32 %s43, %s55
      %p57 = scmp.eq.s32.totalorder %s56, 0
      %s59 = sadd.s32 %s58, 1
      %s60 = scalar_select %p57, %s58, %s59
      %p63 = pneg %p57
      %p64 = scmp.eq.s32.totalorder %s36, 3
      %p65 = por %p63, %p64
      %p66 = scmp.ne.s32.totalorder %s58, %s61
      %p67 = scmp.eq.s32.totalorder %s36, 0
      %p68 = por %p66, %p67
      %p69 = scmp.ne.s32.totalorder %s58, %s61
      %p70 = scmp.eq.s32.totalorder %s41, 3
      %p71 = por %p69, %p70
      %p72 = scmp.ne.s32.totalorder %s61, %s62
      %p73 = scmp.eq.s32.totalorder %s41, 0
      %p74 = por %p72, %p73
      %p75 = scmp.ne.s32.totalorder %s61, %s62
      %p76 = scmp.eq.s32.totalorder %s42, 3
      %p77 = por %p75, %p76
      %p79 = scmp.ne.s32.totalorder %s62, %s78
      %p80 = scmp.eq.s32.totalorder %s42, 0
      %p81 = por %p79, %p80
      %s82 = ssub.s32 %s43, %s55
      %p83 = scmp.eq.s32.totalorder %s82, 0
      %s85 = sadd.s32 %s84, 1
      %s86 = scalar_select %p83, %s84, %s85
      %p89 = pneg %p83
      %p90 = scmp.eq.s32.totalorder %s36, 3
      %p91 = por %p89, %p90
      %p92 = scmp.ne.s32.totalorder %s84, %s87
      %p93 = scmp.eq.s32.totalorder %s36, 0
      %p94 = por %p92, %p93
      %p95 = scmp.ne.s32.totalorder %s84, %s87
      %p96 = scmp.eq.s32.totalorder %s41, 3
      %p97 = por %p95, %p96
      %p98 = scmp.ne.s32.totalorder %s87, %s88
      %p99 = scmp.eq.s32.totalorder %s41, 0
      %p100 = por %p98, %p99
      %p101 = scmp.ne.s32.totalorder %s87, %s88
      %p102 = scmp.eq.s32.totalorder %s42, 3
      %p103 = por %p101, %p102
      %p105 = scmp.ne.s32.totalorder %s88, %s104
      %p106 = scmp.eq.s32.totalorder %s42, 0
      %p107 = por %p105, %p106
      %s109 = sadd.s32 %s108, 1
      %p112 = scmp.eq.s32.totalorder %s36, 3
      %p113 = scmp.ne.s32.totalorder %s108, %s110
      %p114 = scmp.eq.s32.totalorder %s36, 0
      %p115 = por %p113, %p114
      %p116 = scmp.ne.s32.totalorder %s108, %s110
      %p117 = scmp.eq.s32.totalorder %s41, 3
      %p118 = por %p116, %p117
      %p119 = scmp.ne.s32.totalorder %s110, %s111
      %p120 = scmp.eq.s32.totalorder %s41, 0
      %p121 = por %p119, %p120
      %p122 = scmp.ne.s32.totalorder %s110, %s111
      %p123 = scmp.eq.s32.totalorder %s42, 3
      %p124 = por %p122, %p123
      %p126 = scmp.ne.s32.totalorder %s111, %s125
      %p127 = scmp.eq.s32.totalorder %s42, 0
      %p128 = por %p126, %p127
      %s130 = sadd.s32 %s129, 1
      %p133 = scmp.eq.s32.totalorder %s36, 3
      %p134 = scmp.ne.s32.totalorder %s129, %s131
      %p135 = scmp.eq.s32.totalorder %s36, 0
      %p136 = por %p134, %p135
      %p137 = scmp.ne.s32.totalorder %s129, %s131
      %p138 = scmp.eq.s32.totalorder %s41, 3
      %p139 = por %p137, %p138
      %p140 = scmp.ne.s32.totalorder %s131, %s132
      %p141 = scmp.eq.s32.totalorder %s41, 0
      %p142 = por %p140, %p141
      %p143 = scmp.ne.s32.totalorder %s131, %s132
      %p144 = scmp.eq.s32.totalorder %s42, 3
      %p145 = por %p143, %p144
      %p147 = scmp.ne.s32.totalorder %s132, %s146
      %p148 = scmp.eq.s32.totalorder %s42, 0
      %p149 = por %p147, %p148
      %s150 = ssub.s32 %s44, %s51
      %p151 = scmp.eq.s32.totalorder %s150, 0
      %s153 = sadd.s32 %s152, 1
      %s154 = scalar_select %p151, %s152, %s153
      %p157 = pneg %p151
      %p158 = scmp.eq.s32.totalorder %s36, 3
      %p159 = por %p157, %p158
      %p160 = scmp.ne.s32.totalorder %s152, %s155
      %p161 = scmp.eq.s32.totalorder %s36, 0
      %p162 = por %p160, %p161
      %p163 = scmp.ne.s32.totalorder %s152, %s155
      %p164 = scmp.eq.s32.totalorder %s41, 3
      %p165 = por %p163, %p164
      %p166 = scmp.ne.s32.totalorder %s155, %s156
      %p167 = scmp.eq.s32.totalorder %s41, 0
      %p168 = por %p166, %p167
      %p169 = scmp.ne.s32.totalorder %s155, %s156
      %p170 = scmp.eq.s32.totalorder %s42, 3
      %p171 = por %p169, %p170
      %p173 = scmp.ne.s32.totalorder %s156, %s172
      %p174 = scmp.eq.s32.totalorder %s42, 0
      %p175 = por %p173, %p174
      %s176 = ssub.s32 %s44, %s51
      %p177 = scmp.eq.s32.totalorder %s176, 0
      %s179 = sadd.s32 %s178, 1
      %s180 = scalar_select %p177, %s178, %s179
      %p183 = pneg %p177
      %p184 = scmp.eq.s32.totalorder %s36, 3
      %p185 = por %p183, %p184
      %p186 = scmp.ne.s32.totalorder %s178, %s181
      %p187 = scmp.eq.s32.totalorder %s36, 0
      %p188 = por %p186, %p187
      %p189 = scmp.ne.s32.totalorder %s178, %s181
      %p190 = scmp.eq.s32.totalorder %s41, 3
      %p191 = por %p189, %p190
      %p192 = scmp.ne.s32.totalorder %s181, %s182
      %p193 = scmp.eq.s32.totalorder %s41, 0
      %p194 = por %p192, %p193
      %p195 = scmp.ne.s32.totalorder %s181, %s182
      %p196 = scmp.eq.s32.totalorder %s42, 3
      %p197 = por %p195, %p196
      %p199 = scmp.ne.s32.totalorder %s182, %s198
      %p200 = scmp.eq.s32.totalorder %s42, 0
      %p201 = por %p199, %p200
      %s202 = ssub.s32 %s44, %s51
      %p203 = scmp.eq.s32.totalorder %s202, 0
      %s205 = sadd.s32 %s204, 1
      %s206 = scalar_select %p203, %s204, %s205
      %p209 = pneg %p203
      %p210 = scmp.eq.s32.totalorder %s36, 3
      %p211 = por %p209, %p210
      %p212 = scmp.ne.s32.totalorder %s204, %s207
      %p213 = scmp.eq.s32.totalorder %s36, 0
      %p214 = por %p212, %p213
      %p215 = scmp.ne.s32.totalorder %s204, %s207
      %p216 = scmp.eq.s32.totalorder %s41, 3
      %p217 = por %p215, %p216
      %p218 = scmp.ne.s32.totalorder %s207, %s208
      %p219 = scmp.eq.s32.totalorder %s41, 0
      %p220 = por %p218, %p219
      %p221 = scmp.ne.s32.totalorder %s207, %s208
      %p222 = scmp.eq.s32.totalorder %s42, 3
      %p223 = por %p221, %p222
      %p225 = scmp.ne.s32.totalorder %s208, %s224
      %p226 = scmp.eq.s32.totalorder %s42, 0
      %p227 = por %p225, %p226
      %s228 = ssub.s32 %s44, %s51
      %p229 = scmp.eq.s32.totalorder %s228, 0
      %s231 = sadd.s32 %s230, 1
      %s232 = scalar_select %p229, %s230, %s231
      %p235 = pneg %p229
      %p236 = scmp.eq.s32.totalorder %s36, 3
      %p237 = por %p235, %p236
      %p238 = scmp.ne.s32.totalorder %s230, %s233
      %p239 = scmp.eq.s32.totalorder %s36, 0
      %p240 = por %p238, %p239
      %p241 = scmp.ne.s32.totalorder %s230, %s233
      %p242 = scmp.eq.s32.totalorder %s41, 3
      %p243 = por %p241, %p242
      %p244 = scmp.ne.s32.totalorder %s233, %s234
      %p245 = scmp.eq.s32.totalorder %s41, 0
      %p246 = por %p244, %p245
      %p247 = scmp.ne.s32.totalorder %s233, %s234
      %p248 = scmp.eq.s32.totalorder %s42, 3
      %p249 = por %p247, %p248
      %p251 = scmp.ne.s32.totalorder %s234, %s250
      %p252 = scmp.eq.s32.totalorder %s42, 0
      %p253 = por %p251, %p252
      %s254 = ssub.s32 %s44, %s51
      %p255 = scmp.eq.s32.totalorder %s254, 0
      %s257 = sadd.s32 %s256, 1
      %s258 = scalar_select %p255, %s256, %s257
      %p261 = pneg %p255
      %p262 = scmp.eq.s32.totalorder %s36, 3
      %p263 = por %p261, %p262
      %p264 = scmp.ne.s32.totalorder %s256, %s259
      %p265 = scmp.eq.s32.totalorder %s36, 0
      %p266 = por %p264, %p265
      %p267 = scmp.ne.s32.totalorder %s256, %s259
      %p268 = scmp.eq.s32.totalorder %s41, 3
      %p269 = por %p267, %p268
      %p270 = scmp.ne.s32.totalorder %s259, %s260
      %p271 = scmp.eq.s32.totalorder %s41, 0
      %p272 = por %p270, %p271
      %p273 = scmp.ne.s32.totalorder %s259, %s260
      %p274 = scmp.eq.s32.totalorder %s42, 3
      %p275 = por %p273, %p274
      %p277 = scmp.ne.s32.totalorder %s260, %s276
      %p278 = scmp.eq.s32.totalorder %s42, 0
      %p279 = por %p277, %p278
      %s280 = ssub.s32 %s44, %s51
      %p281 = scmp.eq.s32.totalorder %s280, 0
      %s283 = sadd.s32 %s282, 1
      %s284 = scalar_select %p281, %s282, %s283
      %p287 = pneg %p281
      %p288 = scmp.eq.s32.totalorder %s36, 3
      %p289 = por %p287, %p288
      %p290 = scmp.ne.s32.totalorder %s282, %s285
      %p291 = scmp.eq.s32.totalorder %s36, 0
      %p292 = por %p290, %p291
      %p293 = scmp.ne.s32.totalorder %s282, %s285
      %p294 = scmp.eq.s32.totalorder %s41, 3
      %p295 = por %p293, %p294
      %p296 = scmp.ne.s32.totalorder %s285, %s286
      %p297 = scmp.eq.s32.totalorder %s41, 0
      %p298 = por %p296, %p297
      %p299 = scmp.ne.s32.totalorder %s285, %s286
      %p300 = scmp.eq.s32.totalorder %s42, 3
      %p301 = por %p299, %p300
      %p303 = scmp.ne.s32.totalorder %s286, %s302
      %p304 = scmp.eq.s32.totalorder %s42, 0
      %p305 = por %p303, %p304
      %s306 = ssub.s32 %s44, %s51
      %p307 = scmp.eq.s32.totalorder %s306, 0
      %s309 = sadd.s32 %s308, 1
      %s310 = scalar_select %p307, %s308, %s309
      %p313 = pneg %p307
      %p314 = scmp.eq.s32.totalorder %s36, 3
      %p315 = por %p313, %p314
      %p316 = scmp.ne.s32.totalorder %s308, %s311
      %p317 = scmp.eq.s32.totalorder %s36, 0
      %p318 = por %p316, %p317
      %p319 = scmp.ne.s32.totalorder %s308, %s311
      %p320 = scmp.eq.s32.totalorder %s41, 3
      %p321 = por %p319, %p320
      %p322 = scmp.ne.s32.totalorder %s311, %s312
      %p323 = scmp.eq.s32.totalorder %s41, 0
      %p324 = por %p322, %p323
      %p325 = scmp.ne.s32.totalorder %s311, %s312
      %p326 = scmp.eq.s32.totalorder %s42, 3
      %p327 = por %p325, %p326
      %p329 = scmp.ne.s32.totalorder %s312, %s328
      %p330 = scmp.eq.s32.totalorder %s42, 0
      %p331 = por %p329, %p330
      %s332 = ssub.s32 %s44, %s51
      %p333 = scmp.eq.s32.totalorder %s332, 0
      %s335 = sadd.s32 %s334, 1
      %s336 = scalar_select %p333, %s334, %s335
      %p339 = pneg %p333
      %p340 = scmp.eq.s32.totalorder %s36, 3
      %p341 = por %p339, %p340
      %p342 = scmp.ne.s32.totalorder %s334, %s337
      %p343 = scmp.eq.s32.totalorder %s36, 0
      %p344 = por %p342, %p343
      %p345 = scmp.ne.s32.totalorder %s334, %s337
      %p346 = scmp.eq.s32.totalorder %s41, 3
      %p347 = por %p345, %p346
      %p348 = scmp.ne.s32.totalorder %s337, %s338
      %p349 = scmp.eq.s32.totalorder %s41, 0
      %p350 = por %p348, %p349
      %p351 = scmp.ne.s32.totalorder %s337, %s338
      %p352 = scmp.eq.s32.totalorder %s42, 3
      %p353 = por %p351, %p352
      %p355 = scmp.ne.s32.totalorder %s338, %s354
      %p356 = scmp.eq.s32.totalorder %s42, 0
      %p357 = por %p355, %p356
      %s358 = ssub.s32 %s44, %s51
      %p359 = scmp.eq.s32.totalorder %s358, 0
      %s361 = sadd.s32 %s360, 1
      %s362 = scalar_select %p359, %s360, %s361
      %p365 = pneg %p359
      %p366 = scmp.eq.s32.totalorder %s36, 3
      %p367 = por %p365, %p366
      %p368 = scmp.ne.s32.totalorder %s360, %s363
      %p369 = scmp.eq.s32.totalorder %s36, 0
      %p370 = por %p368, %p369
      %p371 = scmp.ne.s32.totalorder %s360, %s363
      %p372 = scmp.eq.s32.totalorder %s41, 3
      %p373 = por %p371, %p372
      %p374 = scmp.ne.s32.totalorder %s363, %s364
      %p375 = scmp.eq.s32.totalorder %s41, 0
      %p376 = por %p374, %p375
      %p377 = scmp.ne.s32.totalorder %s363, %s364
      %p378 = scmp.eq.s32.totalorder %s42, 3
      %p379 = por %p377, %p378
      %p381 = scmp.ne.s32.totalorder %s364, %s380
      %p382 = scmp.eq.s32.totalorder %s42, 0
      %p383 = por %p381, %p382
      %s384 = ssub.s32 %s44, %s51
      %p385 = scmp.eq.s32.totalorder %s384, 0
      %s387 = sadd.s32 %s386, 1
      %s388 = scalar_select %p385, %s386, %s387
      %p391 = pneg %p385
      %p392 = scmp.eq.s32.totalorder %s36, 3
      %p393 = por %p391, %p392
      %p394 = scmp.ne.s32.totalorder %s386, %s389
      %p395 = scmp.eq.s32.totalorder %s36, 0
      %p396 = por %p394, %p395
      %p397 = scmp.ne.s32.totalorder %s386, %s389
      %p398 = scmp.eq.s32.totalorder %s41, 3
      %p399 = por %p397, %p398
      %p400 = scmp.ne.s32.totalorder %s389, %s390
      %p401 = scmp.eq.s32.totalorder %s41, 0
      %p402 = por %p400, %p401
      %p403 = scmp.ne.s32.totalorder %s389, %s390
      %p404 = scmp.eq.s32.totalorder %s42, 3
      %p405 = por %p403, %p404
      %p407 = scmp.ne.s32.totalorder %s390, %s406
      %p408 = scmp.eq.s32.totalorder %s42, 0
      %p409 = por %p407, %p408
      %s410 = ssub.s32 %s44, %s51
      %p411 = scmp.eq.s32.totalorder %s410, 0
      %s413 = sadd.s32 %s412, 1
      %s414 = scalar_select %p411, %s412, %s413
      %p417 = pneg %p411
      %p418 = scmp.eq.s32.totalorder %s36, 3
      %p419 = por %p417, %p418
      %p420 = scmp.ne.s32.totalorder %s412, %s415
      %p421 = scmp.eq.s32.totalorder %s36, 0
      %p422 = por %p420, %p421
      %p423 = scmp.ne.s32.totalorder %s412, %s415
      %p424 = scmp.eq.s32.totalorder %s41, 3
      %p425 = por %p423, %p424
      %p426 = scmp.ne.s32.totalorder %s415, %s416
      %p427 = scmp.eq.s32.totalorder %s41, 0
      %p428 = por %p426, %p427
      %p429 = scmp.ne.s32.totalorder %s415, %s416
      %p430 = scmp.eq.s32.totalorder %s42, 3
      %p431 = por %p429, %p430
      %p433 = scmp.ne.s32.totalorder %s416, %s432
      %p434 = scmp.eq.s32.totalorder %s42, 0
      %p435 = por %p433, %p434
      %s436 = ssub.s32 %s44, %s51
      %p437 = scmp.eq.s32.totalorder %s436, 0
      %s439 = sadd.s32 %s438, 1
      %s440 = scalar_select %p437, %s438, %s439
      %p443 = pneg %p437
      %p444 = scmp.eq.s32.totalorder %s36, 3
      %p445 = por %p443, %p444
      %p446 = scmp.ne.s32.totalorder %s438, %s441
      %p447 = scmp.eq.s32.totalorder %s36, 0
      %p448 = por %p446, %p447
      %p449 = scmp.ne.s32.totalorder %s438, %s441
      %p450 = scmp.eq.s32.totalorder %s41, 3
      %p451 = por %p449, %p450
      %p452 = scmp.ne.s32.totalorder %s441, %s442
      %p453 = scmp.eq.s32.totalorder %s41, 0
      %p454 = por %p452, %p453
      %p455 = scmp.ne.s32.totalorder %s441, %s442
      %p456 = scmp.eq.s32.totalorder %s42, 3
      %p457 = por %p455, %p456
      %p459 = scmp.ne.s32.totalorder %s442, %s458
      %p460 = scmp.eq.s32.totalorder %s42, 0
      %p461 = por %p459, %p460
      %s462 = ssub.s32 %s44, %s51
      %p463 = scmp.eq.s32.totalorder %s462, 0
      %s465 = sadd.s32 %s464, 1
      %s466 = scalar_select %p463, %s464, %s465
      %p469 = pneg %p463
      %p470 = scmp.eq.s32.totalorder %s36, 3
      %p471 = por %p469, %p470
      %p472 = scmp.ne.s32.totalorder %s464, %s467
      %p473 = scmp.eq.s32.totalorder %s36, 0
      %p474 = por %p472, %p473
      %p475 = scmp.ne.s32.totalorder %s464, %s467
      %p476 = scmp.eq.s32.totalorder %s41, 3
      %p477 = por %p475, %p476
      %p478 = scmp.ne.s32.totalorder %s467, %s468
      %p479 = scmp.eq.s32.totalorder %s41, 0
      %p480 = por %p478, %p479
      %p481 = scmp.ne.s32.totalorder %s467, %s468
      %p482 = scmp.eq.s32.totalorder %s42, 3
      %p483 = por %p481, %p482
      %p485 = scmp.ne.s32.totalorder %s468, %s484
      %p486 = scmp.eq.s32.totalorder %s42, 0
      %p487 = por %p485, %p486
      %s488 = ssub.s32 %s44, %s51
      %p489 = scmp.eq.s32.totalorder %s488, 0
      %s491 = sadd.s32 %s490, 1
      %s492 = scalar_select %p489, %s490, %s491
      %p495 = pneg %p489
      %p496 = scmp.eq.s32.totalorder %s36, 3
      %p497 = por %p495, %p496
      %p498 = scmp.ne.s32.totalorder %s490, %s493
      %p499 = scmp.eq.s32.totalorder %s36, 0
      %p500 = por %p498, %p499
      %p501 = scmp.ne.s32.totalorder %s490, %s493
      %p502 = scmp.eq.s32.totalorder %s41, 3
      %p503 = por %p501, %p502
      %p504 = scmp.ne.s32.totalorder %s493, %s494
      %p505 = scmp.eq.s32.totalorder %s41, 0
      %p506 = por %p504, %p505
      %p507 = scmp.ne.s32.totalorder %s493, %s494
      %p508 = scmp.eq.s32.totalorder %s42, 3
      %p509 = por %p507, %p508
      %p511 = scmp.ne.s32.totalorder %s494, %s510
      %p512 = scmp.eq.s32.totalorder %s42, 0
      %p513 = por %p511, %p512
      %s514 = ssub.s32 %s44, %s51
      %p515 = scmp.eq.s32.totalorder %s514, 0
      %s517 = sadd.s32 %s516, 1
      %s518 = scalar_select %p515, %s516, %s517
      %p521 = pneg %p515
      %p522 = scmp.eq.s32.totalorder %s36, 3
      %p523 = por %p521, %p522
      %p524 = scmp.ne.s32.totalorder %s516, %s519
      %p525 = scmp.eq.s32.totalorder %s36, 0
      %p526 = por %p524, %p525
      %p527 = scmp.ne.s32.totalorder %s516, %s519
      %p528 = scmp.eq.s32.totalorder %s41, 3
      %p529 = por %p527, %p528
      %p530 = scmp.ne.s32.totalorder %s519, %s520
      %p531 = scmp.eq.s32.totalorder %s41, 0
      %p532 = por %p530, %p531
      %p533 = scmp.ne.s32.totalorder %s519, %s520
      %p534 = scmp.eq.s32.totalorder %s42, 3
      %p535 = por %p533, %p534
      %p537 = scmp.ne.s32.totalorder %s520, %s536
      %p538 = scmp.eq.s32.totalorder %s42, 0
      %p539 = por %p537, %p538
      %s540 = ssub.s32 %s44, %s51
      %p541 = scmp.eq.s32.totalorder %s540, 0
      %s543 = sadd.s32 %s542, 1
      %s544 = scalar_select %p541, %s542, %s543
      %p547 = pneg %p541
      %p548 = scmp.eq.s32.totalorder %s36, 3
      %p549 = por %p547, %p548
      %p550 = scmp.ne.s32.totalorder %s542, %s545
      %p551 = scmp.eq.s32.totalorder %s36, 0
      %p552 = por %p550, %p551
      %p553 = scmp.ne.s32.totalorder %s542, %s545
      %p554 = scmp.eq.s32.totalorder %s41, 3
      %p555 = por %p553, %p554
      %p556 = scmp.ne.s32.totalorder %s545, %s546
      %p557 = scmp.eq.s32.totalorder %s41, 0
      %p558 = por %p556, %p557
      %p559 = scmp.ne.s32.totalorder %s545, %s546
      %p560 = scmp.eq.s32.totalorder %s42, 3
      %p561 = por %p559, %p560
      %p563 = scmp.ne.s32.totalorder %s546, %s562
      %p564 = scmp.eq.s32.totalorder %s42, 0
      %p565 = por %p563, %p564
      %s566 = ssub.s32 %s43, %s55
      %p567 = scmp.eq.s32.totalorder %s566, 0
      %s569 = sadd.s32 %s568, 1
      %s570 = scalar_select %p567, %s568, %s569
      %p573 = pneg %p567
      %p574 = scmp.eq.s32.totalorder %s36, 3
      %p575 = por %p573, %p574
      %p576 = scmp.ne.s32.totalorder %s568, %s571
      %p577 = scmp.eq.s32.totalorder %s36, 0
      %p578 = por %p576, %p577
      %p579 = scmp.ne.s32.totalorder %s568, %s571
      %p580 = scmp.eq.s32.totalorder %s41, 3
      %p581 = por %p579, %p580
      %p582 = scmp.ne.s32.totalorder %s571, %s572
      %p583 = scmp.eq.s32.totalorder %s41, 0
      %p584 = por %p582, %p583
      %p585 = scmp.ne.s32.totalorder %s571, %s572
      %p586 = scmp.eq.s32.totalorder %s42, 3
      %p587 = por %p585, %p586
      %p589 = scmp.ne.s32.totalorder %s572, %s588
      %p590 = scmp.eq.s32.totalorder %s42, 0
      %p591 = por %p589, %p590
      %p592 = scmp.le.s32.totalorder 1, %s36
      %p593 = scmp.lt.s32.totalorder %s36, 5
      %p594 = pnand %p592, %p593
      %p595 = pneg %p594
      // Predicated region
      $region9: #{tpu_custom_call.1} parent=5 // pred_check
        _
      $region10: #{tpu_custom_call.1} parent=5 // pred_check_branch
        %597 = sbr.rel (%p594) target = $region12
      $region11: #{tpu_custom_call.1} parent=5 // pred_region
        %s598 = ssub.s32 %s36, 1
        // Predicated region
        $region13: #{tpu_custom_call.1} parent=11 // pred_check
          %p599 = pneg %p121
        $region14: #{tpu_custom_call.1} parent=11 // pred_check_branch
          %601 = sbr.rel (%p599) target = $region16
        $region15: #{tpu_custom_call.1} parent=11 // pred_region
          %603 = vsyncadd [#allocation6], 0
          %s605 = sshll.u32 %s2, 4
          %s606 = int_to_ptr.hbm [resolvable:$true] %s605
          %s607 = sshll.u32 [#allocation7], 4
          %s608 = int_to_ptr.vmem [resolvable:$true] %s607
          %610 = dma.hbm_to_vmem [thread:$0]  %s606, 128, %s608, [#allocation6]
        $region16: #{tpu_custom_call.1} parent=11 // pred_fallthru
          _
        // Predicated region
        $region17: #{tpu_custom_call.1} parent=11 // pred_check
          %p611 = pneg %p142
        $region18: #{tpu_custom_call.1} parent=11 // pred_check_branch
          %613 = sbr.rel (%p611) target = $region20
        $region19: #{tpu_custom_call.1} parent=11 // pred_region
          %615 = vsyncadd [#allocation9], 0
          %s617 = sshll.u32 %s3, 4
          %s618 = int_to_ptr.hbm [resolvable:$true] %s617
          %s619 = sshll.u32 [#allocation8], 4
          %s620 = int_to_ptr.vmem [resolvable:$true] %s619
          %622 = dma.hbm_to_vmem [thread:$0]  %s618, 128, %s620, [#allocation9]
        $region20: #{tpu_custom_call.1} parent=11 // pred_fallthru
          _
      $region12: #{tpu_custom_call.1} parent=5 // pred_fallthru
        _
      %p623 = scmp.lt.s32.totalorder %s36, 4
      // Predicated region
      $region21: #{tpu_custom_call.1} parent=5 // pred_check
        %p624 = pneg %p623
      $region22: #{tpu_custom_call.1} parent=5 // pred_check_branch
        %626 = sbr.rel (%p624) target = $region24
      $region23: #{tpu_custom_call.1} parent=5 // pred_region
        // Predicated region
        $region25: #{tpu_custom_call.1} parent=23 // pred_check
          %p627 = pneg %p68
        $region26: #{tpu_custom_call.1} parent=23 // pred_check_branch
          %629 = sbr.rel (%p627) target = $region28
        $region27: #{tpu_custom_call.1} parent=23 // pred_region
          %s630 = sand.u32 %s36, 1
          %s631 = scalar_lea.sflag [#allocation3], %s630
          %s632 = sand.u32 %s58, 1
          %s633 = smul.addr %s632, 8
          %s634 = scalar_lea.vmem [#allocation2], %s633
          %636 = vsyncadd %s631, 0
          %s637 = smul.addr %s43, 8
          %s638 = scalar_lea.hbm %s0, %s637
          %s640 = sshll.u32 %s638, 4
          %s641 = int_to_ptr.hbm [resolvable:$true] %s640
          %s642 = sshll.u32 %s634, 4
          %s643 = int_to_ptr.vmem [resolvable:$true] %s642
          %645 = dma.hbm_to_vmem [thread:$0]  %s641, 128, %s643, %s631
        $region28: #{tpu_custom_call.1} parent=23 // pred_fallthru
          _
        // Predicated region
        $region29: #{tpu_custom_call.1} parent=23 // pred_check
          %p646 = pneg %p94
        $region30: #{tpu_custom_call.1} parent=23 // pred_check_branch
          %648 = sbr.rel (%p646) target = $region32
        $region31: #{tpu_custom_call.1} parent=23 // pred_region
          %s649 = sand.u32 %s36, 1
          %s650 = scalar_lea.sflag [#allocation6], %s649
          %s651 = sand.u32 %s84, 1
          %s652 = smul.addr %s651, 8
          %s653 = scalar_lea.vmem [#allocation5], %s652
          %655 = vsyncadd %s650, 0
          %s656 = smul.addr %s43, 8
          %s657 = scalar_lea.hbm %s1, %s656
          %s659 = sshll.u32 %s657, 4
          %s660 = int_to_ptr.hbm [resolvable:$true] %s659
          %s661 = sshll.u32 %s653, 4
          %s662 = int_to_ptr.vmem [resolvable:$true] %s661
          %664 = dma.hbm_to_vmem [thread:$0]  %s660, 128, %s662, %s650
        $region32: #{tpu_custom_call.1} parent=23 // pred_fallthru
          _
        // Predicated region
        $region33: #{tpu_custom_call.1} parent=23 // pred_check
          %p665 = pneg %p162
        $region34: #{tpu_custom_call.1} parent=23 // pred_check_branch
          %667 = sbr.rel (%p665) target = $region36
        $region35: #{tpu_custom_call.1} parent=23 // pred_region
          %p668 = scmp.lt.s32.totalorder %s44, 1
          %s669 = scalar_select %p668, %s44, 1
          %s670 = smul.addr %s669, 4
          %s671 = smul.addr %s670, 8
          %s672 = scalar_lea.vmem %s4, %s671
        $region36: #{tpu_custom_call.1} parent=23 // pred_fallthru
          _
        // Predicated region
        $region37: #{tpu_custom_call.1} parent=23 // pred_check
          %p673 = pneg %p188
        $region38: #{tpu_custom_call.1} parent=23 // pred_check_branch
          %675 = sbr.rel (%p673) target = $region40
        $region39: #{tpu_custom_call.1} parent=23 // pred_region
          %p676 = scmp.lt.s32.totalorder %s44, 1
          %s677 = scalar_select %p676, %s44, 1
          %s678 = scalar_lea.vmem %s5, %s677
        $region40: #{tpu_custom_call.1} parent=23 // pred_fallthru
          _
        // Predicated region
        $region41: #{tpu_custom_call.1} parent=23 // pred_check
          %p679 = pneg %p214
        $region42: #{tpu_custom_call.1} parent=23 // pred_check_branch
          %681 = sbr.rel (%p679) target = $region44
        $region43: #{tpu_custom_call.1} parent=23 // pred_region
          %p682 = scmp.lt.s32.totalorder %s44, 1
          %s683 = scalar_select %p682, %s44, 1
          %s684 = smul.addr %s683, 4
          %s685 = smul.addr %s684, 8
          %s686 = scalar_lea.vmem %s6, %s685
        $region44: #{tpu_custom_call.1} parent=23 // pred_fallthru
          _
        // Predicated region
        $region45: #{tpu_custom_call.1} parent=23 // pred_check
          %p687 = pneg %p240
        $region46: #{tpu_custom_call.1} parent=23 // pred_check_branch
          %689 = sbr.rel (%p687) target = $region48
        $region47: #{tpu_custom_call.1} parent=23 // pred_region
          %p690 = scmp.lt.s32.totalorder %s44, 1
          %s691 = scalar_select %p690, %s44, 1
          %s692 = scalar_lea.vmem %s7, %s691
        $region48: #{tpu_custom_call.1} parent=23 // pred_fallthru
          _
        // Predicated region
        $region49: #{tpu_custom_call.1} parent=23 // pred_check
          %p693 = pneg %p266
        $region50: #{tpu_custom_call.1} parent=23 // pred_check_branch
          %695 = sbr.rel (%p693) target = $region52
        $region51: #{tpu_custom_call.1} parent=23 // pred_region
          %p696 = scmp.lt.s32.totalorder %s44, 1
          %s697 = scalar_select %p696, %s44, 1
          %s698 = smul.addr %s697, 4
          %s699 = smul.addr %s698, 8
          %s700 = scalar_lea.vmem %s8, %s699
        $region52: #{tpu_custom_call.1} parent=23 // pred_fallthru
          _
        // Predicated region
        $region53: #{tpu_custom_call.1} parent=23 // pred_check
          %p701 = pneg %p292
        $region54: #{tpu_custom_call.1} parent=23 // pred_check_branch
          %703 = sbr.rel (%p701) target = $region56
        $region55: #{tpu_custom_call.1} parent=23 // pred_region
          %p704 = scmp.lt.s32.totalorder %s44, 1
          %s705 = scalar_select %p704, %s44, 1
          %s706 = scalar_lea.vmem %s9, %s705
        $region56: #{tpu_custom_call.1} parent=23 // pred_fallthru
          _
        // Predicated region
        $region57: #{tpu_custom_call.1} parent=23 // pred_check
          %p707 = pneg %p318
        $region58: #{tpu_custom_call.1} parent=23 // pred_check_branch
          %709 = sbr.rel (%p707) target = $region60
        $region59: #{tpu_custom_call.1} parent=23 // pred_region
          %s710 = sand.u32 %s36, 1
          %s711 = scalar_lea.sflag [#allocation3], %s710
          %s712 = sand.u32 %s308, 1
          %s713 = smul.addr %s712, 32
          %s714 = scalar_lea.vmem [#allocation10], %s713
          %716 = vsyncadd %s711, 0
          %s717 = smul.addr %s44, 4
          %s718 = smul.addr %s717, 8
          %s719 = scalar_lea.hbm %s10, %s718
          %s720 = sshll.u32 %s719, 4
          %s721 = int_to_ptr.hbm [resolvable:$true] %s720
          %s722 = sshll.u32 %s714, 4
          %s723 = int_to_ptr.vmem [resolvable:$true] %s722
          %728 = dma.hbm_to_vmem [thread:$0]  %s721, 512, %s723, %s711, 128, 128, 8
        $region60: #{tpu_custom_call.1} parent=23 // pred_fallthru
          _
        // Predicated region
        $region61: #{tpu_custom_call.1} parent=23 // pred_check
          %p729 = pneg %p344
        $region62: #{tpu_custom_call.1} parent=23 // pred_check_branch
          %731 = sbr.rel (%p729) target = $region64
        $region63: #{tpu_custom_call.1} parent=23 // pred_region
          %p732 = scmp.lt.s32.totalorder %s44, 1
          %s733 = scalar_select %p732, %s44, 1
          %s734 = scalar_lea.vmem %s11, %s733
        $region64: #{tpu_custom_call.1} parent=23 // pred_fallthru
          _
        // Predicated region
        $region65: #{tpu_custom_call.1} parent=23 // pred_check
          %p735 = pneg %p370
        $region66: #{tpu_custom_call.1} parent=23 // pred_check_branch
          %737 = sbr.rel (%p735) target = $region68
        $region67: #{tpu_custom_call.1} parent=23 // pred_region
          %p738 = scmp.lt.s32.totalorder %s44, 1
          %s739 = scalar_select %p738, %s44, 1
          %s740 = scalar_lea.vmem %s12, %s739
        $region68: #{tpu_custom_call.1} parent=23 // pred_fallthru
          _
        // Predicated region
        $region69: #{tpu_custom_call.1} parent=23 // pred_check
          %p741 = pneg %p396
        $region70: #{tpu_custom_call.1} parent=23 // pred_check_branch
          %743 = sbr.rel (%p741) target = $region72
        $region71: #{tpu_custom_call.1} parent=23 // pred_region
          %s744 = sand.u32 %s36, 1
          %s745 = scalar_lea.sflag [#allocation6], %s744
          %s746 = sand.u32 %s386, 1
          %s747 = scalar_lea.vmem [#allocation11], %s746
          %749 = vsyncadd %s745, 0
          %s750 = scalar_lea.hbm %s13, %s44
          %s752 = sshll.u32 %s750, 4
          %s753 = int_to_ptr.hbm [resolvable:$true] %s752
          %s754 = sshll.u32 %s747, 4
          %s755 = int_to_ptr.vmem [resolvable:$true] %s754
          %757 = dma.hbm_to_vmem [thread:$0]  %s753, 16, %s755, %s745
        $region72: #{tpu_custom_call.1} parent=23 // pred_fallthru
          _
        // Predicated region
        $region73: #{tpu_custom_call.1} parent=23 // pred_check
          %p758 = pneg %p422
        $region74: #{tpu_custom_call.1} parent=23 // pred_check_branch
          %760 = sbr.rel (%p758) target = $region76
        $region75: #{tpu_custom_call.1} parent=23 // pred_region
          %s761 = sand.u32 %s36, 1
          %s762 = scalar_lea.sflag [#allocation3], %s761
          %s763 = sand.u32 %s412, 1
          %s764 = smul.addr %s763, 32
          %s765 = scalar_lea.vmem [#allocation12], %s764
          %767 = vsyncadd %s762, 0
          %s768 = smul.addr %s44, 4
          %s769 = smul.addr %s768, 8
          %s770 = scalar_lea.hbm %s14, %s769
          %s771 = sshll.u32 %s770, 4
          %s772 = int_to_ptr.hbm [resolvable:$true] %s771
          %s773 = sshll.u32 %s765, 4
          %s774 = int_to_ptr.vmem [resolvable:$true] %s773
          %779 = dma.hbm_to_vmem [thread:$0]  %s772, 512, %s774, %s762, 128, 128, 8
        $region76: #{tpu_custom_call.1} parent=23 // pred_fallthru
          _
        // Predicated region
        $region77: #{tpu_custom_call.1} parent=23 // pred_check
          %p780 = pneg %p448
        $region78: #{tpu_custom_call.1} parent=23 // pred_check_branch
          %782 = sbr.rel (%p780) target = $region80
        $region79: #{tpu_custom_call.1} parent=23 // pred_region
          %p783 = scmp.lt.s32.totalorder %s44, 1
          %s784 = scalar_select %p783, %s44, 1
          %s785 = scalar_lea.vmem %s15, %s784
        $region80: #{tpu_custom_call.1} parent=23 // pred_fallthru
          _
        // Predicated region
        $region81: #{tpu_custom_call.1} parent=23 // pred_check
          %p786 = pneg %p474
        $region82: #{tpu_custom_call.1} parent=23 // pred_check_branch
          %788 = sbr.rel (%p786) target = $region84
        $region83: #{tpu_custom_call.1} parent=23 // pred_region
          %p789 = scmp.lt.s32.totalorder %s44, 1
          %s790 = scalar_select %p789, %s44, 1
          %s791 = smul.addr %s790, 8
          %s792 = smul.addr %s791, 8
          %s793 = scalar_lea.vmem %s16, %s792
        $region84: #{tpu_custom_call.1} parent=23 // pred_fallthru
          _
        // Predicated region
        $region85: #{tpu_custom_call.1} parent=23 // pred_check
          %p794 = pneg %p500
        $region86: #{tpu_custom_call.1} parent=23 // pred_check_branch
          %796 = sbr.rel (%p794) target = $region88
        $region87: #{tpu_custom_call.1} parent=23 // pred_region
          %p797 = scmp.lt.s32.totalorder %s44, 1
          %s798 = scalar_select %p797, %s44, 1
          %s799 = scalar_lea.vmem %s17, %s798
        $region88: #{tpu_custom_call.1} parent=23 // pred_fallthru
          _
        // Predicated region
        $region89: #{tpu_custom_call.1} parent=23 // pred_check
          %p800 = pneg %p526
        $region90: #{tpu_custom_call.1} parent=23 // pred_check_branch
          %802 = sbr.rel (%p800) target = $region92
        $region91: #{tpu_custom_call.1} parent=23 // pred_region
          %p803 = scmp.lt.s32.totalorder %s44, 1
          %s804 = scalar_select %p803, %s44, 1
          %s805 = scalar_lea.vmem %s18, %s804
        $region92: #{tpu_custom_call.1} parent=23 // pred_fallthru
          _
        // Predicated region
        $region93: #{tpu_custom_call.1} parent=23 // pred_check
          %p806 = pneg %p552
        $region94: #{tpu_custom_call.1} parent=23 // pred_check_branch
          %808 = sbr.rel (%p806) target = $region96
        $region95: #{tpu_custom_call.1} parent=23 // pred_region
          %s809 = sand.u32 %s36, 1
          %s810 = scalar_lea.sflag [#allocation6], %s809
          %s811 = sand.u32 %s542, 1
          %s812 = scalar_lea.vmem [#allocation13], %s811
          %814 = vsyncadd %s810, 0
          %s815 = scalar_lea.hbm %s19, %s44
          %s817 = sshll.u32 %s815, 4
          %s818 = int_to_ptr.hbm [resolvable:$true] %s817
          %s819 = sshll.u32 %s812, 4
          %s820 = int_to_ptr.vmem [resolvable:$true] %s819
          %822 = dma.hbm_to_vmem [thread:$0]  %s818, 16, %s820, %s810
        $region96: #{tpu_custom_call.1} parent=23 // pred_fallthru
          _
      $region24: #{tpu_custom_call.1} parent=5 // pred_fallthru
        _
      %p823 = scmp.le.s32.totalorder 1, %s36
      %p824 = scmp.lt.s32.totalorder %s36, 5
      %p825 = pnand %p823, %p824
      %p826 = pneg %p825
      // Predicated region
      $region97: #{tpu_custom_call.1} parent=5 // pred_check
        _
      $region98: #{tpu_custom_call.1} parent=5 // pred_check_branch
        %828 = sbr.rel (%p825) target = $region100
      $region99: #{tpu_custom_call.1} parent=5 // pred_region
        %s829 = ssub.s32 %s36, 1
        %s830 = sand.u32 %s41, 1
        %s831 = scalar_lea.sflag [#allocation3], %s830
        %s832 = sand.u32 %s61, 1
        %s833 = smul.addr %s832, 8
        %s834 = scalar_lea.vmem [#allocation2], %s833
        // Predicated region
        $region101: #{tpu_custom_call.1} parent=99 // pred_check
          %p835 = pneg %p74
        $region102: #{tpu_custom_call.1} parent=99 // pred_check_branch
          %837 = sbr.rel (%p835) target = $region104
        $region103: #{tpu_custom_call.1} parent=99 // pred_region
          %839 = dma.done %s831, 128
        $region104: #{tpu_custom_call.1} parent=99 // pred_fallthru
          _
        %s840 = sand.u32 %s41, 1
        %s841 = scalar_lea.sflag [#allocation6], %s840
        %s842 = sand.u32 %s87, 1
        %s843 = smul.addr %s842, 8
        %s844 = scalar_lea.vmem [#allocation5], %s843
        // Predicated region
        $region105: #{tpu_custom_call.1} parent=99 // pred_check
          %p845 = pneg %p100
        $region106: #{tpu_custom_call.1} parent=99 // pred_check_branch
          %847 = sbr.rel (%p845) target = $region108
        $region107: #{tpu_custom_call.1} parent=99 // pred_region
          %849 = dma.done %s841, 128
        $region108: #{tpu_custom_call.1} parent=99 // pred_fallthru
          _
        // Predicated region
        $region109: #{tpu_custom_call.1} parent=99 // pred_check
          %p850 = pneg %p121
        $region110: #{tpu_custom_call.1} parent=99 // pred_check_branch
          %852 = sbr.rel (%p850) target = $region112
        $region111: #{tpu_custom_call.1} parent=99 // pred_region
          %854 = dma.done [#allocation6], 128
        $region112: #{tpu_custom_call.1} parent=99 // pred_fallthru
          _
        // Predicated region
        $region113: #{tpu_custom_call.1} parent=99 // pred_check
          %p855 = pneg %p142
        $region114: #{tpu_custom_call.1} parent=99 // pred_check_branch
          %857 = sbr.rel (%p855) target = $region116
        $region115: #{tpu_custom_call.1} parent=99 // pred_region
          %859 = dma.done [#allocation9], 128
        $region116: #{tpu_custom_call.1} parent=99 // pred_fallthru
          _
        %s860 = sand.u32 %s41, 1
        %s861 = scalar_lea.sflag [#allocation3], %s860
        %s862 = sand.u32 %s311, 1
        %s863 = smul.addr %s862, 32
        %s864 = scalar_lea.vmem [#allocation10], %s863
        // Predicated region
        $region117: #{tpu_custom_call.1} parent=99 // pred_check
          %p865 = pneg %p324
        $region118: #{tpu_custom_call.1} parent=99 // pred_check_branch
          %867 = sbr.rel (%p865) target = $region120
        $region119: #{tpu_custom_call.1} parent=99 // pred_region
          %869 = dma.done %s861, 512
        $region120: #{tpu_custom_call.1} parent=99 // pred_fallthru
          _
        %s870 = sand.u32 %s41, 1
        %s871 = scalar_lea.sflag [#allocation6], %s870
        %s872 = sand.u32 %s389, 1
        %s873 = scalar_lea.vmem [#allocation11], %s872
        // Predicated region
        $region121: #{tpu_custom_call.1} parent=99 // pred_check
          %p874 = pneg %p402
        $region122: #{tpu_custom_call.1} parent=99 // pred_check_branch
          %876 = sbr.rel (%p874) target = $region124
        $region123: #{tpu_custom_call.1} parent=99 // pred_region
          %878 = dma.done %s871, 16
        $region124: #{tpu_custom_call.1} parent=99 // pred_fallthru
          _
        %s879 = sand.u32 %s41, 1
        %s880 = scalar_lea.sflag [#allocation3], %s879
        %s881 = sand.u32 %s415, 1
        %s882 = smul.addr %s881, 32
        %s883 = scalar_lea.vmem [#allocation12], %s882
        // Predicated region
        $region125: #{tpu_custom_call.1} parent=99 // pred_check
          %p884 = pneg %p428
        $region126: #{tpu_custom_call.1} parent=99 // pred_check_branch
          %886 = sbr.rel (%p884) target = $region128
        $region127: #{tpu_custom_call.1} parent=99 // pred_region
          %888 = dma.done %s880, 512
        $region128: #{tpu_custom_call.1} parent=99 // pred_fallthru
          _
        %s889 = sand.u32 %s41, 1
        %s890 = scalar_lea.sflag [#allocation6], %s889
        %s891 = sand.u32 %s545, 1
        %s892 = scalar_lea.vmem [#allocation13], %s891
        // Predicated region
        $region129: #{tpu_custom_call.1} parent=99 // pred_check
          %p893 = pneg %p558
        $region130: #{tpu_custom_call.1} parent=99 // pred_check_branch
          %895 = sbr.rel (%p893) target = $region132
        $region131: #{tpu_custom_call.1} parent=99 // pred_region
          %897 = dma.done %s890, 16
        $region132: #{tpu_custom_call.1} parent=99 // pred_fallthru
          _
        %s898 = sand.u32 %s41, 1
        %s899 = scalar_lea.sflag [#allocation3], %s898
        %s900 = sand.u32 %s61, 1
        %s901 = smul.addr %s900, 8
        %s902 = scalar_lea.vmem [#allocation2], %s901
        %p903 = pneg %p74
        %p904 = pneg %p71
        %s905 = sand.u32 %s41, 1
        %s906 = scalar_lea.sflag [#allocation6], %s905
        %s907 = sand.u32 %s87, 1
        %s908 = smul.addr %s907, 8
        %s909 = scalar_lea.vmem [#allocation5], %s908
        %p910 = pneg %p100
        %p911 = pneg %p97
        %p912 = pneg %p121
        %p913 = pneg %p118
        %p914 = pneg %p142
        %p915 = pneg %p139
        %p916 = scmp.lt.s32.totalorder %s46, 1
        %s917 = scalar_select %p916, %s46, 1
        %s918 = smul.addr %s917, 4
        %s919 = smul.addr %s918, 8
        %s920 = scalar_lea.vmem %s4, %s919
        %p921 = pneg %p168
        %p922 = pneg %p165
        %p923 = scmp.lt.s32.totalorder %s46, 1
        %s924 = scalar_select %p923, %s46, 1
        %s925 = scalar_lea.vmem %s5, %s924
        %p926 = pneg %p194
        %p927 = pneg %p191
        %p928 = scmp.lt.s32.totalorder %s46, 1
        %s929 = scalar_select %p928, %s46, 1
        %s930 = smul.addr %s929, 4
        %s931 = smul.addr %s930, 8
        %s932 = scalar_lea.vmem %s6, %s931
        %p933 = pneg %p220
        %p934 = pneg %p217
        %p935 = scmp.lt.s32.totalorder %s46, 1
        %s936 = scalar_select %p935, %s46, 1
        %s937 = scalar_lea.vmem %s7, %s936
        %p938 = pneg %p246
        %p939 = pneg %p243
        %p940 = scmp.lt.s32.totalorder %s46, 1
        %s941 = scalar_select %p940, %s46, 1
        %s942 = smul.addr %s941, 4
        %s943 = smul.addr %s942, 8
        %s944 = scalar_lea.vmem %s8, %s943
        %p945 = pneg %p272
        %p946 = pneg %p269
        %p947 = scmp.lt.s32.totalorder %s46, 1
        %s948 = scalar_select %p947, %s46, 1
        %s949 = scalar_lea.vmem %s9, %s948
        %p950 = pneg %p298
        %p951 = pneg %p295
        %s952 = sand.u32 %s41, 1
        %s953 = scalar_lea.sflag [#allocation3], %s952
        %s954 = sand.u32 %s311, 1
        %s955 = smul.addr %s954, 32
        %s956 = scalar_lea.vmem [#allocation10], %s955
        %p957 = pneg %p324
        %p958 = pneg %p321
        %p959 = scmp.lt.s32.totalorder %s46, 1
        %s960 = scalar_select %p959, %s46, 1
        %s961 = scalar_lea.vmem %s11, %s960
        %p962 = pneg %p350
        %p963 = pneg %p347
        %p964 = scmp.lt.s32.totalorder %s46, 1
        %s965 = scalar_select %p964, %s46, 1
        %s966 = scalar_lea.vmem %s12, %s965
        %p967 = pneg %p376
        %p968 = pneg %p373
        %s969 = sand.u32 %s41, 1
        %s970 = scalar_lea.sflag [#allocation6], %s969
        %s971 = sand.u32 %s389, 1
        %s972 = scalar_lea.vmem [#allocation11], %s971
        %p973 = pneg %p402
        %p974 = pneg %p399
        %s975 = sand.u32 %s41, 1
        %s976 = scalar_lea.sflag [#allocation3], %s975
        %s977 = sand.u32 %s415, 1
        %s978 = smul.addr %s977, 32
        %s979 = scalar_lea.vmem [#allocation12], %s978
        %p980 = pneg %p428
        %p981 = pneg %p425
        %p982 = scmp.lt.s32.totalorder %s46, 1
        %s983 = scalar_select %p982, %s46, 1
        %s984 = scalar_lea.vmem %s15, %s983
        %p985 = pneg %p454
        %p986 = pneg %p451
        %p987 = scmp.lt.s32.totalorder %s46, 1
        %s988 = scalar_select %p987, %s46, 1
        %s989 = smul.addr %s988, 8
        %s990 = smul.addr %s989, 8
        %s991 = scalar_lea.vmem %s16, %s990
        %p992 = pneg %p480
        %p993 = pneg %p477
        %p994 = scmp.lt.s32.totalorder %s46, 1
        %s995 = scalar_select %p994, %s46, 1
        %s996 = scalar_lea.vmem %s17, %s995
        %p997 = pneg %p506
        %p998 = pneg %p503
        %p999 = scmp.lt.s32.totalorder %s46, 1
        %s1000 = scalar_select %p999, %s46, 1
        %s1001 = scalar_lea.vmem %s18, %s1000
        %p1002 = pneg %p532
        %p1003 = pneg %p529
        %s1004 = sand.u32 %s41, 1
        %s1005 = scalar_lea.sflag [#allocation6], %s1004
        %s1006 = sand.u32 %s545, 1
        %s1007 = scalar_lea.vmem [#allocation13], %s1006
        %p1008 = pneg %p558
        %p1009 = pneg %p555
        %p1010 = pneg %p584
        %p1011 = pneg %p581
        %s1012 = sand.u32 %s571, 1
        %s1013 = scalar_lea.sflag [#allocation4], %s1012
        %s1014 = sand.u32 %s571, 1
        %s1015 = smul.addr %s1014, 8
        %s1016 = scalar_lea.vmem [#allocation14], %s1015
        %p1017 = scmp.lt.s32.totalorder %s46, 1
        %s1018 = scalar_select %p1017, %s46, 1
        %s1019 = smul.addr %s1018, 4
        %s1020 = smul.addr %s1019, 8
        %s1021 = scalar_lea.vmem %s4, %s1020
        %p1022 = scmp.lt.s32.totalorder %s46, 1
        %s1023 = scalar_select %p1022, %s46, 1
        %s1024 = scalar_lea.vmem %s5, %s1023
        %p1025 = scmp.lt.s32.totalorder %s46, 1
        %s1026 = scalar_select %p1025, %s46, 1
        %s1027 = smul.addr %s1026, 4
        %s1028 = smul.addr %s1027, 8
        %s1029 = scalar_lea.vmem %s6, %s1028
        %p1030 = scmp.lt.s32.totalorder %s46, 1
        %s1031 = scalar_select %p1030, %s46, 1
        %s1032 = scalar_lea.vmem %s7, %s1031
        %p1033 = scmp.lt.s32.totalorder %s46, 1
        %s1034 = scalar_select %p1033, %s46, 1
        %s1035 = smul.addr %s1034, 4
        %s1036 = smul.addr %s1035, 8
        %s1037 = scalar_lea.vmem %s8, %s1036
        %p1038 = scmp.lt.s32.totalorder %s46, 1
        %s1039 = scalar_select %p1038, %s46, 1
        %s1040 = scalar_lea.vmem %s9, %s1039
        %p1041 = scmp.lt.s32.totalorder %s46, 1
        %s1042 = scalar_select %p1041, %s46, 1
        %s1043 = scalar_lea.vmem %s11, %s1042
        %p1044 = scmp.lt.s32.totalorder %s46, 1
        %s1045 = scalar_select %p1044, %s46, 1
        %s1046 = scalar_lea.vmem %s12, %s1045
        %p1047 = scmp.lt.s32.totalorder %s46, 1
        %s1048 = scalar_select %p1047, %s46, 1
        %s1049 = scalar_lea.vmem %s15, %s1048
        %p1050 = scmp.lt.s32.totalorder %s46, 1
        %s1051 = scalar_select %p1050, %s46, 1
        %s1052 = smul.addr %s1051, 8
        %s1053 = smul.addr %s1052, 8
        %s1054 = scalar_lea.vmem %s16, %s1053
        %p1055 = scmp.lt.s32.totalorder %s46, 1
        %s1056 = scalar_select %p1055, %s46, 1
        %s1057 = scalar_lea.vmem %s17, %s1056
        %p1058 = scmp.lt.s32.totalorder %s46, 1
        %s1059 = scalar_select %p1058, %s46, 1
        %s1060 = scalar_lea.vmem %s18, %s1059
        %v1061 = vld [vmem:[%s1021] sm:$0xff]
        %v1062 = vld [vmem:[%s1021 + $0x8] sm:$0xff]
        %v1063 = vld [vmem:[%s1021 + $0x10] sm:$0xff]
        %v1064 = vld [vmem:[%s1021 + $0x18] sm:$0xff]
        %v1065 = vld [vmem:[%s1024] sm:$0x1]
        %v1066 = vld [vmem:[%s1029] sm:$0xff]
        %v1067 = vld [vmem:[%s1029 + $0x8] sm:$0xff]
        %v1068 = vld [vmem:[%s1029 + $0x10] sm:$0xff]
        %v1069 = vld [vmem:[%s1029 + $0x18] sm:$0xff]
        %v1070 = vld [vmem:[%s1032] sm:$0x1]
        %v1071 = vld [vmem:[%s1037] sm:$0xff]
        %v1072 = vld [vmem:[%s1037 + $0x8] sm:$0xff]
        %v1073 = vld [vmem:[%s1037 + $0x10] sm:$0xff]
        %v1074 = vld [vmem:[%s1037 + $0x18] sm:$0xff]
        %v1075 = vld [vmem:[%s1040] sm:$0x1]
        %v1076 = vld [vmem:[%s864] sm:$0xff]
        %v1077 = vld [vmem:[%s864 + $0x8] sm:$0xff]
        %v1078 = vld [vmem:[%s864 + $0x10] sm:$0xff]
        %v1079 = vld [vmem:[%s864 + $0x18] sm:$0xff]
        %v1080 = vld [vmem:[%s1043] sm:$0x1]
        %v1081 = vld [vmem:[%s1046] sm:$0x1]
        %v1082 = vld [vmem:[%s873] sm:$0x1]
        %v1083 = vld [vmem:[%s883] sm:$0xff]
        %v1084 = vld [vmem:[%s883 + $0x8] sm:$0xff]
        %v1085 = vld [vmem:[%s883 + $0x10] sm:$0xff]
        %v1086 = vld [vmem:[%s883 + $0x18] sm:$0xff]
        %v1087 = vld [vmem:[%s1049] sm:$0x1]
        %v1088 = vld [vmem:[%s1054] sm:$0xff]
        %v1089 = vld [vmem:[%s1054 + $0x8] sm:$0xff]
        %v1090 = vld [vmem:[%s1054 + $0x10] sm:$0xff]
        %v1091 = vld [vmem:[%s1054 + $0x18] sm:$0xff]
        %v1092 = vld [vmem:[%s1054 + $0x20] sm:$0xff]
        %v1093 = vld [vmem:[%s1054 + $0x28] sm:$0xff]
        %v1094 = vld [vmem:[%s1054 + $0x30] sm:$0xff]
        %v1095 = vld [vmem:[%s1054 + $0x38] sm:$0xff]
        %v1096 = vld [vmem:[%s1057] sm:$0x1]
        %v1097 = vld [vmem:[%s1060] sm:$0x1]
        %v1098 = vld [vmem:[%s892] sm:$0x1]
        %p1099 = scmp.eq.s32.totalorder %s46, 0
        // Predicated region
        $region133: #{tpu_custom_call.1} parent=99 // pred_check
          %p1100 = pneg %p1099
        $region134: #{tpu_custom_call.1} parent=99 // pred_check_branch
          %1102 = sbr.rel (%p1100) target = $region136
        $region135: #{tpu_custom_call.1} parent=99 // pred_region
          %v1103 = vld [vmem:[%s834] sm:$0xff]
          %v1104 = vld [vmem:[#allocation7] sm:$0xff]
          %v1105 = vadd.f32 %v1103, %v1104
          %v1106 = vld [vmem:[%s844] sm:$0xff]
          %v1107 = vld [vmem:[#allocation8] sm:$0xff]
          %v1108 = vadd.f32 %v1106, %v1107
          %v1110 = vperm.slane %v1065, 0
          %vm1112 = vcmask 261120
          %v1114 = vsel %vm1112, %v1108, 0
          %1116 = vmatpush.msra.mxu0 0.0
          %1117 = vmatpush.msra.mxu0 0.0
          %1118 = vmatpush.msra.mxu0 0.0
          %1119 = vmatpush.msra.mxu0 0.0
          %1120 = vmatpush.msra.mxu0 0.0
          %1121 = vmatpush.msra.mxu0 0.0
          %1122 = vmatpush.msra.mxu0 0.0
          %1123 = vmatpush.msra.mxu0 0.0
          %1124 = vmatpush.msra.mxu0 0.0
          %1125 = vmatpush.msra.mxu0 0.0
          %1126 = vmatpush.msra.mxu0 0.0
          %1127 = vmatpush.msra.mxu0 0.0
          %1128 = vmatpush.msra.mxu0 %v1064
          %1129 = vmatpush.msra.mxu0 %v1063
          %1130 = vmatpush.msra.mxu0 %v1062
          %1131 = vmatpush.msra.mxu0 %v1061
          %1132 = vmatmul.f32.gmra.mxu0 %v1114
          %v1133 = vpop.f32.mrf.mxu0
          %v1134 = vadd.f32 %v1110, %v1133
          %1135 = vdwg.mxu0
          %v1137 = vperm.slane %v1070, 0
          %v1140 = vsel %vm1112, %v1105, 0
          %1142 = vmatpush.msra.mxu0 0.0
          %1143 = vmatpush.msra.mxu0 0.0
          %1144 = vmatpush.msra.mxu0 0.0
          %1145 = vmatpush.msra.mxu0 0.0
          %1146 = vmatpush.msra.mxu0 0.0
          %1147 = vmatpush.msra.mxu0 0.0
          %1148 = vmatpush.msra.mxu0 0.0
          %1149 = vmatpush.msra.mxu0 0.0
          %1150 = vmatpush.msra.mxu0 0.0
          %1151 = vmatpush.msra.mxu0 0.0
          %1152 = vmatpush.msra.mxu0 0.0
          %1153 = vmatpush.msra.mxu0 0.0
          %1154 = vmatpush.msra.mxu0 %v1069
          %1155 = vmatpush.msra.mxu0 %v1068
          %1156 = vmatpush.msra.mxu0 %v1067
          %1157 = vmatpush.msra.mxu0 %v1066
          %1158 = vmatmul.f32.gmra.mxu0 %v1140
          %v1159 = vpop.f32.mrf.mxu0
          %v1160 = vadd.f32 %v1137, %v1159
          %1161 = vdwg.mxu0
          %vm1162 = vcmask 64512
          %v1164 = vsel %vm1162, %v1134, 0
          %v1167 = vsel %vm1162, %v1160, 0
          %1169 = vmatpush.xpose.msra.mxu0 0.0
          %1170 = vmatpush.xpose.msra.mxu0 0.0
          %1171 = vmatpush.xpose.msra.mxu0 0.0
          %1172 = vmatpush.xpose.msra.mxu0 0.0
          %1173 = vmatpush.xpose.msra.mxu0 0.0
          %1174 = vmatpush.xpose.msra.mxu0 0.0
          %1175 = vmatpush.xpose.msra.mxu0 0.0
          %1176 = vmatpush.xpose.msra.mxu0 0.0
          %1177 = vmatpush.xpose.msra.mxu0 0.0
          %1178 = vmatpush.xpose.msra.mxu0 0.0
          %1179 = vmatpush.xpose.msra.mxu0 0.0
          %1180 = vmatpush.xpose.msra.mxu0 0.0
          %1181 = vmatpush.xpose.msra.mxu0 0.0
          %1182 = vmatpush.xpose.msra.mxu0 0.0
          %1183 = vmatpush.xpose.msra.mxu0 0.0
          %1184 = vmatpush.xpose.msra.mxu0 %v1167
          %1185 = vmatmul.f32.gmra.mxu0 %v1164
          %v1186 = vpop.f32.mrf.mxu0
          %v1187 = vadd.f32 0.0, %v1186
          %1188 = vdwg.mxu0
          %1189 = vrot.lane.b32.xlu0 %v1134, 120
          %v1190 = vpop.permute.xlu0 %1189
          %1191 = vrot.lane.b32.xlu0 %v1160, 120
          %v1192 = vpop.permute.xlu0 %1191
          %v1193 = vsel %vm1162, %v1190, 0
          %v1195 = vsel %vm1162, %v1192, 0
          %1197 = vmatpush.xpose.msra.mxu0 0.0
          %1198 = vmatpush.xpose.msra.mxu0 0.0
          %1199 = vmatpush.xpose.msra.mxu0 0.0
          %1200 = vmatpush.xpose.msra.mxu0 0.0
          %1201 = vmatpush.xpose.msra.mxu0 0.0
          %1202 = vmatpush.xpose.msra.mxu0 0.0
          %1203 = vmatpush.xpose.msra.mxu0 0.0
          %1204 = vmatpush.xpose.msra.mxu0 0.0
          %1205 = vmatpush.xpose.msra.mxu0 0.0
          %1206 = vmatpush.xpose.msra.mxu0 0.0
          %1207 = vmatpush.xpose.msra.mxu0 0.0
          %1208 = vmatpush.xpose.msra.mxu0 0.0
          %1209 = vmatpush.xpose.msra.mxu0 0.0
          %1210 = vmatpush.xpose.msra.mxu0 0.0
          %1211 = vmatpush.xpose.msra.mxu0 0.0
          %1212 = vmatpush.xpose.msra.mxu0 %v1195
          %1213 = vmatmul.f32.gmra.mxu0 %v1193
          %v1214 = vpop.f32.mrf.mxu0
          %v1215 = vadd.f32 0.0, %v1214
          %1216 = vdwg.mxu0
          %1217 = vrot.lane.b32.xlu0 %v1134, 112
          %v1218 = vpop.permute.xlu0 %1217
          %1219 = vrot.lane.b32.xlu0 %v1160, 112
          %v1220 = vpop.permute.xlu0 %1219
          %v1221 = vsel %vm1162, %v1218, 0
          %v1223 = vsel %vm1162, %v1220, 0
          %1225 = vmatpush.xpose.msra.mxu0 0.0
          %1226 = vmatpush.xpose.msra.mxu0 0.0
          %1227 = vmatpush.xpose.msra.mxu0 0.0
          %1228 = vmatpush.xpose.msra.mxu0 0.0
          %1229 = vmatpush.xpose.msra.mxu0 0.0
          %1230 = vmatpush.xpose.msra.mxu0 0.0
          %1231 = vmatpush.xpose.msra.mxu0 0.0
          %1232 = vmatpush.xpose.msra.mxu0 0.0
          %1233 = vmatpush.xpose.msra.mxu0 0.0
          %1234 = vmatpush.xpose.msra.mxu0 0.0
          %1235 = vmatpush.xpose.msra.mxu0 0.0
          %1236 = vmatpush.xpose.msra.mxu0 0.0
          %1237 = vmatpush.xpose.msra.mxu0 0.0
          %1238 = vmatpush.xpose.msra.mxu0 0.0
          %1239 = vmatpush.xpose.msra.mxu0 0.0
          %1240 = vmatpush.xpose.msra.mxu0 %v1223
          %1241 = vmatmul.f32.gmra.mxu0 %v1221
          %v1242 = vpop.f32.mrf.mxu0
          %v1243 = vadd.f32 0.0, %v1242
          %1244 = vdwg.mxu0
          %1245 = vrot.lane.b32.xlu0 %v1134, 104
          %v1246 = vpop.permute.xlu0 %1245
          %1247 = vrot.lane.b32.xlu0 %v1160, 104
          %v1248 = vpop.permute.xlu0 %1247
          %v1249 = vsel %vm1162, %v1246, 0
          %v1251 = vsel %vm1162, %v1248, 0
          %1253 = vmatpush.xpose.msra.mxu0 0.0
          %1254 = vmatpush.xpose.msra.mxu0 0.0
          %1255 = vmatpush.xpose.msra.mxu0 0.0
          %1256 = vmatpush.xpose.msra.mxu0 0.0
          %1257 = vmatpush.xpose.msra.mxu0 0.0
          %1258 = vmatpush.xpose.msra.mxu0 0.0
          %1259 = vmatpush.xpose.msra.mxu0 0.0
          %1260 = vmatpush.xpose.msra.mxu0 0.0
          %1261 = vmatpush.xpose.msra.mxu0 0.0
          %1262 = vmatpush.xpose.msra.mxu0 0.0
          %1263 = vmatpush.xpose.msra.mxu0 0.0
          %1264 = vmatpush.xpose.msra.mxu0 0.0
          %1265 = vmatpush.xpose.msra.mxu0 0.0
          %1266 = vmatpush.xpose.msra.mxu0 0.0
          %1267 = vmatpush.xpose.msra.mxu0 0.0
          %1268 = vmatpush.xpose.msra.mxu0 %v1251
          %1269 = vmatmul.f32.gmra.mxu0 %v1249
          %v1270 = vpop.f32.mrf.mxu0
          %v1271 = vadd.f32 0.0, %v1270
          %1272 = vdwg.mxu0
          %v1273 = vmul.f32 %v1187, 0.35355338
          %v1274 = vmul.f32 %v1215, 0.35355338
          %v1275 = vmul.f32 %v1243, 0.35355338
          %v1276 = vmul.f32 %v1271, 0.35355338
          %v1277 = vsel %vm1162, %v1273, -inf
          %1278 = vmax.xlane.f32.xlu0 %v1277
          %v1279 = vpop.xlane.xlu0 %1278
          %v1280 = vsel %vm1162, %v1274, -inf
          %1281 = vmax.xlane.f32.xlu0 %v1280
          %v1282 = vpop.xlane.xlu0 %1281
          %v1283 = vsel %vm1162, %v1275, -inf
          %1284 = vmax.xlane.f32.xlu0 %v1283
          %v1285 = vpop.xlane.xlu0 %1284
          %v1286 = vsel %vm1162, %v1276, -inf
          %1287 = vmax.xlane.f32.xlu0 %v1286
          %v1288 = vpop.xlane.xlu0 %1287
          %v1289 = vsub.f32 %v1273, %v1279
          %v1290 = vsub.f32 %v1274, %v1282
          %v1291 = vsub.f32 %v1275, %v1285
          %v1292 = vsub.f32 %v1276, %v1288
          %v1293 = vmul.f32 %v1289, 1.442695
          %v1294 = vpow.pop %v1293
          %v1295 = vmul.f32 %v1290, 1.442695
          %v1296 = vpow.pop %v1295
          %v1297 = vmul.f32 %v1291, 1.442695
          %v1298 = vpow.pop %v1297
          %v1299 = vmul.f32 %v1292, 1.442695
          %v1300 = vpow.pop %v1299
          %v1301 = vsel %vm1162, %v1294, 0.0
          %1302 = vadd.xlane.f32.xlu0 %v1301
          %v1303 = vpop.xlane.xlu0 %1302
          %v1304 = vsel %vm1162, %v1296, 0.0
          %1305 = vadd.xlane.f32.xlu0 %v1304
          %v1306 = vpop.xlane.xlu0 %1305
          %v1307 = vsel %vm1162, %v1298, 0.0
          %1308 = vadd.xlane.f32.xlu0 %v1307
          %v1309 = vpop.xlane.xlu0 %1308
          %v1310 = vsel %vm1162, %v1300, 0.0
          %1311 = vadd.xlane.f32.xlu0 %v1310
          %v1312 = vpop.xlane.xlu0 %1311
          %v1313 = vrcp.pop %v1303
          %v1314 = vrcp.pop %v1306
          %v1315 = vrcp.pop %v1309
          %v1316 = vrcp.pop %v1312
          %v1317 = vmul.f32 %v1294, %v1313
          %v1318 = vmul.f32 %v1296, %v1314
          %v1319 = vmul.f32 %v1298, %v1315
          %v1320 = vmul.f32 %v1300, %v1316
          %1321 = vrot.lane.b32.xlu0 %v1160, 96
          %v1322 = vpop.permute.xlu0 %1321
          %v1325 = vsel %vm1162, %v1317, 0
          %1327 = vmatpush.msra.mxu0 0.0
          %1328 = vmatpush.msra.mxu0 0.0
          %1329 = vmatpush.msra.mxu0 0.0
          %1330 = vmatpush.msra.mxu0 0.0
          %1331 = vmatpush.msra.mxu0 0.0
          %1332 = vmatpush.msra.mxu0 0.0
          %1333 = vmatpush.msra.mxu0 0.0
          %1334 = vmatpush.msra.mxu0 0.0
          %1335 = vmatpush.msra.mxu0 0.0
          %1336 = vmatpush.msra.mxu0 0.0
          %1337 = vmatpush.msra.mxu0 0.0
          %1338 = vmatpush.msra.mxu0 0.0
          %1339 = vmatpush.msra.mxu0 0.0
          %1340 = vmatpush.msra.mxu0 0.0
          %1341 = vmatpush.msra.mxu0 0.0
          %1342 = vmatpush.msra.mxu0 %v1322
          %1343 = vmatmul.f32.gmra.mxu0 %v1325
          %v1344 = vpop.f32.mrf.mxu0
          %v1345 = vadd.f32 0.0, %v1344
          %1346 = vdwg.mxu0
          %1347 = vrot.lane.b32.xlu0 %v1160, 88
          %v1348 = vpop.permute.xlu0 %1347
          %v1351 = vsel %vm1162, %v1318, 0
          %1353 = vmatpush.msra.mxu0 0.0
          %1354 = vmatpush.msra.mxu0 0.0
          %1355 = vmatpush.msra.mxu0 0.0
          %1356 = vmatpush.msra.mxu0 0.0
          %1357 = vmatpush.msra.mxu0 0.0
          %1358 = vmatpush.msra.mxu0 0.0
          %1359 = vmatpush.msra.mxu0 0.0
          %1360 = vmatpush.msra.mxu0 0.0
          %1361 = vmatpush.msra.mxu0 0.0
          %1362 = vmatpush.msra.mxu0 0.0
          %1363 = vmatpush.msra.mxu0 0.0
          %1364 = vmatpush.msra.mxu0 0.0
          %1365 = vmatpush.msra.mxu0 0.0
          %1366 = vmatpush.msra.mxu0 0.0
          %1367 = vmatpush.msra.mxu0 0.0
          %1368 = vmatpush.msra.mxu0 %v1348
          %1369 = vmatmul.f32.gmra.mxu0 %v1351
          %v1370 = vpop.f32.mrf.mxu0
          %v1371 = vadd.f32 0.0, %v1370
          %1372 = vdwg.mxu0
          %1373 = vrot.lane.b32.xlu0 %v1160, 80
          %v1374 = vpop.permute.xlu0 %1373
          %v1377 = vsel %vm1162, %v1319, 0
          %1379 = vmatpush.msra.mxu0 0.0
          %1380 = vmatpush.msra.mxu0 0.0
          %1381 = vmatpush.msra.mxu0 0.0
          %1382 = vmatpush.msra.mxu0 0.0
          %1383 = vmatpush.msra.mxu0 0.0
          %1384 = vmatpush.msra.mxu0 0.0
          %1385 = vmatpush.msra.mxu0 0.0
          %1386 = vmatpush.msra.mxu0 0.0
          %1387 = vmatpush.msra.mxu0 0.0
          %1388 = vmatpush.msra.mxu0 0.0
          %1389 = vmatpush.msra.mxu0 0.0
          %1390 = vmatpush.msra.mxu0 0.0
          %1391 = vmatpush.msra.mxu0 0.0
          %1392 = vmatpush.msra.mxu0 0.0
          %1393 = vmatpush.msra.mxu0 0.0
          %1394 = vmatpush.msra.mxu0 %v1374
          %1395 = vmatmul.f32.gmra.mxu0 %v1377
          %v1396 = vpop.f32.mrf.mxu0
          %v1397 = vadd.f32 0.0, %v1396
          %1398 = vdwg.mxu0
          %1399 = vrot.lane.b32.xlu0 %v1160, 72
          %v1400 = vpop.permute.xlu0 %1399
          %v1403 = vsel %vm1162, %v1320, 0
          %1405 = vmatpush.msra.mxu0 0.0
          %1406 = vmatpush.msra.mxu0 0.0
          %1407 = vmatpush.msra.mxu0 0.0
          %1408 = vmatpush.msra.mxu0 0.0
          %1409 = vmatpush.msra.mxu0 0.0
          %1410 = vmatpush.msra.mxu0 0.0
          %1411 = vmatpush.msra.mxu0 0.0
          %1412 = vmatpush.msra.mxu0 0.0
          %1413 = vmatpush.msra.mxu0 0.0
          %1414 = vmatpush.msra.mxu0 0.0
          %1415 = vmatpush.msra.mxu0 0.0
          %1416 = vmatpush.msra.mxu0 0.0
          %1417 = vmatpush.msra.mxu0 0.0
          %1418 = vmatpush.msra.mxu0 0.0
          %1419 = vmatpush.msra.mxu0 0.0
          %1420 = vmatpush.msra.mxu0 %v1400
          %1421 = vmatmul.f32.gmra.mxu0 %v1403
          %v1422 = vpop.f32.mrf.mxu0
          %v1423 = vadd.f32 0.0, %v1422
          %1424 = vdwg.mxu0
          %1426 = vrot.lane.b32.xlu0 %v1371, 8
          %v1427 = vpop.permute.xlu0 %1426
          %1430 = vrot.lane.b32.xlu0 %v1397, 16
          %v1431 = vpop.permute.xlu0 %1430
          %1434 = vrot.lane.b32.xlu0 %v1423, 24
          %v1435 = vpop.permute.xlu0 %1434
          %v1437 = vsel %vm1162, %v1345, %v1427
          %vm1438 = vcmask 130048
          %v1439 = vsel %vm1438, %v1437, %v1431
          %vm1440 = vcmask 195584
          %v1441 = vsel %vm1440, %v1439, %v1435
          %v1443 = vperm.slane %v1080, 0
          %v1446 = vsel %vm1112, %v1441, 0
          %1448 = vmatpush.msra.mxu0 0.0
          %1449 = vmatpush.msra.mxu0 0.0
          %1450 = vmatpush.msra.mxu0 0.0
          %1451 = vmatpush.msra.mxu0 0.0
          %1452 = vmatpush.msra.mxu0 0.0
          %1453 = vmatpush.msra.mxu0 0.0
          %1454 = vmatpush.msra.mxu0 0.0
          %1455 = vmatpush.msra.mxu0 0.0
          %1456 = vmatpush.msra.mxu0 0.0
          %1457 = vmatpush.msra.mxu0 0.0
          %1458 = vmatpush.msra.mxu0 0.0
          %1459 = vmatpush.msra.mxu0 0.0
          %1460 = vmatpush.msra.mxu0 %v1079
          %1461 = vmatpush.msra.mxu0 %v1078
          %1462 = vmatpush.msra.mxu0 %v1077
          %1463 = vmatpush.msra.mxu0 %v1076
          %1464 = vmatmul.f32.gmra.mxu0 %v1446
          %v1465 = vpop.f32.mrf.mxu0
          %v1466 = vadd.f32 %v1443, %v1465
          %1467 = vdwg.mxu0
          %v1468 = vadd.f32 %v1108, %v1466
          %v1469 = vsel %vm1112, %v1468, 0.0
          %1470 = vadd.xlane.f32.xlu0 %v1469
          %v1471 = vpop.xlane.xlu0 %1470
          %v1472 = vrcp.pop 32.0
          %v1473 = vmul.f32 32.0, %v1472
          %v1474 = vsub.f32 1.0, %v1473
          %v1475 = vmul.f32 %v1472, %v1474
          %v1476 = vadd.f32 %v1472, %v1475
          %vm1477 = vweird.f32 %v1472
          %v1478 = vsel %vm1477, %v1472, %v1476
          %v1479 = vmul.f32 %v1471, %v1478
          %v1480 = vsub.f32 %v1468, %v1479
          %v1481 = vmul.f32 %v1480, %v1480
          %v1482 = vsel %vm1112, %v1481, 0.0
          %1483 = vadd.xlane.f32.xlu0 %v1482
          %v1484 = vpop.xlane.xlu0 %1483
          %v1485 = vmul.f32 %v1484, %v1478
          %v1486 = vadd.f32 %v1485, 1e-05
          %v1487 = vrsqrt.pop %v1486
          %v1488 = vmul.f32 %v1487, %v1486
          %v1489 = vmul.f32 %v1488, %v1487
          %v1490 = vmul.f32 0.5, %v1489
          %v1491 = vsub.f32 1.5, %v1490
          %v1492 = vmul.f32 %v1487, %v1491
          %vm1493 = vweird.f32 %v1486
          %vm1494 = vweird.f32 %v1487
          %vm1495 = vmor %vm1493, %vm1494
          %v1496 = vsel %vm1495, %v1487, %v1492
          %v1497 = vmul.f32 %v1480, %v1496
          %v1499 = vperm.slane %v1081, 0
          %v1501 = vmul.f32 %v1497, %v1499
          %v1503 = vperm.slane %v1082, 0
          %v1505 = vadd.f32 %v1501, %v1503
          %v1507 = vperm.slane %v1087, 0
          %v1510 = vsel %vm1112, %v1505, 0
          %1512 = vmatpush.msra.mxu0 0.0
          %1513 = vmatpush.msra.mxu0 0.0
          %1514 = vmatpush.msra.mxu0 0.0
          %1515 = vmatpush.msra.mxu0 0.0
          %1516 = vmatpush.msra.mxu0 0.0
          %1517 = vmatpush.msra.mxu0 0.0
          %1518 = vmatpush.msra.mxu0 0.0
          %1519 = vmatpush.msra.mxu0 0.0
          %1520 = vmatpush.msra.mxu0 0.0
          %1521 = vmatpush.msra.mxu0 0.0
          %1522 = vmatpush.msra.mxu0 0.0
          %1523 = vmatpush.msra.mxu0 0.0
          %1524 = vmatpush.msra.mxu0 %v1086
          %1525 = vmatpush.msra.mxu0 %v1085
          %1526 = vmatpush.msra.mxu0 %v1084
          %1527 = vmatpush.msra.mxu0 %v1083
          %1528 = vmatmul.f32.gmra.mxu0 %v1510
          %v1529 = vpop.f32.mrf.mxu0
          %v1530 = vadd.f32 %v1507, %v1529
          %1531 = vdwg.mxu0
          %v1532 = vmax.f32 %v1530, 0.0
          %v1534 = vperm.slane %v1096, 0
          %vm1536 = vcmask 523264
          %v1538 = vsel %vm1536, %v1532, 0
          %1540 = vmatpush.msra.mxu0 0.0
          %1541 = vmatpush.msra.mxu0 0.0
          %1542 = vmatpush.msra.mxu0 0.0
          %1543 = vmatpush.msra.mxu0 0.0
          %1544 = vmatpush.msra.mxu0 0.0
          %1545 = vmatpush.msra.mxu0 0.0
          %1546 = vmatpush.msra.mxu0 0.0
          %1547 = vmatpush.msra.mxu0 0.0
          %1548 = vmatpush.msra.mxu0 %v1095
          %1549 = vmatpush.msra.mxu0 %v1094
          %1550 = vmatpush.msra.mxu0 %v1093
          %1551 = vmatpush.msra.mxu0 %v1092
          %1552 = vmatpush.msra.mxu0 %v1091
          %1553 = vmatpush.msra.mxu0 %v1090
          %1554 = vmatpush.msra.mxu0 %v1089
          %1555 = vmatpush.msra.mxu0 %v1088
          %1556 = vmatmul.f32.gmra.mxu0 %v1538
          %v1557 = vpop.f32.mrf.mxu0
          %v1558 = vadd.f32 %v1534, %v1557
          %1559 = vdwg.mxu0
          %v1560 = vadd.f32 %v1505, %v1558
          %v1561 = vsel %vm1112, %v1560, 0.0
          %1562 = vadd.xlane.f32.xlu0 %v1561
          %v1563 = vpop.xlane.xlu0 %1562
          %v1564 = vmul.f32 %v1563, %v1478
          %v1565 = vsub.f32 %v1560, %v1564
          %v1566 = vmul.f32 %v1565, %v1565
          %v1567 = vsel %vm1112, %v1566, 0.0
          %1568 = vadd.xlane.f32.xlu0 %v1567
          %v1569 = vpop.xlane.xlu0 %1568
          %v1570 = vmul.f32 %v1569, %v1478
          %v1571 = vadd.f32 %v1570, 1e-05
          %v1572 = vrsqrt.pop %v1571
          %v1573 = vmul.f32 %v1572, %v1571
          %v1574 = vmul.f32 %v1573, %v1572
          %v1575 = vmul.f32 0.5, %v1574
          %v1576 = vsub.f32 1.5, %v1575
          %v1577 = vmul.f32 %v1572, %v1576
          %vm1578 = vweird.f32 %v1571
          %vm1579 = vweird.f32 %v1572
          %vm1580 = vmor %vm1578, %vm1579
          %v1581 = vsel %vm1580, %v1572, %v1577
          %v1582 = vmul.f32 %v1565, %v1581
          %v1584 = vperm.slane %v1097, 0
          %v1586 = vmul.f32 %v1582, %v1584
          %v1588 = vperm.slane %v1098, 0
          %v1590 = vadd.f32 %v1586, %v1588
          %v1592 = vperm.slane %v1075, 0
          %v1595 = vsel %vm1112, %v1590, 0
          %1597 = vmatpush.msra.mxu0 0.0
          %1598 = vmatpush.msra.mxu0 0.0
          %1599 = vmatpush.msra.mxu0 0.0
          %1600 = vmatpush.msra.mxu0 0.0
          %1601 = vmatpush.msra.mxu0 0.0
          %1602 = vmatpush.msra.mxu0 0.0
          %1603 = vmatpush.msra.mxu0 0.0
          %1604 = vmatpush.msra.mxu0 0.0
          %1605 = vmatpush.msra.mxu0 0.0
          %1606 = vmatpush.msra.mxu0 0.0
          %1607 = vmatpush.msra.mxu0 0.0
          %1608 = vmatpush.msra.mxu0 0.0
          %1609 = vmatpush.msra.mxu0 %v1074
          %1610 = vmatpush.msra.mxu0 %v1073
          %1611 = vmatpush.msra.mxu0 %v1072
          %1612 = vmatpush.msra.mxu0 %v1071
          %1613 = vmatmul.f32.gmra.mxu0 %v1595
          %v1614 = vpop.f32.mrf.mxu0
          %v1615 = vadd.f32 %v1592, %v1614
          %1616 = vdwg.mxu0
          %1617 = vrot.lane.b32.xlu0 %v1134, 96
          %v1618 = vpop.permute.xlu0 %1617
          %v1620 = vsel %vm1162, %v1615, 0
          %v1622 = vsel %vm1162, %v1618, 0
          %1624 = vmatpush.xpose.msra.mxu0 0.0
          %1625 = vmatpush.xpose.msra.mxu0 0.0
          %1626 = vmatpush.xpose.msra.mxu0 0.0
          %1627 = vmatpush.xpose.msra.mxu0 0.0
          %1628 = vmatpush.xpose.msra.mxu0 0.0
          %1629 = vmatpush.xpose.msra.mxu0 0.0
          %1630 = vmatpush.xpose.msra.mxu0 0.0
          %1631 = vmatpush.xpose.msra.mxu0 0.0
          %1632 = vmatpush.xpose.msra.mxu0 0.0
          %1633 = vmatpush.xpose.msra.mxu0 0.0
          %1634 = vmatpush.xpose.msra.mxu0 0.0
          %1635 = vmatpush.xpose.msra.mxu0 0.0
          %1636 = vmatpush.xpose.msra.mxu0 0.0
          %1637 = vmatpush.xpose.msra.mxu0 0.0
          %1638 = vmatpush.xpose.msra.mxu0 0.0
          %1639 = vmatpush.xpose.msra.mxu0 %v1622
          %1640 = vmatmul.f32.gmra.mxu0 %v1620
          %v1641 = vpop.f32.mrf.mxu0
          %v1642 = vadd.f32 0.0, %v1641
          %1643 = vdwg.mxu0
          %1644 = vrot.lane.b32.xlu0 %v1615, 120
          %v1645 = vpop.permute.xlu0 %1644
          %1646 = vrot.lane.b32.xlu0 %v1134, 88
          %v1647 = vpop.permute.xlu0 %1646
          %v1648 = vsel %vm1162, %v1645, 0
          %v1650 = vsel %vm1162, %v1647, 0
          %1652 = vmatpush.xpose.msra.mxu0 0.0
          %1653 = vmatpush.xpose.msra.mxu0 0.0
          %1654 = vmatpush.xpose.msra.mxu0 0.0
          %1655 = vmatpush.xpose.msra.mxu0 0.0
          %1656 = vmatpush.xpose.msra.mxu0 0.0
          %1657 = vmatpush.xpose.msra.mxu0 0.0
          %1658 = vmatpush.xpose.msra.mxu0 0.0
          %1659 = vmatpush.xpose.msra.mxu0 0.0
          %1660 = vmatpush.xpose.msra.mxu0 0.0
          %1661 = vmatpush.xpose.msra.mxu0 0.0
          %1662 = vmatpush.xpose.msra.mxu0 0.0
          %1663 = vmatpush.xpose.msra.mxu0 0.0
          %1664 = vmatpush.xpose.msra.mxu0 0.0
          %1665 = vmatpush.xpose.msra.mxu0 0.0
          %1666 = vmatpush.xpose.msra.mxu0 0.0
          %1667 = vmatpush.xpose.msra.mxu0 %v1650
          %1668 = vmatmul.f32.gmra.mxu0 %v1648
          %v1669 = vpop.f32.mrf.mxu0
          %v1670 = vadd.f32 0.0, %v1669
          %1671 = vdwg.mxu0
          %1672 = vrot.lane.b32.xlu0 %v1615, 112
          %v1673 = vpop.permute.xlu0 %1672
          %1674 = vrot.lane.b32.xlu0 %v1134, 80
          %v1675 = vpop.permute.xlu0 %1674
          %v1676 = vsel %vm1162, %v1673, 0
          %v1678 = vsel %vm1162, %v1675, 0
          %1680 = vmatpush.xpose.msra.mxu0 0.0
          %1681 = vmatpush.xpose.msra.mxu0 0.0
          %1682 = vmatpush.xpose.msra.mxu0 0.0
          %1683 = vmatpush.xpose.msra.mxu0 0.0
          %1684 = vmatpush.xpose.msra.mxu0 0.0
          %1685 = vmatpush.xpose.msra.mxu0 0.0
          %1686 = vmatpush.xpose.msra.mxu0 0.0
          %1687 = vmatpush.xpose.msra.mxu0 0.0
          %1688 = vmatpush.xpose.msra.mxu0 0.0
          %1689 = vmatpush.xpose.msra.mxu0 0.0
          %1690 = vmatpush.xpose.msra.mxu0 0.0
          %1691 = vmatpush.xpose.msra.mxu0 0.0
          %1692 = vmatpush.xpose.msra.mxu0 0.0
          %1693 = vmatpush.xpose.msra.mxu0 0.0
          %1694 = vmatpush.xpose.msra.mxu0 0.0
          %1695 = vmatpush.xpose.msra.mxu0 %v1678
          %1696 = vmatmul.f32.gmra.mxu0 %v1676
          %v1697 = vpop.f32.mrf.mxu0
          %v1698 = vadd.f32 0.0, %v1697
          %1699 = vdwg.mxu0
          %1700 = vrot.lane.b32.xlu0 %v1615, 104
          %v1701 = vpop.permute.xlu0 %1700
          %1702 = vrot.lane.b32.xlu0 %v1134, 72
          %v1703 = vpop.permute.xlu0 %1702
          %v1704 = vsel %vm1162, %v1701, 0
          %v1706 = vsel %vm1162, %v1703, 0
          %1708 = vmatpush.xpose.msra.mxu0 0.0
          %1709 = vmatpush.xpose.msra.mxu0 0.0
          %1710 = vmatpush.xpose.msra.mxu0 0.0
          %1711 = vmatpush.xpose.msra.mxu0 0.0
          %1712 = vmatpush.xpose.msra.mxu0 0.0
          %1713 = vmatpush.xpose.msra.mxu0 0.0
          %1714 = vmatpush.xpose.msra.mxu0 0.0
          %1715 = vmatpush.xpose.msra.mxu0 0.0
          %1716 = vmatpush.xpose.msra.mxu0 0.0
          %1717 = vmatpush.xpose.msra.mxu0 0.0
          %1718 = vmatpush.xpose.msra.mxu0 0.0
          %1719 = vmatpush.xpose.msra.mxu0 0.0
          %1720 = vmatpush.xpose.msra.mxu0 0.0
          %1721 = vmatpush.xpose.msra.mxu0 0.0
          %1722 = vmatpush.xpose.msra.mxu0 0.0
          %1723 = vmatpush.xpose.msra.mxu0 %v1706
          %1724 = vmatmul.f32.gmra.mxu0 %v1704
          %v1725 = vpop.f32.mrf.mxu0
          %v1726 = vadd.f32 0.0, %v1725
          %1727 = vdwg.mxu0
          %v1728 = vmul.f32 %v1642, 0.35355338
          %v1729 = vmul.f32 %v1670, 0.35355338
          %v1730 = vmul.f32 %v1698, 0.35355338
          %v1731 = vmul.f32 %v1726, 0.35355338
          %v1732 = vsel %vm1162, %v1728, -inf
          %1733 = vmax.xlane.f32.xlu0 %v1732
          %v1734 = vpop.xlane.xlu0 %1733
          %v1735 = vsel %vm1162, %v1729, -inf
          %1736 = vmax.xlane.f32.xlu0 %v1735
          %v1737 = vpop.xlane.xlu0 %1736
          %v1738 = vsel %vm1162, %v1730, -inf
          %1739 = vmax.xlane.f32.xlu0 %v1738
          %v1740 = vpop.xlane.xlu0 %1739
          %v1741 = vsel %vm1162, %v1731, -inf
          %1742 = vmax.xlane.f32.xlu0 %v1741
          %v1743 = vpop.xlane.xlu0 %1742
          %v1744 = vsub.f32 %v1728, %v1734
          %v1745 = vsub.f32 %v1729, %v1737
          %v1746 = vsub.f32 %v1730, %v1740
          %v1747 = vsub.f32 %v1731, %v1743
          %v1748 = vmul.f32 %v1744, 1.442695
          %v1749 = vpow.pop %v1748
          %v1750 = vmul.f32 %v1745, 1.442695
          %v1751 = vpow.pop %v1750
          %v1752 = vmul.f32 %v1746, 1.442695
          %v1753 = vpow.pop %v1752
          %v1754 = vmul.f32 %v1747, 1.442695
          %v1755 = vpow.pop %v1754
          %v1756 = vsel %vm1162, %v1749, 0.0
          %1757 = vadd.xlane.f32.xlu0 %v1756
          %v1758 = vpop.xlane.xlu0 %1757
          %v1759 = vsel %vm1162, %v1751, 0.0
          %1760 = vadd.xlane.f32.xlu0 %v1759
          %v1761 = vpop.xlane.xlu0 %1760
          %v1762 = vsel %vm1162, %v1753, 0.0
          %1763 = vadd.xlane.f32.xlu0 %v1762
          %v1764 = vpop.xlane.xlu0 %1763
          %v1765 = vsel %vm1162, %v1755, 0.0
          %1766 = vadd.xlane.f32.xlu0 %v1765
          %v1767 = vpop.xlane.xlu0 %1766
          %v1768 = vrcp.pop %v1758
          %v1769 = vrcp.pop %v1761
          %v1770 = vrcp.pop %v1764
          %v1771 = vrcp.pop %v1767
          %v1772 = vmul.f32 %v1749, %v1768
          %v1773 = vmul.f32 %v1751, %v1769
          %v1774 = vmul.f32 %v1753, %v1770
          %v1775 = vmul.f32 %v1755, %v1771
          %1776 = vrot.lane.b32.xlu0 %v1134, 64
          %v1777 = vpop.permute.xlu0 %1776
          %v1780 = vsel %vm1162, %v1772, 0
          %1782 = vmatpush.msra.mxu0 0.0
          %1783 = vmatpush.msra.mxu0 0.0
          %1784 = vmatpush.msra.mxu0 0.0
          %1785 = vmatpush.msra.mxu0 0.0
          %1786 = vmatpush.msra.mxu0 0.0
          %1787 = vmatpush.msra.mxu0 0.0
          %1788 = vmatpush.msra.mxu0 0.0
          %1789 = vmatpush.msra.mxu0 0.0
          %1790 = vmatpush.msra.mxu0 0.0
          %1791 = vmatpush.msra.mxu0 0.0
          %1792 = vmatpush.msra.mxu0 0.0
          %1793 = vmatpush.msra.mxu0 0.0
          %1794 = vmatpush.msra.mxu0 0.0
          %1795 = vmatpush.msra.mxu0 0.0
          %1796 = vmatpush.msra.mxu0 0.0
          %1797 = vmatpush.msra.mxu0 %v1777
          %1798 = vmatmul.f32.gmra.mxu0 %v1780
          %v1799 = vpop.f32.mrf.mxu0
          %v1800 = vadd.f32 0.0, %v1799
          %1801 = vdwg.mxu0
          %1802 = vrot.lane.b32.xlu0 %v1134, 56
          %v1803 = vpop.permute.xlu0 %1802
          %v1806 = vsel %vm1162, %v1773, 0
          %1808 = vmatpush.msra.mxu0 0.0
          %1809 = vmatpush.msra.mxu0 0.0
          %1810 = vmatpush.msra.mxu0 0.0
          %1811 = vmatpush.msra.mxu0 0.0
          %1812 = vmatpush.msra.mxu0 0.0
          %1813 = vmatpush.msra.mxu0 0.0
          %1814 = vmatpush.msra.mxu0 0.0
          %1815 = vmatpush.msra.mxu0 0.0
          %1816 = vmatpush.msra.mxu0 0.0
          %1817 = vmatpush.msra.mxu0 0.0
          %1818 = vmatpush.msra.mxu0 0.0
          %1819 = vmatpush.msra.mxu0 0.0
          %1820 = vmatpush.msra.mxu0 0.0
          %1821 = vmatpush.msra.mxu0 0.0
          %1822 = vmatpush.msra.mxu0 0.0
          %1823 = vmatpush.msra.mxu0 %v1803
          %1824 = vmatmul.f32.gmra.mxu0 %v1806
          %v1825 = vpop.f32.mrf.mxu0
          %v1826 = vadd.f32 0.0, %v1825
          %1827 = vdwg.mxu0
          %1828 = vrot.lane.b32.xlu0 %v1134, 48
          %v1829 = vpop.permute.xlu0 %1828
          %v1832 = vsel %vm1162, %v1774, 0
          %1834 = vmatpush.msra.mxu0 0.0
          %1835 = vmatpush.msra.mxu0 0.0
          %1836 = vmatpush.msra.mxu0 0.0
          %1837 = vmatpush.msra.mxu0 0.0
          %1838 = vmatpush.msra.mxu0 0.0
          %1839 = vmatpush.msra.mxu0 0.0
          %1840 = vmatpush.msra.mxu0 0.0
          %1841 = vmatpush.msra.mxu0 0.0
          %1842 = vmatpush.msra.mxu0 0.0
          %1843 = vmatpush.msra.mxu0 0.0
          %1844 = vmatpush.msra.mxu0 0.0
          %1845 = vmatpush.msra.mxu0 0.0
          %1846 = vmatpush.msra.mxu0 0.0
          %1847 = vmatpush.msra.mxu0 0.0
          %1848 = vmatpush.msra.mxu0 0.0
          %1849 = vmatpush.msra.mxu0 %v1829
          %1850 = vmatmul.f32.gmra.mxu0 %v1832
          %v1851 = vpop.f32.mrf.mxu0
          %v1852 = vadd.f32 0.0, %v1851
          %1853 = vdwg.mxu0
          %1854 = vrot.lane.b32.xlu0 %v1134, 40
          %v1855 = vpop.permute.xlu0 %1854
          %v1858 = vsel %vm1162, %v1775, 0
          %1860 = vmatpush.msra.mxu0 0.0
          %1861 = vmatpush.msra.mxu0 0.0
          %1862 = vmatpush.msra.mxu0 0.0
          %1863 = vmatpush.msra.mxu0 0.0
          %1864 = vmatpush.msra.mxu0 0.0
          %1865 = vmatpush.msra.mxu0 0.0
          %1866 = vmatpush.msra.mxu0 0.0
          %1867 = vmatpush.msra.mxu0 0.0
          %1868 = vmatpush.msra.mxu0 0.0
          %1869 = vmatpush.msra.mxu0 0.0
          %1870 = vmatpush.msra.mxu0 0.0
          %1871 = vmatpush.msra.mxu0 0.0
          %1872 = vmatpush.msra.mxu0 0.0
          %1873 = vmatpush.msra.mxu0 0.0
          %1874 = vmatpush.msra.mxu0 0.0
          %1875 = vmatpush.msra.mxu0 %v1855
          %1876 = vmatmul.f32.gmra.mxu0 %v1858
          %v1877 = vpop.f32.mrf.mxu0
          %v1878 = vadd.f32 0.0, %v1877
          %1879 = vdwg.mxu0
          %1881 = vrot.lane.b32.xlu0 %v1826, 8
          %v1882 = vpop.permute.xlu0 %1881
          %1885 = vrot.lane.b32.xlu0 %v1852, 16
          %v1886 = vpop.permute.xlu0 %1885
          %1889 = vrot.lane.b32.xlu0 %v1878, 24
          %v1890 = vpop.permute.xlu0 %1889
          %v1892 = vsel %vm1162, %v1800, %v1882
          %v1893 = vsel %vm1438, %v1892, %v1886
          %v1894 = vsel %vm1440, %v1893, %v1890
          %v1896 = vsel %vm1112, %v1894, 0
          %1898 = vmatpush.msra.mxu0 0.0
          %1899 = vmatpush.msra.mxu0 0.0
          %1900 = vmatpush.msra.mxu0 0.0
          %1901 = vmatpush.msra.mxu0 0.0
          %1902 = vmatpush.msra.mxu0 0.0
          %1903 = vmatpush.msra.mxu0 0.0
          %1904 = vmatpush.msra.mxu0 0.0
          %1905 = vmatpush.msra.mxu0 0.0
          %1906 = vmatpush.msra.mxu0 0.0
          %1907 = vmatpush.msra.mxu0 0.0
          %1908 = vmatpush.msra.mxu0 0.0
          %1909 = vmatpush.msra.mxu0 0.0
          %1910 = vmatpush.msra.mxu0 %v1079
          %1911 = vmatpush.msra.mxu0 %v1078
          %1912 = vmatpush.msra.mxu0 %v1077
          %1913 = vmatpush.msra.mxu0 %v1076
          %1914 = vmatmul.f32.gmra.mxu0 %v1896
          %v1915 = vpop.f32.mrf.mxu0
          %v1916 = vadd.f32 %v1443, %v1915
          %1917 = vdwg.mxu0
          %v1918 = vadd.f32 %v1590, %v1916
          %v1919 = vsel %vm1112, %v1918, 0.0
          %1920 = vadd.xlane.f32.xlu0 %v1919
          %v1921 = vpop.xlane.xlu0 %1920
          %v1922 = vmul.f32 %v1921, %v1478
          %v1923 = vsub.f32 %v1918, %v1922
          %v1924 = vmul.f32 %v1923, %v1923
          %v1925 = vsel %vm1112, %v1924, 0.0
          %1926 = vadd.xlane.f32.xlu0 %v1925
          %v1927 = vpop.xlane.xlu0 %1926
          %v1928 = vmul.f32 %v1927, %v1478
          %v1929 = vadd.f32 %v1928, 1e-05
          %v1930 = vrsqrt.pop %v1929
          %v1931 = vmul.f32 %v1930, %v1929
          %v1932 = vmul.f32 %v1931, %v1930
          %v1933 = vmul.f32 0.5, %v1932
          %v1934 = vsub.f32 1.5, %v1933
          %v1935 = vmul.f32 %v1930, %v1934
          %vm1936 = vweird.f32 %v1929
          %vm1937 = vweird.f32 %v1930
          %vm1938 = vmor %vm1936, %vm1937
          %v1939 = vsel %vm1938, %v1930, %v1935
          %v1940 = vmul.f32 %v1923, %v1939
          %v1941 = vmul.f32 %v1940, %v1499
          %v1942 = vadd.f32 %v1941, %v1503
          %v1944 = vsel %vm1112, %v1942, 0
          %1946 = vmatpush.msra.mxu0 0.0
          %1947 = vmatpush.msra.mxu0 0.0
          %1948 = vmatpush.msra.mxu0 0.0
          %1949 = vmatpush.msra.mxu0 0.0
          %1950 = vmatpush.msra.mxu0 0.0
          %1951 = vmatpush.msra.mxu0 0.0
          %1952 = vmatpush.msra.mxu0 0.0
          %1953 = vmatpush.msra.mxu0 0.0
          %1954 = vmatpush.msra.mxu0 0.0
          %1955 = vmatpush.msra.mxu0 0.0
          %1956 = vmatpush.msra.mxu0 0.0
          %1957 = vmatpush.msra.mxu0 0.0
          %1958 = vmatpush.msra.mxu0 %v1086
          %1959 = vmatpush.msra.mxu0 %v1085
          %1960 = vmatpush.msra.mxu0 %v1084
          %1961 = vmatpush.msra.mxu0 %v1083
          %1962 = vmatmul.f32.gmra.mxu0 %v1944
          %v1963 = vpop.f32.mrf.mxu0
          %v1964 = vadd.f32 %v1507, %v1963
          %1965 = vdwg.mxu0
          %v1966 = vmax.f32 %v1964, 0.0
          %v1968 = vsel %vm1536, %v1966, 0
          %1970 = vmatpush.msra.mxu0 0.0
          %1971 = vmatpush.msra.mxu0 0.0
          %1972 = vmatpush.msra.mxu0 0.0
          %1973 = vmatpush.msra.mxu0 0.0
          %1974 = vmatpush.msra.mxu0 0.0
          %1975 = vmatpush.msra.mxu0 0.0
          %1976 = vmatpush.msra.mxu0 0.0
          %1977 = vmatpush.msra.mxu0 0.0
          %1978 = vmatpush.msra.mxu0 %v1095
          %1979 = vmatpush.msra.mxu0 %v1094
          %1980 = vmatpush.msra.mxu0 %v1093
          %1981 = vmatpush.msra.mxu0 %v1092
          %1982 = vmatpush.msra.mxu0 %v1091
          %1983 = vmatpush.msra.mxu0 %v1090
          %1984 = vmatpush.msra.mxu0 %v1089
          %1985 = vmatpush.msra.mxu0 %v1088
          %1986 = vmatmul.f32.gmra.mxu0 %v1968
          %v1987 = vpop.f32.mrf.mxu0
          %v1988 = vadd.f32 %v1534, %v1987
          %1989 = vdwg.mxu0
          %v1990 = vadd.f32 %v1942, %v1988
          %v1991 = vsel %vm1112, %v1990, 0.0
          %1992 = vadd.xlane.f32.xlu0 %v1991
          %v1993 = vpop.xlane.xlu0 %1992
          %v1994 = vmul.f32 %v1993, %v1478
          %v1995 = vsub.f32 %v1990, %v1994
          %v1996 = vmul.f32 %v1995, %v1995
          %v1997 = vsel %vm1112, %v1996, 0.0
          %1998 = vadd.xlane.f32.xlu0 %v1997
          %v1999 = vpop.xlane.xlu0 %1998
          %v2000 = vmul.f32 %v1999, %v1478
          %v2001 = vadd.f32 %v2000, 1e-05
          %v2002 = vrsqrt.pop %v2001
          %v2003 = vmul.f32 %v2002, %v2001
          %v2004 = vmul.f32 %v2003, %v2002
          %v2005 = vmul.f32 0.5, %v2004
          %v2006 = vsub.f32 1.5, %v2005
          %v2007 = vmul.f32 %v2002, %v2006
          %vm2008 = vweird.f32 %v2001
          %vm2009 = vweird.f32 %v2002
          %vm2010 = vmor %vm2008, %vm2009
          %v2011 = vsel %vm2010, %v2002, %v2007
          %v2012 = vmul.f32 %v1995, %v2011
          %v2013 = vmul.f32 %v2012, %v1584
          %v2014 = vadd.f32 %v2013, %v1588
          %2016 = vrot.lane.b32.xlu0 %v2014, 32
          %v2017 = vpop.permute.xlu0 %2016
          %v2019 = vsel %vm1112, %v1590, %v2017
          %2020 = vst.msk [vmem:[%s1016] sm:$0xff] %vm1536, %v2019
        $region136: #{tpu_custom_call.1} parent=99 // pred_fallthru
          _
        %p2021 = scmp.gt.s32.totalorder %s46, 0
        // Predicated region
        $region137: #{tpu_custom_call.1} parent=99 // pred_check
          %p2022 = pneg %p2021
        $region138: #{tpu_custom_call.1} parent=99 // pred_check_branch
          %2024 = sbr.rel (%p2022) target = $region140
        $region139: #{tpu_custom_call.1} parent=99 // pred_region
          %v2025 = vld [vmem:[%s1016] sm:$0xff]
          %v2027 = vperm.slane %v1065, 0
          %2030 = vrot.lane.b32.xlu0 %v2025, 96
          %v2031 = vpop.permute.xlu0 %2030
          %vm2032 = vcmask 261120
          %v2033 = vsel %vm2032, %v2031, 0
          %2035 = vmatpush.msra.mxu0 0.0
          %2036 = vmatpush.msra.mxu0 0.0
          %2037 = vmatpush.msra.mxu0 0.0
          %2038 = vmatpush.msra.mxu0 0.0
          %2039 = vmatpush.msra.mxu0 0.0
          %2040 = vmatpush.msra.mxu0 0.0
          %2041 = vmatpush.msra.mxu0 0.0
          %2042 = vmatpush.msra.mxu0 0.0
          %2043 = vmatpush.msra.mxu0 0.0
          %2044 = vmatpush.msra.mxu0 0.0
          %2045 = vmatpush.msra.mxu0 0.0
          %2046 = vmatpush.msra.mxu0 0.0
          %2047 = vmatpush.msra.mxu0 %v1064
          %2048 = vmatpush.msra.mxu0 %v1063
          %2049 = vmatpush.msra.mxu0 %v1062
          %2050 = vmatpush.msra.mxu0 %v1061
          %2051 = vmatmul.f32.gmra.mxu0 %v2033
          %v2052 = vpop.f32.mrf.mxu0
          %v2053 = vadd.f32 %v2027, %v2052
          %2054 = vdwg.mxu0
          %v2056 = vperm.slane %v1070, 0
          %v2058 = vsel %vm2032, %v2025, 0
          %2060 = vmatpush.msra.mxu0 0.0
          %2061 = vmatpush.msra.mxu0 0.0
          %2062 = vmatpush.msra.mxu0 0.0
          %2063 = vmatpush.msra.mxu0 0.0
          %2064 = vmatpush.msra.mxu0 0.0
          %2065 = vmatpush.msra.mxu0 0.0
          %2066 = vmatpush.msra.mxu0 0.0
          %2067 = vmatpush.msra.mxu0 0.0
          %2068 = vmatpush.msra.mxu0 0.0
          %2069 = vmatpush.msra.mxu0 0.0
          %2070 = vmatpush.msra.mxu0 0.0
          %2071 = vmatpush.msra.mxu0 0.0
          %2072 = vmatpush.msra.mxu0 %v1069
          %2073 = vmatpush.msra.mxu0 %v1068
          %2074 = vmatpush.msra.mxu0 %v1067
          %2075 = vmatpush.msra.mxu0 %v1066
          %2076 = vmatmul.f32.gmra.mxu0 %v2058
          %v2077 = vpop.f32.mrf.mxu0
          %v2078 = vadd.f32 %v2056, %v2077
          %2079 = vdwg.mxu0
          %vm2080 = vcmask 64512
          %v2082 = vsel %vm2080, %v2053, 0
          %v2085 = vsel %vm2080, %v2078, 0
          %2087 = vmatpush.xpose.msra.mxu0 0.0
          %2088 = vmatpush.xpose.msra.mxu0 0.0
          %2089 = vmatpush.xpose.msra.mxu0 0.0
          %2090 = vmatpush.xpose.msra.mxu0 0.0
          %2091 = vmatpush.xpose.msra.mxu0 0.0
          %2092 = vmatpush.xpose.msra.mxu0 0.0
          %2093 = vmatpush.xpose.msra.mxu0 0.0
          %2094 = vmatpush.xpose.msra.mxu0 0.0
          %2095 = vmatpush.xpose.msra.mxu0 0.0
          %2096 = vmatpush.xpose.msra.mxu0 0.0
          %2097 = vmatpush.xpose.msra.mxu0 0.0
          %2098 = vmatpush.xpose.msra.mxu0 0.0
          %2099 = vmatpush.xpose.msra.mxu0 0.0
          %2100 = vmatpush.xpose.msra.mxu0 0.0
          %2101 = vmatpush.xpose.msra.mxu0 0.0
          %2102 = vmatpush.xpose.msra.mxu0 %v2085
          %2103 = vmatmul.f32.gmra.mxu0 %v2082
          %v2104 = vpop.f32.mrf.mxu0
          %v2105 = vadd.f32 0.0, %v2104
          %2106 = vdwg.mxu0
          %2107 = vrot.lane.b32.xlu0 %v2053, 120
          %v2108 = vpop.permute.xlu0 %2107
          %2109 = vrot.lane.b32.xlu0 %v2078, 120
          %v2110 = vpop.permute.xlu0 %2109
          %v2111 = vsel %vm2080, %v2108, 0
          %v2113 = vsel %vm2080, %v2110, 0
          %2115 = vmatpush.xpose.msra.mxu0 0.0
          %2116 = vmatpush.xpose.msra.mxu0 0.0
          %2117 = vmatpush.xpose.msra.mxu0 0.0
          %2118 = vmatpush.xpose.msra.mxu0 0.0
          %2119 = vmatpush.xpose.msra.mxu0 0.0
          %2120 = vmatpush.xpose.msra.mxu0 0.0
          %2121 = vmatpush.xpose.msra.mxu0 0.0
          %2122 = vmatpush.xpose.msra.mxu0 0.0
          %2123 = vmatpush.xpose.msra.mxu0 0.0
          %2124 = vmatpush.xpose.msra.mxu0 0.0
          %2125 = vmatpush.xpose.msra.mxu0 0.0
          %2126 = vmatpush.xpose.msra.mxu0 0.0
          %2127 = vmatpush.xpose.msra.mxu0 0.0
          %2128 = vmatpush.xpose.msra.mxu0 0.0
          %2129 = vmatpush.xpose.msra.mxu0 0.0
          %2130 = vmatpush.xpose.msra.mxu0 %v2113
          %2131 = vmatmul.f32.gmra.mxu0 %v2111
          %v2132 = vpop.f32.mrf.mxu0
          %v2133 = vadd.f32 0.0, %v2132
          %2134 = vdwg.mxu0
          %2135 = vrot.lane.b32.xlu0 %v2053, 112
          %v2136 = vpop.permute.xlu0 %2135
          %2137 = vrot.lane.b32.xlu0 %v2078, 112
          %v2138 = vpop.permute.xlu0 %2137
          %v2139 = vsel %vm2080, %v2136, 0
          %v2141 = vsel %vm2080, %v2138, 0
          %2143 = vmatpush.xpose.msra.mxu0 0.0
          %2144 = vmatpush.xpose.msra.mxu0 0.0
          %2145 = vmatpush.xpose.msra.mxu0 0.0
          %2146 = vmatpush.xpose.msra.mxu0 0.0
          %2147 = vmatpush.xpose.msra.mxu0 0.0
          %2148 = vmatpush.xpose.msra.mxu0 0.0
          %2149 = vmatpush.xpose.msra.mxu0 0.0
          %2150 = vmatpush.xpose.msra.mxu0 0.0
          %2151 = vmatpush.xpose.msra.mxu0 0.0
          %2152 = vmatpush.xpose.msra.mxu0 0.0
          %2153 = vmatpush.xpose.msra.mxu0 0.0
          %2154 = vmatpush.xpose.msra.mxu0 0.0
          %2155 = vmatpush.xpose.msra.mxu0 0.0
          %2156 = vmatpush.xpose.msra.mxu0 0.0
          %2157 = vmatpush.xpose.msra.mxu0 0.0
          %2158 = vmatpush.xpose.msra.mxu0 %v2141
          %2159 = vmatmul.f32.gmra.mxu0 %v2139
          %v2160 = vpop.f32.mrf.mxu0
          %v2161 = vadd.f32 0.0, %v2160
          %2162 = vdwg.mxu0
          %2163 = vrot.lane.b32.xlu0 %v2053, 104
          %v2164 = vpop.permute.xlu0 %2163
          %2165 = vrot.lane.b32.xlu0 %v2078, 104
          %v2166 = vpop.permute.xlu0 %2165
          %v2167 = vsel %vm2080, %v2164, 0
          %v2169 = vsel %vm2080, %v2166, 0
          %2171 = vmatpush.xpose.msra.mxu0 0.0
          %2172 = vmatpush.xpose.msra.mxu0 0.0
          %2173 = vmatpush.xpose.msra.mxu0 0.0
          %2174 = vmatpush.xpose.msra.mxu0 0.0
          %2175 = vmatpush.xpose.msra.mxu0 0.0
          %2176 = vmatpush.xpose.msra.mxu0 0.0
          %2177 = vmatpush.xpose.msra.mxu0 0.0
          %2178 = vmatpush.xpose.msra.mxu0 0.0
          %2179 = vmatpush.xpose.msra.mxu0 0.0
          %2180 = vmatpush.xpose.msra.mxu0 0.0
          %2181 = vmatpush.xpose.msra.mxu0 0.0
          %2182 = vmatpush.xpose.msra.mxu0 0.0
          %2183 = vmatpush.xpose.msra.mxu0 0.0
          %2184 = vmatpush.xpose.msra.mxu0 0.0
          %2185 = vmatpush.xpose.msra.mxu0 0.0
          %2186 = vmatpush.xpose.msra.mxu0 %v2169
          %2187 = vmatmul.f32.gmra.mxu0 %v2167
          %v2188 = vpop.f32.mrf.mxu0
          %v2189 = vadd.f32 0.0, %v2188
          %2190 = vdwg.mxu0
          %v2191 = vmul.f32 %v2105, 0.35355338
          %v2192 = vmul.f32 %v2133, 0.35355338
          %v2193 = vmul.f32 %v2161, 0.35355338
          %v2194 = vmul.f32 %v2189, 0.35355338
          %v2195 = vsel %vm2080, %v2191, -inf
          %2196 = vmax.xlane.f32.xlu0 %v2195
          %v2197 = vpop.xlane.xlu0 %2196
          %v2198 = vsel %vm2080, %v2192, -inf
          %2199 = vmax.xlane.f32.xlu0 %v2198
          %v2200 = vpop.xlane.xlu0 %2199
          %v2201 = vsel %vm2080, %v2193, -inf
          %2202 = vmax.xlane.f32.xlu0 %v2201
          %v2203 = vpop.xlane.xlu0 %2202
          %v2204 = vsel %vm2080, %v2194, -inf
          %2205 = vmax.xlane.f32.xlu0 %v2204
          %v2206 = vpop.xlane.xlu0 %2205
          %v2207 = vsub.f32 %v2191, %v2197
          %v2208 = vsub.f32 %v2192, %v2200
          %v2209 = vsub.f32 %v2193, %v2203
          %v2210 = vsub.f32 %v2194, %v2206
          %v2211 = vmul.f32 %v2207, 1.442695
          %v2212 = vpow.pop %v2211
          %v2213 = vmul.f32 %v2208, 1.442695
          %v2214 = vpow.pop %v2213
          %v2215 = vmul.f32 %v2209, 1.442695
          %v2216 = vpow.pop %v2215
          %v2217 = vmul.f32 %v2210, 1.442695
          %v2218 = vpow.pop %v2217
          %v2219 = vsel %vm2080, %v2212, 0.0
          %2220 = vadd.xlane.f32.xlu0 %v2219
          %v2221 = vpop.xlane.xlu0 %2220
          %v2222 = vsel %vm2080, %v2214, 0.0
          %2223 = vadd.xlane.f32.xlu0 %v2222
          %v2224 = vpop.xlane.xlu0 %2223
          %v2225 = vsel %vm2080, %v2216, 0.0
          %2226 = vadd.xlane.f32.xlu0 %v2225
          %v2227 = vpop.xlane.xlu0 %2226
          %v2228 = vsel %vm2080, %v2218, 0.0
          %2229 = vadd.xlane.f32.xlu0 %v2228
          %v2230 = vpop.xlane.xlu0 %2229
          %v2231 = vrcp.pop %v2221
          %v2232 = vrcp.pop %v2224
          %v2233 = vrcp.pop %v2227
          %v2234 = vrcp.pop %v2230
          %v2235 = vmul.f32 %v2212, %v2231
          %v2236 = vmul.f32 %v2214, %v2232
          %v2237 = vmul.f32 %v2216, %v2233
          %v2238 = vmul.f32 %v2218, %v2234
          %2239 = vrot.lane.b32.xlu0 %v2078, 96
          %v2240 = vpop.permute.xlu0 %2239
          %v2243 = vsel %vm2080, %v2235, 0
          %2245 = vmatpush.msra.mxu0 0.0
          %2246 = vmatpush.msra.mxu0 0.0
          %2247 = vmatpush.msra.mxu0 0.0
          %2248 = vmatpush.msra.mxu0 0.0
          %2249 = vmatpush.msra.mxu0 0.0
          %2250 = vmatpush.msra.mxu0 0.0
          %2251 = vmatpush.msra.mxu0 0.0
          %2252 = vmatpush.msra.mxu0 0.0
          %2253 = vmatpush.msra.mxu0 0.0
          %2254 = vmatpush.msra.mxu0 0.0
          %2255 = vmatpush.msra.mxu0 0.0
          %2256 = vmatpush.msra.mxu0 0.0
          %2257 = vmatpush.msra.mxu0 0.0
          %2258 = vmatpush.msra.mxu0 0.0
          %2259 = vmatpush.msra.mxu0 0.0
          %2260 = vmatpush.msra.mxu0 %v2240
          %2261 = vmatmul.f32.gmra.mxu0 %v2243
          %v2262 = vpop.f32.mrf.mxu0
          %v2263 = vadd.f32 0.0, %v2262
          %2264 = vdwg.mxu0
          %2265 = vrot.lane.b32.xlu0 %v2078, 88
          %v2266 = vpop.permute.xlu0 %2265
          %v2269 = vsel %vm2080, %v2236, 0
          %2271 = vmatpush.msra.mxu0 0.0
          %2272 = vmatpush.msra.mxu0 0.0
          %2273 = vmatpush.msra.mxu0 0.0
          %2274 = vmatpush.msra.mxu0 0.0
          %2275 = vmatpush.msra.mxu0 0.0
          %2276 = vmatpush.msra.mxu0 0.0
          %2277 = vmatpush.msra.mxu0 0.0
          %2278 = vmatpush.msra.mxu0 0.0
          %2279 = vmatpush.msra.mxu0 0.0
          %2280 = vmatpush.msra.mxu0 0.0
          %2281 = vmatpush.msra.mxu0 0.0
          %2282 = vmatpush.msra.mxu0 0.0
          %2283 = vmatpush.msra.mxu0 0.0
          %2284 = vmatpush.msra.mxu0 0.0
          %2285 = vmatpush.msra.mxu0 0.0
          %2286 = vmatpush.msra.mxu0 %v2266
          %2287 = vmatmul.f32.gmra.mxu0 %v2269
          %v2288 = vpop.f32.mrf.mxu0
          %v2289 = vadd.f32 0.0, %v2288
          %2290 = vdwg.mxu0
          %2291 = vrot.lane.b32.xlu0 %v2078, 80
          %v2292 = vpop.permute.xlu0 %2291
          %v2295 = vsel %vm2080, %v2237, 0
          %2297 = vmatpush.msra.mxu0 0.0
          %2298 = vmatpush.msra.mxu0 0.0
          %2299 = vmatpush.msra.mxu0 0.0
          %2300 = vmatpush.msra.mxu0 0.0
          %2301 = vmatpush.msra.mxu0 0.0
          %2302 = vmatpush.msra.mxu0 0.0
          %2303 = vmatpush.msra.mxu0 0.0
          %2304 = vmatpush.msra.mxu0 0.0
          %2305 = vmatpush.msra.mxu0 0.0
          %2306 = vmatpush.msra.mxu0 0.0
          %2307 = vmatpush.msra.mxu0 0.0
          %2308 = vmatpush.msra.mxu0 0.0
          %2309 = vmatpush.msra.mxu0 0.0
          %2310 = vmatpush.msra.mxu0 0.0
          %2311 = vmatpush.msra.mxu0 0.0
          %2312 = vmatpush.msra.mxu0 %v2292
          %2313 = vmatmul.f32.gmra.mxu0 %v2295
          %v2314 = vpop.f32.mrf.mxu0
          %v2315 = vadd.f32 0.0, %v2314
          %2316 = vdwg.mxu0
          %2317 = vrot.lane.b32.xlu0 %v2078, 72
          %v2318 = vpop.permute.xlu0 %2317
          %v2321 = vsel %vm2080, %v2238, 0
          %2323 = vmatpush.msra.mxu0 0.0
          %2324 = vmatpush.msra.mxu0 0.0
          %2325 = vmatpush.msra.mxu0 0.0
          %2326 = vmatpush.msra.mxu0 0.0
          %2327 = vmatpush.msra.mxu0 0.0
          %2328 = vmatpush.msra.mxu0 0.0
          %2329 = vmatpush.msra.mxu0 0.0
          %2330 = vmatpush.msra.mxu0 0.0
          %2331 = vmatpush.msra.mxu0 0.0
          %2332 = vmatpush.msra.mxu0 0.0
          %2333 = vmatpush.msra.mxu0 0.0
          %2334 = vmatpush.msra.mxu0 0.0
          %2335 = vmatpush.msra.mxu0 0.0
          %2336 = vmatpush.msra.mxu0 0.0
          %2337 = vmatpush.msra.mxu0 0.0
          %2338 = vmatpush.msra.mxu0 %v2318
          %2339 = vmatmul.f32.gmra.mxu0 %v2321
          %v2340 = vpop.f32.mrf.mxu0
          %v2341 = vadd.f32 0.0, %v2340
          %2342 = vdwg.mxu0
          %2344 = vrot.lane.b32.xlu0 %v2289, 8
          %v2345 = vpop.permute.xlu0 %2344
          %2348 = vrot.lane.b32.xlu0 %v2315, 16
          %v2349 = vpop.permute.xlu0 %2348
          %2352 = vrot.lane.b32.xlu0 %v2341, 24
          %v2353 = vpop.permute.xlu0 %2352
          %v2355 = vsel %vm2080, %v2263, %v2345
          %vm2356 = vcmask 130048
          %v2357 = vsel %vm2356, %v2355, %v2349
          %vm2358 = vcmask 195584
          %v2359 = vsel %vm2358, %v2357, %v2353
          %v2361 = vperm.slane %v1080, 0
          %v2364 = vsel %vm2032, %v2359, 0
          %2366 = vmatpush.msra.mxu0 0.0
          %2367 = vmatpush.msra.mxu0 0.0
          %2368 = vmatpush.msra.mxu0 0.0
          %2369 = vmatpush.msra.mxu0 0.0
          %2370 = vmatpush.msra.mxu0 0.0
          %2371 = vmatpush.msra.mxu0 0.0
          %2372 = vmatpush.msra.mxu0 0.0
          %2373 = vmatpush.msra.mxu0 0.0
          %2374 = vmatpush.msra.mxu0 0.0
          %2375 = vmatpush.msra.mxu0 0.0
          %2376 = vmatpush.msra.mxu0 0.0
          %2377 = vmatpush.msra.mxu0 0.0
          %2378 = vmatpush.msra.mxu0 %v1079
          %2379 = vmatpush.msra.mxu0 %v1078
          %2380 = vmatpush.msra.mxu0 %v1077
          %2381 = vmatpush.msra.mxu0 %v1076
          %2382 = vmatmul.f32.gmra.mxu0 %v2364
          %v2383 = vpop.f32.mrf.mxu0
          %v2384 = vadd.f32 %v2361, %v2383
          %2385 = vdwg.mxu0
          %2387 = vrot.lane.b32.xlu0 %v2384, 32
          %v2388 = vpop.permute.xlu0 %2387
          %v2390 = vadd.f32 %v2025, %v2388
          %2392 = vrot.lane.b32.xlu0 %v2390, 96
          %v2393 = vpop.permute.xlu0 %2392
          %v2395 = vsel %vm2032, %v2393, 0.0
          %2396 = vadd.xlane.f32.xlu0 %v2395
          %v2397 = vpop.xlane.xlu0 %2396
          %v2398 = vrcp.pop 32.0
          %v2399 = vmul.f32 32.0, %v2398
          %v2400 = vsub.f32 1.0, %v2399
          %v2401 = vmul.f32 %v2398, %v2400
          %v2402 = vadd.f32 %v2398, %v2401
          %vm2403 = vweird.f32 %v2398
          %v2404 = vsel %vm2403, %v2398, %v2402
          %v2405 = vmul.f32 %v2397, %v2404
          %v2406 = vsub.f32 %v2390, %v2405
          %v2407 = vmul.f32 %v2406, %v2406
          %2409 = vrot.lane.b32.xlu0 %v2407, 96
          %v2410 = vpop.permute.xlu0 %2409
          %v2412 = vsel %vm2032, %v2410, 0.0
          %2413 = vadd.xlane.f32.xlu0 %v2412
          %v2414 = vpop.xlane.xlu0 %2413
          %v2415 = vmul.f32 %v2414, %v2404
          %v2416 = vadd.f32 %v2415, 1e-05
          %v2417 = vrsqrt.pop %v2416
          %v2418 = vmul.f32 %v2417, %v2416
          %v2419 = vmul.f32 %v2418, %v2417
          %v2420 = vmul.f32 0.5, %v2419
          %v2421 = vsub.f32 1.5, %v2420
          %v2422 = vmul.f32 %v2417, %v2421
          %vm2423 = vweird.f32 %v2416
          %vm2424 = vweird.f32 %v2417
          %vm2425 = vmor %vm2423, %vm2424
          %v2426 = vsel %vm2425, %v2417, %v2422
          %v2427 = vmul.f32 %v2406, %v2426
          %v2429 = vperm.slane %v1081, 0
          %2430 = vrot.lane.b32.xlu0 %v2429, 32
          %v2431 = vpop.permute.xlu0 %2430
          %v2433 = vmul.f32 %v2427, %v2431
          %v2435 = vperm.slane %v1082, 0
          %2436 = vrot.lane.b32.xlu0 %v2435, 32
          %v2437 = vpop.permute.xlu0 %2436
          %v2439 = vadd.f32 %v2433, %v2437
          %v2441 = vperm.slane %v1087, 0
          %2444 = vrot.lane.b32.xlu0 %v2439, 96
          %v2445 = vpop.permute.xlu0 %2444
          %v2446 = vsel %vm2032, %v2445, 0
          %2448 = vmatpush.msra.mxu0 0.0
          %2449 = vmatpush.msra.mxu0 0.0
          %2450 = vmatpush.msra.mxu0 0.0
          %2451 = vmatpush.msra.mxu0 0.0
          %2452 = vmatpush.msra.mxu0 0.0
          %2453 = vmatpush.msra.mxu0 0.0
          %2454 = vmatpush.msra.mxu0 0.0
          %2455 = vmatpush.msra.mxu0 0.0
          %2456 = vmatpush.msra.mxu0 0.0
          %2457 = vmatpush.msra.mxu0 0.0
          %2458 = vmatpush.msra.mxu0 0.0
          %2459 = vmatpush.msra.mxu0 0.0
          %2460 = vmatpush.msra.mxu0 %v1086
          %2461 = vmatpush.msra.mxu0 %v1085
          %2462 = vmatpush.msra.mxu0 %v1084
          %2463 = vmatpush.msra.mxu0 %v1083
          %2464 = vmatmul.f32.gmra.mxu0 %v2446
          %v2465 = vpop.f32.mrf.mxu0
          %v2466 = vadd.f32 %v2441, %v2465
          %2467 = vdwg.mxu0
          %v2468 = vmax.f32 %v2466, 0.0
          %v2470 = vperm.slane %v1096, 0
          %vm2472 = vcmask 523264
          %v2474 = vsel %vm2472, %v2468, 0
          %2476 = vmatpush.msra.mxu0 0.0
          %2477 = vmatpush.msra.mxu0 0.0
          %2478 = vmatpush.msra.mxu0 0.0
          %2479 = vmatpush.msra.mxu0 0.0
          %2480 = vmatpush.msra.mxu0 0.0
          %2481 = vmatpush.msra.mxu0 0.0
          %2482 = vmatpush.msra.mxu0 0.0
          %2483 = vmatpush.msra.mxu0 0.0
          %2484 = vmatpush.msra.mxu0 %v1095
          %2485 = vmatpush.msra.mxu0 %v1094
          %2486 = vmatpush.msra.mxu0 %v1093
          %2487 = vmatpush.msra.mxu0 %v1092
          %2488 = vmatpush.msra.mxu0 %v1091
          %2489 = vmatpush.msra.mxu0 %v1090
          %2490 = vmatpush.msra.mxu0 %v1089
          %2491 = vmatpush.msra.mxu0 %v1088
          %2492 = vmatmul.f32.gmra.mxu0 %v2474
          %v2493 = vpop.f32.mrf.mxu0
          %v2494 = vadd.f32 %v2470, %v2493
          %2495 = vdwg.mxu0
          %2497 = vrot.lane.b32.xlu0 %v2494, 32
          %v2498 = vpop.permute.xlu0 %2497
          %v2500 = vadd.f32 %v2439, %v2498
          %2502 = vrot.lane.b32.xlu0 %v2500, 96
          %v2503 = vpop.permute.xlu0 %2502
          %v2505 = vsel %vm2032, %v2503, 0.0
          %2506 = vadd.xlane.f32.xlu0 %v2505
          %v2507 = vpop.xlane.xlu0 %2506
          %v2508 = vmul.f32 %v2507, %v2404
          %v2509 = vsub.f32 %v2500, %v2508
          %v2510 = vmul.f32 %v2509, %v2509
          %2512 = vrot.lane.b32.xlu0 %v2510, 96
          %v2513 = vpop.permute.xlu0 %2512
          %v2515 = vsel %vm2032, %v2513, 0.0
          %2516 = vadd.xlane.f32.xlu0 %v2515
          %v2517 = vpop.xlane.xlu0 %2516
          %v2518 = vmul.f32 %v2517, %v2404
          %v2519 = vadd.f32 %v2518, 1e-05
          %v2520 = vrsqrt.pop %v2519
          %v2521 = vmul.f32 %v2520, %v2519
          %v2522 = vmul.f32 %v2521, %v2520
          %v2523 = vmul.f32 0.5, %v2522
          %v2524 = vsub.f32 1.5, %v2523
          %v2525 = vmul.f32 %v2520, %v2524
          %vm2526 = vweird.f32 %v2519
          %vm2527 = vweird.f32 %v2520
          %vm2528 = vmor %vm2526, %vm2527
          %v2529 = vsel %vm2528, %v2520, %v2525
          %v2530 = vmul.f32 %v2509, %v2529
          %v2532 = vperm.slane %v1097, 0
          %2533 = vrot.lane.b32.xlu0 %v2532, 32
          %v2534 = vpop.permute.xlu0 %2533
          %v2536 = vmul.f32 %v2530, %v2534
          %v2538 = vperm.slane %v1098, 0
          %2539 = vrot.lane.b32.xlu0 %v2538, 32
          %v2540 = vpop.permute.xlu0 %2539
          %v2542 = vadd.f32 %v2536, %v2540
          %v2544 = vperm.slane %v1075, 0
          %2547 = vrot.lane.b32.xlu0 %v2542, 96
          %v2548 = vpop.permute.xlu0 %2547
          %v2549 = vsel %vm2032, %v2548, 0
          %2551 = vmatpush.msra.mxu0 0.0
          %2552 = vmatpush.msra.mxu0 0.0
          %2553 = vmatpush.msra.mxu0 0.0
          %2554 = vmatpush.msra.mxu0 0.0
          %2555 = vmatpush.msra.mxu0 0.0
          %2556 = vmatpush.msra.mxu0 0.0
          %2557 = vmatpush.msra.mxu0 0.0
          %2558 = vmatpush.msra.mxu0 0.0
          %2559 = vmatpush.msra.mxu0 0.0
          %2560 = vmatpush.msra.mxu0 0.0
          %2561 = vmatpush.msra.mxu0 0.0
          %2562 = vmatpush.msra.mxu0 0.0
          %2563 = vmatpush.msra.mxu0 %v1074
          %2564 = vmatpush.msra.mxu0 %v1073
          %2565 = vmatpush.msra.mxu0 %v1072
          %2566 = vmatpush.msra.mxu0 %v1071
          %2567 = vmatmul.f32.gmra.mxu0 %v2549
          %v2568 = vpop.f32.mrf.mxu0
          %v2569 = vadd.f32 %v2544, %v2568
          %2570 = vdwg.mxu0
          %2571 = vrot.lane.b32.xlu0 %v2053, 96
          %v2572 = vpop.permute.xlu0 %2571
          %v2574 = vsel %vm2080, %v2569, 0
          %v2576 = vsel %vm2080, %v2572, 0
          %2578 = vmatpush.xpose.msra.mxu0 0.0
          %2579 = vmatpush.xpose.msra.mxu0 0.0
          %2580 = vmatpush.xpose.msra.mxu0 0.0
          %2581 = vmatpush.xpose.msra.mxu0 0.0
          %2582 = vmatpush.xpose.msra.mxu0 0.0
          %2583 = vmatpush.xpose.msra.mxu0 0.0
          %2584 = vmatpush.xpose.msra.mxu0 0.0
          %2585 = vmatpush.xpose.msra.mxu0 0.0
          %2586 = vmatpush.xpose.msra.mxu0 0.0
          %2587 = vmatpush.xpose.msra.mxu0 0.0
          %2588 = vmatpush.xpose.msra.mxu0 0.0
          %2589 = vmatpush.xpose.msra.mxu0 0.0
          %2590 = vmatpush.xpose.msra.mxu0 0.0
          %2591 = vmatpush.xpose.msra.mxu0 0.0
          %2592 = vmatpush.xpose.msra.mxu0 0.0
          %2593 = vmatpush.xpose.msra.mxu0 %v2576
          %2594 = vmatmul.f32.gmra.mxu0 %v2574
          %v2595 = vpop.f32.mrf.mxu0
          %v2596 = vadd.f32 0.0, %v2595
          %2597 = vdwg.mxu0
          %2598 = vrot.lane.b32.xlu0 %v2569, 120
          %v2599 = vpop.permute.xlu0 %2598
          %2600 = vrot.lane.b32.xlu0 %v2053, 88
          %v2601 = vpop.permute.xlu0 %2600
          %v2602 = vsel %vm2080, %v2599, 0
          %v2604 = vsel %vm2080, %v2601, 0
          %2606 = vmatpush.xpose.msra.mxu0 0.0
          %2607 = vmatpush.xpose.msra.mxu0 0.0
          %2608 = vmatpush.xpose.msra.mxu0 0.0
          %2609 = vmatpush.xpose.msra.mxu0 0.0
          %2610 = vmatpush.xpose.msra.mxu0 0.0
          %2611 = vmatpush.xpose.msra.mxu0 0.0
          %2612 = vmatpush.xpose.msra.mxu0 0.0
          %2613 = vmatpush.xpose.msra.mxu0 0.0
          %2614 = vmatpush.xpose.msra.mxu0 0.0
          %2615 = vmatpush.xpose.msra.mxu0 0.0
          %2616 = vmatpush.xpose.msra.mxu0 0.0
          %2617 = vmatpush.xpose.msra.mxu0 0.0
          %2618 = vmatpush.xpose.msra.mxu0 0.0
          %2619 = vmatpush.xpose.msra.mxu0 0.0
          %2620 = vmatpush.xpose.msra.mxu0 0.0
          %2621 = vmatpush.xpose.msra.mxu0 %v2604
          %2622 = vmatmul.f32.gmra.mxu0 %v2602
          %v2623 = vpop.f32.mrf.mxu0
          %v2624 = vadd.f32 0.0, %v2623
          %2625 = vdwg.mxu0
          %2626 = vrot.lane.b32.xlu0 %v2569, 112
          %v2627 = vpop.permute.xlu0 %2626
          %2628 = vrot.lane.b32.xlu0 %v2053, 80
          %v2629 = vpop.permute.xlu0 %2628
          %v2630 = vsel %vm2080, %v2627, 0
          %v2632 = vsel %vm2080, %v2629, 0
          %2634 = vmatpush.xpose.msra.mxu0 0.0
          %2635 = vmatpush.xpose.msra.mxu0 0.0
          %2636 = vmatpush.xpose.msra.mxu0 0.0
          %2637 = vmatpush.xpose.msra.mxu0 0.0
          %2638 = vmatpush.xpose.msra.mxu0 0.0
          %2639 = vmatpush.xpose.msra.mxu0 0.0
          %2640 = vmatpush.xpose.msra.mxu0 0.0
          %2641 = vmatpush.xpose.msra.mxu0 0.0
          %2642 = vmatpush.xpose.msra.mxu0 0.0
          %2643 = vmatpush.xpose.msra.mxu0 0.0
          %2644 = vmatpush.xpose.msra.mxu0 0.0
          %2645 = vmatpush.xpose.msra.mxu0 0.0
          %2646 = vmatpush.xpose.msra.mxu0 0.0
          %2647 = vmatpush.xpose.msra.mxu0 0.0
          %2648 = vmatpush.xpose.msra.mxu0 0.0
          %2649 = vmatpush.xpose.msra.mxu0 %v2632
          %2650 = vmatmul.f32.gmra.mxu0 %v2630
          %v2651 = vpop.f32.mrf.mxu0
          %v2652 = vadd.f32 0.0, %v2651
          %2653 = vdwg.mxu0
          %2654 = vrot.lane.b32.xlu0 %v2569, 104
          %v2655 = vpop.permute.xlu0 %2654
          %2656 = vrot.lane.b32.xlu0 %v2053, 72
          %v2657 = vpop.permute.xlu0 %2656
          %v2658 = vsel %vm2080, %v2655, 0
          %v2660 = vsel %vm2080, %v2657, 0
          %2662 = vmatpush.xpose.msra.mxu0 0.0
          %2663 = vmatpush.xpose.msra.mxu0 0.0
          %2664 = vmatpush.xpose.msra.mxu0 0.0
          %2665 = vmatpush.xpose.msra.mxu0 0.0
          %2666 = vmatpush.xpose.msra.mxu0 0.0
          %2667 = vmatpush.xpose.msra.mxu0 0.0
          %2668 = vmatpush.xpose.msra.mxu0 0.0
          %2669 = vmatpush.xpose.msra.mxu0 0.0
          %2670 = vmatpush.xpose.msra.mxu0 0.0
          %2671 = vmatpush.xpose.msra.mxu0 0.0
          %2672 = vmatpush.xpose.msra.mxu0 0.0
          %2673 = vmatpush.xpose.msra.mxu0 0.0
          %2674 = vmatpush.xpose.msra.mxu0 0.0
          %2675 = vmatpush.xpose.msra.mxu0 0.0
          %2676 = vmatpush.xpose.msra.mxu0 0.0
          %2677 = vmatpush.xpose.msra.mxu0 %v2660
          %2678 = vmatmul.f32.gmra.mxu0 %v2658
          %v2679 = vpop.f32.mrf.mxu0
          %v2680 = vadd.f32 0.0, %v2679
          %2681 = vdwg.mxu0
          %v2682 = vmul.f32 %v2596, 0.35355338
          %v2683 = vmul.f32 %v2624, 0.35355338
          %v2684 = vmul.f32 %v2652, 0.35355338
          %v2685 = vmul.f32 %v2680, 0.35355338
          %v2686 = vsel %vm2080, %v2682, -inf
          %2687 = vmax.xlane.f32.xlu0 %v2686
          %v2688 = vpop.xlane.xlu0 %2687
          %v2689 = vsel %vm2080, %v2683, -inf
          %2690 = vmax.xlane.f32.xlu0 %v2689
          %v2691 = vpop.xlane.xlu0 %2690
          %v2692 = vsel %vm2080, %v2684, -inf
          %2693 = vmax.xlane.f32.xlu0 %v2692
          %v2694 = vpop.xlane.xlu0 %2693
          %v2695 = vsel %vm2080, %v2685, -inf
          %2696 = vmax.xlane.f32.xlu0 %v2695
          %v2697 = vpop.xlane.xlu0 %2696
          %v2698 = vsub.f32 %v2682, %v2688
          %v2699 = vsub.f32 %v2683, %v2691
          %v2700 = vsub.f32 %v2684, %v2694
          %v2701 = vsub.f32 %v2685, %v2697
          %v2702 = vmul.f32 %v2698, 1.442695
          %v2703 = vpow.pop %v2702
          %v2704 = vmul.f32 %v2699, 1.442695
          %v2705 = vpow.pop %v2704
          %v2706 = vmul.f32 %v2700, 1.442695
          %v2707 = vpow.pop %v2706
          %v2708 = vmul.f32 %v2701, 1.442695
          %v2709 = vpow.pop %v2708
          %v2710 = vsel %vm2080, %v2703, 0.0
          %2711 = vadd.xlane.f32.xlu0 %v2710
          %v2712 = vpop.xlane.xlu0 %2711
          %v2713 = vsel %vm2080, %v2705, 0.0
          %2714 = vadd.xlane.f32.xlu0 %v2713
          %v2715 = vpop.xlane.xlu0 %2714
          %v2716 = vsel %vm2080, %v2707, 0.0
          %2717 = vadd.xlane.f32.xlu0 %v2716
          %v2718 = vpop.xlane.xlu0 %2717
          %v2719 = vsel %vm2080, %v2709, 0.0
          %2720 = vadd.xlane.f32.xlu0 %v2719
          %v2721 = vpop.xlane.xlu0 %2720
          %v2722 = vrcp.pop %v2712
          %v2723 = vrcp.pop %v2715
          %v2724 = vrcp.pop %v2718
          %v2725 = vrcp.pop %v2721
          %v2726 = vmul.f32 %v2703, %v2722
          %v2727 = vmul.f32 %v2705, %v2723
          %v2728 = vmul.f32 %v2707, %v2724
          %v2729 = vmul.f32 %v2709, %v2725
          %2730 = vrot.lane.b32.xlu0 %v2053, 64
          %v2731 = vpop.permute.xlu0 %2730
          %v2734 = vsel %vm2080, %v2726, 0
          %2736 = vmatpush.msra.mxu0 0.0
          %2737 = vmatpush.msra.mxu0 0.0
          %2738 = vmatpush.msra.mxu0 0.0
          %2739 = vmatpush.msra.mxu0 0.0
          %2740 = vmatpush.msra.mxu0 0.0
          %2741 = vmatpush.msra.mxu0 0.0
          %2742 = vmatpush.msra.mxu0 0.0
          %2743 = vmatpush.msra.mxu0 0.0
          %2744 = vmatpush.msra.mxu0 0.0
          %2745 = vmatpush.msra.mxu0 0.0
          %2746 = vmatpush.msra.mxu0 0.0
          %2747 = vmatpush.msra.mxu0 0.0
          %2748 = vmatpush.msra.mxu0 0.0
          %2749 = vmatpush.msra.mxu0 0.0
          %2750 = vmatpush.msra.mxu0 0.0
          %2751 = vmatpush.msra.mxu0 %v2731
          %2752 = vmatmul.f32.gmra.mxu0 %v2734
          %v2753 = vpop.f32.mrf.mxu0
          %v2754 = vadd.f32 0.0, %v2753
          %2755 = vdwg.mxu0
          %2756 = vrot.lane.b32.xlu0 %v2053, 56
          %v2757 = vpop.permute.xlu0 %2756
          %v2760 = vsel %vm2080, %v2727, 0
          %2762 = vmatpush.msra.mxu0 0.0
          %2763 = vmatpush.msra.mxu0 0.0
          %2764 = vmatpush.msra.mxu0 0.0
          %2765 = vmatpush.msra.mxu0 0.0
          %2766 = vmatpush.msra.mxu0 0.0
          %2767 = vmatpush.msra.mxu0 0.0
          %2768 = vmatpush.msra.mxu0 0.0
          %2769 = vmatpush.msra.mxu0 0.0
          %2770 = vmatpush.msra.mxu0 0.0
          %2771 = vmatpush.msra.mxu0 0.0
          %2772 = vmatpush.msra.mxu0 0.0
          %2773 = vmatpush.msra.mxu0 0.0
          %2774 = vmatpush.msra.mxu0 0.0
          %2775 = vmatpush.msra.mxu0 0.0
          %2776 = vmatpush.msra.mxu0 0.0
          %2777 = vmatpush.msra.mxu0 %v2757
          %2778 = vmatmul.f32.gmra.mxu0 %v2760
          %v2779 = vpop.f32.mrf.mxu0
          %v2780 = vadd.f32 0.0, %v2779
          %2781 = vdwg.mxu0
          %2782 = vrot.lane.b32.xlu0 %v2053, 48
          %v2783 = vpop.permute.xlu0 %2782
          %v2786 = vsel %vm2080, %v2728, 0
          %2788 = vmatpush.msra.mxu0 0.0
          %2789 = vmatpush.msra.mxu0 0.0
          %2790 = vmatpush.msra.mxu0 0.0
          %2791 = vmatpush.msra.mxu0 0.0
          %2792 = vmatpush.msra.mxu0 0.0
          %2793 = vmatpush.msra.mxu0 0.0
          %2794 = vmatpush.msra.mxu0 0.0
          %2795 = vmatpush.msra.mxu0 0.0
          %2796 = vmatpush.msra.mxu0 0.0
          %2797 = vmatpush.msra.mxu0 0.0
          %2798 = vmatpush.msra.mxu0 0.0
          %2799 = vmatpush.msra.mxu0 0.0
          %2800 = vmatpush.msra.mxu0 0.0
          %2801 = vmatpush.msra.mxu0 0.0
          %2802 = vmatpush.msra.mxu0 0.0
          %2803 = vmatpush.msra.mxu0 %v2783
          %2804 = vmatmul.f32.gmra.mxu0 %v2786
          %v2805 = vpop.f32.mrf.mxu0
          %v2806 = vadd.f32 0.0, %v2805
          %2807 = vdwg.mxu0
          %2808 = vrot.lane.b32.xlu0 %v2053, 40
          %v2809 = vpop.permute.xlu0 %2808
          %v2812 = vsel %vm2080, %v2729, 0
          %2814 = vmatpush.msra.mxu0 0.0
          %2815 = vmatpush.msra.mxu0 0.0
          %2816 = vmatpush.msra.mxu0 0.0
          %2817 = vmatpush.msra.mxu0 0.0
          %2818 = vmatpush.msra.mxu0 0.0
          %2819 = vmatpush.msra.mxu0 0.0
          %2820 = vmatpush.msra.mxu0 0.0
          %2821 = vmatpush.msra.mxu0 0.0
          %2822 = vmatpush.msra.mxu0 0.0
          %2823 = vmatpush.msra.mxu0 0.0
          %2824 = vmatpush.msra.mxu0 0.0
          %2825 = vmatpush.msra.mxu0 0.0
          %2826 = vmatpush.msra.mxu0 0.0
          %2827 = vmatpush.msra.mxu0 0.0
          %2828 = vmatpush.msra.mxu0 0.0
          %2829 = vmatpush.msra.mxu0 %v2809
          %2830 = vmatmul.f32.gmra.mxu0 %v2812
          %v2831 = vpop.f32.mrf.mxu0
          %v2832 = vadd.f32 0.0, %v2831
          %2833 = vdwg.mxu0
          %2835 = vrot.lane.b32.xlu0 %v2780, 8
          %v2836 = vpop.permute.xlu0 %2835
          %2839 = vrot.lane.b32.xlu0 %v2806, 16
          %v2840 = vpop.permute.xlu0 %2839
          %2843 = vrot.lane.b32.xlu0 %v2832, 24
          %v2844 = vpop.permute.xlu0 %2843
          %v2846 = vsel %vm2080, %v2754, %v2836
          %v2847 = vsel %vm2356, %v2846, %v2840
          %v2848 = vsel %vm2358, %v2847, %v2844
          %v2850 = vsel %vm2032, %v2848, 0
          %2852 = vmatpush.msra.mxu0 0.0
          %2853 = vmatpush.msra.mxu0 0.0
          %2854 = vmatpush.msra.mxu0 0.0
          %2855 = vmatpush.msra.mxu0 0.0
          %2856 = vmatpush.msra.mxu0 0.0
          %2857 = vmatpush.msra.mxu0 0.0
          %2858 = vmatpush.msra.mxu0 0.0
          %2859 = vmatpush.msra.mxu0 0.0
          %2860 = vmatpush.msra.mxu0 0.0
          %2861 = vmatpush.msra.mxu0 0.0
          %2862 = vmatpush.msra.mxu0 0.0
          %2863 = vmatpush.msra.mxu0 0.0
          %2864 = vmatpush.msra.mxu0 %v1079
          %2865 = vmatpush.msra.mxu0 %v1078
          %2866 = vmatpush.msra.mxu0 %v1077
          %2867 = vmatpush.msra.mxu0 %v1076
          %2868 = vmatmul.f32.gmra.mxu0 %v2850
          %v2869 = vpop.f32.mrf.mxu0
          %v2870 = vadd.f32 %v2361, %v2869
          %2871 = vdwg.mxu0
          %2873 = vrot.lane.b32.xlu0 %v2870, 32
          %v2874 = vpop.permute.xlu0 %2873
          %v2876 = vadd.f32 %v2542, %v2874
          %2878 = vrot.lane.b32.xlu0 %v2876, 96
          %v2879 = vpop.permute.xlu0 %2878
          %v2881 = vsel %vm2032, %v2879, 0.0
          %2882 = vadd.xlane.f32.xlu0 %v2881
          %v2883 = vpop.xlane.xlu0 %2882
          %v2884 = vmul.f32 %v2883, %v2404
          %v2885 = vsub.f32 %v2876, %v2884
          %v2886 = vmul.f32 %v2885, %v2885
          %2888 = vrot.lane.b32.xlu0 %v2886, 96
          %v2889 = vpop.permute.xlu0 %2888
          %v2891 = vsel %vm2032, %v2889, 0.0
          %2892 = vadd.xlane.f32.xlu0 %v2891
          %v2893 = vpop.xlane.xlu0 %2892
          %v2894 = vmul.f32 %v2893, %v2404
          %v2895 = vadd.f32 %v2894, 1e-05
          %v2896 = vrsqrt.pop %v2895
          %v2897 = vmul.f32 %v2896, %v2895
          %v2898 = vmul.f32 %v2897, %v2896
          %v2899 = vmul.f32 0.5, %v2898
          %v2900 = vsub.f32 1.5, %v2899
          %v2901 = vmul.f32 %v2896, %v2900
          %vm2902 = vweird.f32 %v2895
          %vm2903 = vweird.f32 %v2896
          %vm2904 = vmor %vm2902, %vm2903
          %v2905 = vsel %vm2904, %v2896, %v2901
          %v2906 = vmul.f32 %v2885, %v2905
          %v2907 = vmul.f32 %v2906, %v2431
          %v2908 = vadd.f32 %v2907, %v2437
          %2910 = vrot.lane.b32.xlu0 %v2908, 96
          %v2911 = vpop.permute.xlu0 %2910
          %v2912 = vsel %vm2032, %v2911, 0
          %2914 = vmatpush.msra.mxu0 0.0
          %2915 = vmatpush.msra.mxu0 0.0
          %2916 = vmatpush.msra.mxu0 0.0
          %2917 = vmatpush.msra.mxu0 0.0
          %2918 = vmatpush.msra.mxu0 0.0
          %2919 = vmatpush.msra.mxu0 0.0
          %2920 = vmatpush.msra.mxu0 0.0
          %2921 = vmatpush.msra.mxu0 0.0
          %2922 = vmatpush.msra.mxu0 0.0
          %2923 = vmatpush.msra.mxu0 0.0
          %2924 = vmatpush.msra.mxu0 0.0
          %2925 = vmatpush.msra.mxu0 0.0
          %2926 = vmatpush.msra.mxu0 %v1086
          %2927 = vmatpush.msra.mxu0 %v1085
          %2928 = vmatpush.msra.mxu0 %v1084
          %2929 = vmatpush.msra.mxu0 %v1083
          %2930 = vmatmul.f32.gmra.mxu0 %v2912
          %v2931 = vpop.f32.mrf.mxu0
          %v2932 = vadd.f32 %v2441, %v2931
          %2933 = vdwg.mxu0
          %v2934 = vmax.f32 %v2932, 0.0
          %v2936 = vsel %vm2472, %v2934, 0
          %2938 = vmatpush.msra.mxu0 0.0
          %2939 = vmatpush.msra.mxu0 0.0
          %2940 = vmatpush.msra.mxu0 0.0
          %2941 = vmatpush.msra.mxu0 0.0
          %2942 = vmatpush.msra.mxu0 0.0
          %2943 = vmatpush.msra.mxu0 0.0
          %2944 = vmatpush.msra.mxu0 0.0
          %2945 = vmatpush.msra.mxu0 0.0
          %2946 = vmatpush.msra.mxu0 %v1095
          %2947 = vmatpush.msra.mxu0 %v1094
          %2948 = vmatpush.msra.mxu0 %v1093
          %2949 = vmatpush.msra.mxu0 %v1092
          %2950 = vmatpush.msra.mxu0 %v1091
          %2951 = vmatpush.msra.mxu0 %v1090
          %2952 = vmatpush.msra.mxu0 %v1089
          %2953 = vmatpush.msra.mxu0 %v1088
          %2954 = vmatmul.f32.gmra.mxu0 %v2936
          %v2955 = vpop.f32.mrf.mxu0
          %v2956 = vadd.f32 %v2470, %v2955
          %2957 = vdwg.mxu0
          %2959 = vrot.lane.b32.xlu0 %v2956, 32
          %v2960 = vpop.permute.xlu0 %2959
          %v2962 = vadd.f32 %v2908, %v2960
          %2964 = vrot.lane.b32.xlu0 %v2962, 96
          %v2965 = vpop.permute.xlu0 %2964
          %v2967 = vsel %vm2032, %v2965, 0.0
          %2968 = vadd.xlane.f32.xlu0 %v2967
          %v2969 = vpop.xlane.xlu0 %2968
          %v2970 = vmul.f32 %v2969, %v2404
          %v2971 = vsub.f32 %v2962, %v2970
          %v2972 = vmul.f32 %v2971, %v2971
          %2974 = vrot.lane.b32.xlu0 %v2972, 96
          %v2975 = vpop.permute.xlu0 %2974
          %v2977 = vsel %vm2032, %v2975, 0.0
          %2978 = vadd.xlane.f32.xlu0 %v2977
          %v2979 = vpop.xlane.xlu0 %2978
          %v2980 = vmul.f32 %v2979, %v2404
          %v2981 = vadd.f32 %v2980, 1e-05
          %v2982 = vrsqrt.pop %v2981
          %v2983 = vmul.f32 %v2982, %v2981
          %v2984 = vmul.f32 %v2983, %v2982
          %v2985 = vmul.f32 0.5, %v2984
          %v2986 = vsub.f32 1.5, %v2985
          %v2987 = vmul.f32 %v2982, %v2986
          %vm2988 = vweird.f32 %v2981
          %vm2989 = vweird.f32 %v2982
          %vm2990 = vmor %vm2988, %vm2989
          %v2991 = vsel %vm2990, %v2982, %v2987
          %v2992 = vmul.f32 %v2971, %v2991
          %v2993 = vmul.f32 %v2992, %v2534
          %v2994 = vadd.f32 %v2993, %v2540
          %v2996 = vsel %vm2032, %v2548, %v2994
          %2997 = vst.msk [vmem:[%s1016] sm:$0xff] %vm2472, %v2996
        $region140: #{tpu_custom_call.1} parent=99 // pred_fallthru
          _
        %s2998 = sand.u32 %s571, 1
        %s2999 = scalar_lea.sflag [#allocation4], %s2998
        %s3000 = sand.u32 %s571, 1
        %s3001 = smul.addr %s3000, 8
        %s3002 = scalar_lea.vmem [#allocation14], %s3001
        // Predicated region
        $region141: #{tpu_custom_call.1} parent=99 // pred_check
          %p3003 = pneg %p581
        $region142: #{tpu_custom_call.1} parent=99 // pred_check_branch
          %3005 = sbr.rel (%p3003) target = $region144
        $region143: #{tpu_custom_call.1} parent=99 // pred_region
          %3007 = vsyncadd %s2999, 0
          %s3008 = smul.addr %s45, 8
          %s3009 = scalar_lea.hbm %s20, %s3008
          %s3011 = sshll.u32 %s3002, 4
          %s3012 = int_to_ptr.vmem [resolvable:$true] %s3011
          %s3013 = sshll.u32 %s3009, 4
          %s3014 = int_to_ptr.hbm [resolvable:$true] %s3013
          %3016 = dma.vmem_to_hbm [thread:$0]  %s3012, 128, %s3014, %s2999
        $region144: #{tpu_custom_call.1} parent=99 // pred_fallthru
          _
      $region100: #{tpu_custom_call.1} parent=5 // pred_fallthru
        _
      %p3017 = scmp.le.s32.totalorder 2, %s36
      // Predicated region
      $region145: #{tpu_custom_call.1} parent=5 // pred_check
        %p3018 = pneg %p3017
      $region146: #{tpu_custom_call.1} parent=5 // pred_check_branch
        %3020 = sbr.rel (%p3018) target = $region148
      $region147: #{tpu_custom_call.1} parent=5 // pred_region
        %s3021 = ssub.s32 %s36, 2
        // Predicated region
        $region149: #{tpu_custom_call.1} parent=147 // pred_check
          %p3022 = pneg %p587
        $region150: #{tpu_custom_call.1} parent=147 // pred_check_branch
          %3024 = sbr.rel (%p3022) target = $region152
        $region151: #{tpu_custom_call.1} parent=147 // pred_region
          %s3025 = sand.u32 %s572, 1
          %s3026 = scalar_lea.sflag [#allocation4], %s3025
          %s3027 = sand.u32 %s572, 1
          %s3028 = smul.addr %s3027, 8
          %s3029 = scalar_lea.vmem [#allocation14], %s3028
          %3031 = dma.done %s3026, 128
        $region152: #{tpu_custom_call.1} parent=147 // pred_fallthru
          _
      $region148: #{tpu_custom_call.1} parent=5 // pred_fallthru
        _
    $region6: #{tpu_custom_call.1} parent=1 // loop_footer
      %s40 = sadd.s32 1, %s36
    $region7: #{tpu_custom_call.1} parent=1 // loop_footer_branch
      %35 = sbr.rel target = $region3
    $region8: #{tpu_custom_call.1} parent=1 // loop_exit
      _
    %3032 = vsyncpa [#allocation3], 1
    %s3033 = scalar_lea.sflag [#allocation3], 1
    %3034 = vsyncpa %s3033, 1
    %3035 = vsyncpa [#allocation6], 1
    %s3036 = scalar_lea.sflag [#allocation6], 1
    %3037 = vsyncpa %s3036, 1
    %3038 = vsyncpa [#allocation9], 1
    %3039 = vsyncpa [#allocation4], 1
    %s3040 = scalar_lea.sflag [#allocation4], 1
    %3041 = vsyncpa %s3040, 1

</llo_original>
